<compile_context>
chip_gen: v6e
topology: v6e:2x2x1
jax: 0.10.0
libtpu: 0.0.40
codegen_flags: <defaults>
</compile_context>

<pallas_src>
import math

import jax
import jax.numpy as jnp
import numpy as np
from jax.experimental import pallas as pl
from jax.experimental.pallas import tpu as pltpu


# ----------------------------- model config (module defaults) -----------------
INPUT_CHANNELS = 1
INPUT_SIZE = (28, 28)
NUM_CLASSES = 10
N_CONV_LAYERS = 1
HIDDEN_DIM = 128
CONV_CHANNELS = [INPUT_CHANNELS] + [32 * 2 ** i for i in range(N_CONV_LAYERS)]  # [1, 32]

_LANES = 128      # lane width; the packed conv/pool kernel assumes 4*cout == 128
_NCLS_PAD = 128   # lane-dense logits store, sliced back to NUM_CLASSES in glue


# ----------------------------- Pallas kernels ---------------------------------
def conv_pool_kernel(cols_ref, wblk_ref, b4_ref, o_ref):
    """Fused conv(im2col) + bias + ReLU + 2x2/stride-2 max-pool, lane-dense.

    cols_ref : (1, q2, 16*K1) bf16 -- row r = one group of 4 consecutive pooled
               pixels; chunk (p*4 + k) of width K1 = 9*Cin holds the im2col taps
               of pooled-pixel-in-group p at pool position k.
    wblk_ref : (16*K1, 512) bf16   -- block-diagonal: block (p, k) maps its K1
               taps to output lanes [k*128 + p*32, k*128 + (p+1)*32).
    b4_ref   : (1, 128) f32        -- conv bias tiled 4x (lane = p*32 + c).
    o_ref    : (1, q2, 128) bf16   -- lane = p*32 + c, i.e. flatten order (yh,xh,c).

    Pool = max over the four vreg-aligned 128-lane quarters of ONE matmul.
    max_k relu(a_k + b) == relu(max_k(a_k) + b) (bias shared, relu monotone).
    """
    a = jnp.dot(cols_ref[0], wblk_ref[...], preferred_element_type=jnp.float32)  # (q2, 512)
    m = jnp.maximum(jnp.maximum(a[:, 0:128], a[:, 128:256]),
                    jnp.maximum(a[:, 256:384], a[:, 384:512]))                    # (q2, 128)
    o_ref[0] = jnp.maximum(m + b4_ref[...], 0.0).astype(o_ref.dtype)


def mlp_kernel(x_ref, w1_ref, b1_ref, w2_ref, b2_ref, o_ref):
    """fc1 + ReLU + fc2 fused, batch-tiled.  bf16 matmul operands, f32 accumulation."""
    x = x_ref[0]                                                       # (tn, fdim) bf16
    h = jnp.dot(x, w1_ref[...], preferred_element_type=jnp.float32) + b1_ref[...]
    h = jnp.maximum(h, 0.0).astype(jnp.bfloat16)
    out = jnp.dot(h, w2_ref[...], preferred_element_type=jnp.float32) + b2_ref[...]
    o_ref[0] = out.astype(o_ref.dtype)


# ----------------------------- helpers -----------------------------------------
def _largest_divisor_leq(n, cap):
    cap = max(1, min(cap, n))
    for d in range(cap, 0, -1):
        if n % d == 0:
            return d
    return 1


def prepare_params(params):
    """One-time parameter prep (done outside the per-step forward).

    - conv weights -> block-diagonal bf16 matrix (16 copies of the (9*Cin, Cout)
      im2col weight) so conv + pool packing is a single matmul per grid step.
    - conv bias tiled 4x to match the (pixel-in-group, channel) output lanes.
    - fc1 weights permuted so fc1 consumes the (yh, xh, c) flatten order directly
      (no runtime transpose), stored bf16.
    - fc2 weights transposed and zero-padded to 128 output lanes, stored bf16.
    """
    conv_w, conv_b, fc1_w, fc1_b, fc2_w, fc2_b = params
    cout, cin = conv_w.shape[0], conv_w.shape[1]
    assert 4 * cout == _LANES, "packed conv/pool kernel assumes cout == 32"
    h, w = INPUT_SIZE
    hh, wh = h // 2, w // 2
    hidden = fc1_w.shape[0]
    ncls = fc2_w.shape[0]
    k1 = 9 * cin

    # im2col weight, tap order (ci, ky, kx)
    wmat = jnp.transpose(conv_w, (1, 2, 3, 0)).reshape(k1, cout).astype(jnp.float32)
    # block-diagonal: block (p=pixel-in-group, k=pool-pos) at rows [(p*4+k)*k1, ...)
    # and lanes [k*128 + p*cout, ...).
    wblk = jnp.zeros((16 * k1, 4 * _LANES), jnp.float32)
    for p in range(4):
        for k in range(4):
            r0 = (p * 4 + k) * k1
            c0 = k * _LANES + p * cout
            wblk = wblk.at[r0:r0 + k1, c0:c0 + cout].set(wmat)
    wblk = wblk.astype(jnp.bfloat16)
    b4 = jnp.tile(conv_b.astype(jnp.float32), 4).reshape(1, _LANES)

    # fc1: (hidden, cout*hh*wh) NCHW-ordered columns -> rows ordered (yh, xh, c)
    w1 = jnp.transpose(fc1_w.reshape(hidden, cout, hh, wh), (2, 3, 1, 0))
    w1 = w1.reshape(hh * wh * cout, hidden).astype(jnp.bfloat16)
    b1 = fc1_b.reshape(1, hidden).astype(jnp.float32)

    w2 = jnp.zeros((hidden, _NCLS_PAD), jnp.float32).at[:, :ncls].set(fc2_w.T)
    w2 = w2.astype(jnp.bfloat16)
    b2 = jnp.zeros((1, _NCLS_PAD), jnp.float32).at[:, :ncls].set(fc2_b.reshape(1, ncls))

    return (wblk, b4, w1, b1, w2, b2)


# ----------------------------- Pallas forward ----------------------------------
def simple_cnn_pallas(x_nchw, kparams):
    n, cin, h, w = x_nchw.shape
    hh, wh = h // 2, w // 2
    wblk, b4, w1, b1, w2, b2 = kparams
    cout = _LANES // 4
    hidden = w1.shape[1]
    k1 = 9 * cin
    fdim = hh * wh * cout
    n_groups = (hh * wh) // 4          # groups of 4 consecutive pooled pixels / image
    assert (hh * wh) % 4 == 0

    # images per conv grid step: amortize per-step overhead; no forced >=2 steps
    # at small batch (v5e/v6e are single-TC, the grid is a sequential loop there).
    b_img = _largest_divisor_leq(n, 16)
    g = n // b_img
    q2 = b_img * n_groups

    # --- im2col glue: bf16, emitted directly in the kernel's packed order ------
    # TODO(synk): tap extraction could move in-kernel from a padded (30,30) tile
    # with sublane/lane shifts, but at these sizes one fused XLA pass over
    # ~14 KB/image of bf16 beats the in-register relayouts.
    xp = jnp.pad(x_nchw, ((0, 0), (0, 0), (1, 1), (1, 1))).astype(jnp.bfloat16)
    taps = [xp[:, ci, ky:ky + h, kx:kx + w]
            for ci in range(cin) for ky in range(3) for kx in range(3)]
    cols = jnp.stack(taps, axis=-1)                       # (N, H, W, K1): conv pixel (Y, X)
    cols = cols.reshape(n, hh, 2, wh, 2, k1)              # (n, yh, yr, xh, xr, t)
    cols = jnp.transpose(cols, (0, 1, 3, 2, 4, 5))        # (n, yh, xh, yr, xr, t)
    cols = cols.reshape(g, q2, 16 * k1)                   # row=(b,group), col=(p,k,t)

    # --- fused conv + bias + relu + pool: one block-diagonal matmul per step ---
    pooled = pl.pallas_call(
        conv_pool_kernel,
        out_shape=jax.ShapeDtypeStruct((g, q2, _LANES), jnp.bfloat16),
        grid=(g,),
        in_specs=[
            pl.BlockSpec((1, q2, 16 * k1), lambda i: (i, 0, 0)),
            pl.BlockSpec((16 * k1, 4 * _LANES), lambda i: (0, 0)),
            pl.BlockSpec((1, _LANES), lambda i: (0, 0)),
        ],
        out_specs=pl.BlockSpec((1, q2, _LANES), lambda i: (i, 0, 0)),
        compiler_params=pltpu.CompilerParams(
            dimension_semantics=("parallel",),
            vmem_limit_bytes=32 * 1024 * 1024),
    )(cols, wblk, b4)                                     # (g, q2, 128) bf16, lane-dense

    # flatten is a free metadata reshape: (g, b*49+grp, p*32+c) is already the
    # contiguous (yh, xh, c) order that the permuted fc1 weights consume.
    flat = pooled.reshape(n, fdim)

    # --- batch-tiled fused MLP (fc1 + relu + fc2), weights resident -------------
    tn = _largest_divisor_leq(n, 512)       # ~6.4 MB/buffer at tn=512, fits scoped VMEM
    g2 = n // tn
    flat3 = flat.reshape(g2, tn, fdim)

    logits_pad = pl.pallas_call(
        mlp_kernel,
        out_shape=jax.ShapeDtypeStruct((g2, tn, _NCLS_PAD), jnp.float32),
        grid=(g2,),
        in_specs=[
            pl.BlockSpec((1, tn, fdim), lambda i: (i, 0, 0)),
            pl.BlockSpec((fdim, hidden), lambda i: (0, 0)),
            pl.BlockSpec((1, hidden), lambda i: (0, 0)),
            pl.BlockSpec((hidden, _NCLS_PAD), lambda i: (0, 0)),
            pl.BlockSpec((1, _NCLS_PAD), lambda i: (0, 0)),
        ],
        out_specs=pl.BlockSpec((1, tn, _NCLS_PAD), lambda i: (i, 0, 0)),
        compiler_params=pltpu.CompilerParams(
            dimension_semantics=("parallel",),
            vmem_limit_bytes=32 * 1024 * 1024),
    )(flat3, w1, b1, w2, b2)

    return logits_pad.reshape(n, _NCLS_PAD)[:, :NUM_CLASSES]


# ----------------------------- pure-JAX reference ------------------------------
def simple_cnn_reference(x_nchw, params):
    n, cin, h, w = x_nchw.shape
    conv_w, conv_b, fc1_w, fc1_b, fc2_w, fc2_b = params
    cout = conv_w.shape[0]
    xp = jnp.pad(x_nchw, ((0, 0), (0, 0), (1, 1), (1, 1)))
    taps = [xp[:, ci, ky:ky + h, kx:kx + w]
            for ci in range(cin) for ky in range(3) for kx in range(3)]
    cols = jnp.stack(taps, axis=-1).reshape(n * h * w, 9 * cin)
    wmat = jnp.transpose(conv_w, (1, 2, 3, 0)).reshape(9 * cin, cout)
    conv = jnp.maximum(cols @ wmat + conv_b[None, :], 0.0).reshape(n, h, w, cout)
    pooled = conv.reshape(n, h // 2, 2, w // 2, 2, cout).max(axis=(2, 4))   # (N, H/2, W/2, C)
    flat = jnp.transpose(pooled, (0, 3, 1, 2)).reshape(n, -1)               # NCHW flatten
    hdn = jnp.maximum(flat @ fc1_w.T + fc1_b[None, :], 0.0)
    return hdn @ fc2_w.T + fc2_b[None, :]


# ----------------------------- params / main -----------------------------------
def init_params(key):
    h, w = INPUT_SIZE
    cin, cout = CONV_CHANNELS[0], CONV_CHANNELS[-1]
    flatten_dim = cout * (h // 2 ** N_CONV_LAYERS) * (w // 2 ** N_CONV_LAYERS)
    ks = jax.random.split(key, 6)
    conv_w = 0.2 * jax.random.normal(ks[0], (cout, cin, 3, 3), jnp.float32)
    conv_b = 0.1 * jax.random.normal(ks[1], (cout,), jnp.float32)
    fc1_w = jax.random.normal(ks[2], (HIDDEN_DIM, flatten_dim), jnp.float32) / math.sqrt(flatten_dim)
    fc1_b = 0.05 * jax.random.normal(ks[3], (HIDDEN_DIM,), jnp.float32)
    fc2_w = jax.random.normal(ks[4], (NUM_CLASSES, HIDDEN_DIM), jnp.float32) / math.sqrt(HIDDEN_DIM)
    fc2_b = 0.05 * jax.random.normal(ks[5], (NUM_CLASSES,), jnp.float32)
    return (conv_w, conv_b, fc1_w, fc1_b, fc2_w, fc2_b)


if __name__ == "__main__":
    key = jax.random.PRNGKey(0)
    k_x, k_p = jax.random.split(key)
    batch = 2
    x = jax.random.normal(k_x, (batch, INPUT_CHANNELS, *INPUT_SIZE), jnp.float32)  # NCHW
    params = init_params(k_p)

    kparams = prepare_params(params)        # one-time weight repack / permutation
    fwd = jax.jit(simple_cnn_pallas)
    out = jax.block_until_ready(fwd(x, kparams))

    ref = jax.block_until_ready(jax.jit(simple_cnn_reference)(x, params))
    assert out.shape == (batch, NUM_CLASSES), out.shape
    # bf16 activations / weights inside the kernels -> compare at 5e-2.
    if not np.allclose(np.asarray(out), np.asarray(ref), rtol=5e-2, atol=5e-2):
        raise AssertionError(
            f"mismatch: max abs diff = {np.max(np.abs(np.asarray(out) - np.asarray(ref)))}"
        )
    print("KERNEL_OK")
</pallas_src>

<mosaic_0001>
module attributes {stable_mosaic.version = 11 : i64} {
  func.func @conv_pool_kernel(%arg0: i32, %arg1: memref<1x98x144xbf16, #tpu.memory_space<vmem>>, %arg2: memref<144x512xbf16, #tpu.memory_space<vmem>>, %arg3: memref<1x128xf32, #tpu.memory_space<vmem>>, %arg4: memref<1x98x128xbf16, #tpu.memory_space<vmem>>) attributes {dimension_semantics = [#tpu.dimension_semantics<parallel>], iteration_bounds = array<i64: 1>, scalar_prefetch = 0 : i64, scratch_operands = 0 : i64, tpu.core_type = #tpu.core_type<tc>, window_params = [{transform_indices = @transform_0, window_bounds = array<i64: 1, 98, 144>}, {pipeline_mode = #tpu.pipeline_mode<synchronous>, transform_indices = @transform_1, window_bounds = array<i64: 144, 512>}, {pipeline_mode = #tpu.pipeline_mode<synchronous>, transform_indices = @transform_2, window_bounds = array<i64: 1, 128>}, {transform_indices = @transform_3, window_bounds = array<i64: 1, 98, 128>}]} {
    %c0 = arith.constant 0 : index
    %c0_0 = arith.constant 0 : index
    %c0_1 = arith.constant 0 : index
    %0 = vector.load %arg1[%c0, %c0_0, %c0_1] : memref<1x98x144xbf16, #tpu.memory_space<vmem>>, vector<1x98x144xbf16>
    %1 = vector.shape_cast %0 : vector<1x98x144xbf16> to vector<98x144xbf16>
    %c0_2 = arith.constant 0 : index
    %c0_3 = arith.constant 0 : index
    %2 = vector.load %arg2[%c0_2, %c0_3] : memref<144x512xbf16, #tpu.memory_space<vmem>>, vector<144x512xbf16>
    %cst = arith.constant dense<0.000000e+00> : vector<98x512xf32>
    %3 = tpu.matmul %1, %2, %cst {dimension_numbers = #tpu.dot_dimension_numbers<[1], [0], [0], [1], [0, 0, 1, 1], [], []>} : vector<98x144xbf16>, vector<144x512xbf16>, vector<98x512xf32> -> vector<98x512xf32>
    %4 = vector.extract_strided_slice %3 {offsets = [0, 0], sizes = [98, 128], strides = [1, 1]} : vector<98x512xf32> to vector<98x128xf32>
    %5 = vector.extract_strided_slice %3 {offsets = [0, 128], sizes = [98, 128], strides = [1, 1]} : vector<98x512xf32> to vector<98x128xf32>
    %6 = arith.maximumf %4, %5 : vector<98x128xf32>
    %7 = vector.extract_strided_slice %3 {offsets = [0, 256], sizes = [98, 128], strides = [1, 1]} : vector<98x512xf32> to vector<98x128xf32>
    %8 = vector.extract_strided_slice %3 {offsets = [0, 384], sizes = [98, 128], strides = [1, 1]} : vector<98x512xf32> to vector<98x128xf32>
    %9 = arith.maximumf %7, %8 : vector<98x128xf32>
    %10 = arith.maximumf %6, %9 : vector<98x128xf32>
    %c0_4 = arith.constant 0 : index
    %c0_5 = arith.constant 0 : index
    %11 = vector.load %arg3[%c0_4, %c0_5] : memref<1x128xf32, #tpu.memory_space<vmem>>, vector<1x128xf32>
    %12 = vector.broadcast %11 : vector<1x128xf32> to vector<98x128xf32>
    %13 = arith.addf %10, %12 : vector<98x128xf32>
    %cst_6 = arith.constant 0.000000e+00 : f32
    %14 = vector.broadcast %cst_6 : f32 to vector<98x128xf32>
    %15 = arith.maximumf %13, %14 : vector<98x128xf32>
    %16 = arith.truncf %15 : vector<98x128xf32> to vector<98x128xbf16>
    %c0_7 = arith.constant 0 : index
    %c0_8 = arith.constant 0 : index
    %c0_9 = arith.constant 0 : index
    %17 = vector.load %arg4[%c0_7, %c0_8, %c0_9] : memref<1x98x128xbf16, #tpu.memory_space<vmem>>, vector<1x98x128xbf16>
    %18 = vector.shape_cast %17 : vector<1x98x128xbf16> to vector<98x128xbf16>
    %19 = vector.shape_cast %16 : vector<98x128xbf16> to vector<1x98x128xbf16>
    tpu.vector_store %arg4[%c0_7, %c0_8, %c0_9], %19 {strides = array<i32>} : memref<1x98x128xbf16, #tpu.memory_space<vmem>>, vector<1x98x128xbf16>,
    return
  }
  func.func @transform_0(%arg0: i32) -> (i32, i32, i32) {
    %c0_i32 = arith.constant 0 : i32
    %c0_i32_0 = arith.constant 0 : i32
    %c0_i32_1 = arith.constant 0 : i32
    return %arg0, %c0_i32, %c0_i32_0 : i32, i32, i32
  }
  func.func @transform_1(%arg0: i32) -> (i32, i32) {
    %c0_i32 = arith.constant 0 : i32
    %c0_i32_0 = arith.constant 0 : i32
    %c0_i32_1 = arith.constant 0 : i32
    return %c0_i32, %c0_i32_0 : i32, i32
  }
  func.func @transform_2(%arg0: i32) -> (i32, i32) {
    %c0_i32 = arith.constant 0 : i32
    %c0_i32_0 = arith.constant 0 : i32
    %c0_i32_1 = arith.constant 0 : i32
    return %c0_i32, %c0_i32_0 : i32, i32
  }
  func.func @transform_3(%arg0: i32) -> (i32, i32, i32) {
    %c0_i32 = arith.constant 0 : i32
    %c0_i32_0 = arith.constant 0 : i32
    %c0_i32_1 = arith.constant 0 : i32
    return %arg0, %c0_i32, %c0_i32_0 : i32, i32, i32
  }
}

module attributes {stable_mosaic.version = 11 : i64} {
  func.func @mlp_kernel(%arg0: i32, %arg1: memref<1x2x6272xbf16, #tpu.memory_space<vmem>>, %arg2: memref<6272x128xbf16, #tpu.memory_space<vmem>>, %arg3: memref<1x128xf32, #tpu.memory_space<vmem>>, %arg4: memref<128x128xbf16, #tpu.memory_space<vmem>>, %arg5: memref<1x128xf32, #tpu.memory_space<vmem>>, %arg6: memref<1x2x128xf32, #tpu.memory_space<vmem>>) attributes {dimension_semantics = [#tpu.dimension_semantics<parallel>], iteration_bounds = array<i64: 1>, scalar_prefetch = 0 : i64, scratch_operands = 0 : i64, tpu.core_type = #tpu.core_type<tc>, window_params = [{transform_indices = @transform_0, window_bounds = array<i64: 1, 2, 6272>}, {pipeline_mode = #tpu.pipeline_mode<synchronous>, transform_indices = @transform_1, window_bounds = array<i64: 6272, 128>}, {pipeline_mode = #tpu.pipeline_mode<synchronous>, transform_indices = @transform_2, window_bounds = array<i64: 1, 128>}, {pipeline_mode = #tpu.pipeline_mode<synchronous>, transform_indices = @transform_3, window_bounds = array<i64: 128, 128>}, {pipeline_mode = #tpu.pipeline_mode<synchronous>, transform_indices = @transform_4, window_bounds = array<i64: 1, 128>}, {transform_indices = @transform_5, window_bounds = array<i64: 1, 2, 128>}]} {
    %c0 = arith.constant 0 : index
    %c0_0 = arith.constant 0 : index
    %c0_1 = arith.constant 0 : index
    %0 = vector.load %arg1[%c0, %c0_0, %c0_1] : memref<1x2x6272xbf16, #tpu.memory_space<vmem>>, vector<1x2x6272xbf16>
    %1 = vector.shape_cast %0 : vector<1x2x6272xbf16> to vector<2x6272xbf16>
    %c0_2 = arith.constant 0 : index
    %c0_3 = arith.constant 0 : index
    %2 = vector.load %arg2[%c0_2, %c0_3] : memref<6272x128xbf16, #tpu.memory_space<vmem>>, vector<6272x128xbf16>
    %cst = arith.constant dense<0.000000e+00> : vector<2x128xf32>
    %3 = tpu.matmul %1, %2, %cst {dimension_numbers = #tpu.dot_dimension_numbers<[1], [0], [0], [1], [0, 0, 1, 1], [], []>} : vector<2x6272xbf16>, vector<6272x128xbf16>, vector<2x128xf32> -> vector<2x128xf32>
    %c0_4 = arith.constant 0 : index
    %c0_5 = arith.constant 0 : index
    %4 = vector.load %arg3[%c0_4, %c0_5] : memref<1x128xf32, #tpu.memory_space<vmem>>, vector<1x128xf32>
    %5 = vector.broadcast %4 : vector<1x128xf32> to vector<2x128xf32>
    %6 = arith.addf %3, %5 : vector<2x128xf32>
    %cst_6 = arith.constant 0.000000e+00 : f32
    %7 = vector.broadcast %cst_6 : f32 to vector<2x128xf32>
    %8 = arith.maximumf %6, %7 : vector<2x128xf32>
    %9 = arith.truncf %8 : vector<2x128xf32> to vector<2x128xbf16>
    %c0_7 = arith.constant 0 : index
    %c0_8 = arith.constant 0 : index
    %10 = vector.load %arg4[%c0_7, %c0_8] : memref<128x128xbf16, #tpu.memory_space<vmem>>, vector<128x128xbf16>
    %cst_9 = arith.constant dense<0.000000e+00> : vector<2x128xf32>
    %11 = tpu.matmul %9, %10, %cst_9 {dimension_numbers = #tpu.dot_dimension_numbers<[1], [0], [0], [1], [0, 0, 1, 1], [], []>} : vector<2x128xbf16>, vector<128x128xbf16>, vector<2x128xf32> -> vector<2x128xf32>
    %c0_10 = arith.constant 0 : index
    %c0_11 = arith.constant 0 : index
    %12 = vector.load %arg5[%c0_10, %c0_11] : memref<1x128xf32, #tpu.memory_space<vmem>>, vector<1x128xf32>
    %13 = vector.broadcast %12 : vector<1x128xf32> to vector<2x128xf32>
    %14 = arith.addf %11, %13 : vector<2x128xf32>
    %c0_12 = arith.constant 0 : index
    %c0_13 = arith.constant 0 : index
    %c0_14 = arith.constant 0 : index
    %15 = vector.load %arg6[%c0_12, %c0_13, %c0_14] : memref<1x2x128xf32, #tpu.memory_space<vmem>>, vector<1x2x128xf32>
    %16 = vector.shape_cast %15 : vector<1x2x128xf32> to vector<2x128xf32>
    %17 = vector.shape_cast %14 : vector<2x128xf32> to vector<1x2x128xf32>
    tpu.vector_store %arg6[%c0_12, %c0_13, %c0_14], %17 {strides = array<i32>} : memref<1x2x128xf32, #tpu.memory_space<vmem>>, vector<1x2x128xf32>,
    return
  }
  func.func @transform_0(%arg0: i32) -> (i32, i32, i32) {
    %c0_i32 = arith.constant 0 : i32
    %c0_i32_0 = arith.constant 0 : i32
    %c0_i32_1 = arith.constant 0 : i32
    return %arg0, %c0_i32, %c0_i32_0 : i32, i32, i32
  }
  func.func @transform_1(%arg0: i32) -> (i32, i32) {
    %c0_i32 = arith.constant 0 : i32
    %c0_i32_0 = arith.constant 0 : i32
    %c0_i32_1 = arith.constant 0 : i32
    return %c0_i32, %c0_i32_0 : i32, i32
  }
  func.func @transform_2(%arg0: i32) -> (i32, i32) {
    %c0_i32 = arith.constant 0 : i32
    %c0_i32_0 = arith.constant 0 : i32
    %c0_i32_1 = arith.constant 0 : i32
    return %c0_i32, %c0_i32_0 : i32, i32
  }
  func.func @transform_3(%arg0: i32) -> (i32, i32) {
    %c0_i32 = arith.constant 0 : i32
    %c0_i32_0 = arith.constant 0 : i32
    %c0_i32_1 = arith.constant 0 : i32
    return %c0_i32, %c0_i32_0 : i32, i32
  }
  func.func @transform_4(%arg0: i32) -> (i32, i32) {
    %c0_i32 = arith.constant 0 : i32
    %c0_i32_0 = arith.constant 0 : i32
    %c0_i32_1 = arith.constant 0 : i32
    return %c0_i32, %c0_i32_0 : i32, i32
  }
  func.func @transform_5(%arg0: i32) -> (i32, i32, i32) {
    %c0_i32 = arith.constant 0 : i32
    %c0_i32_0 = arith.constant 0 : i32
    %c0_i32_1 = arith.constant 0 : i32
    return %arg0, %c0_i32, %c0_i32_0 : i32, i32, i32
  }
}

</mosaic_0001>

<llo_original>
// kernel: simple_cnn_pallas.2
$region0: #{simple_cnn_pallas.2}
  #allocation0 [shape = 'u32[]', space=smem, size = 0x4, offset = 0x4, fixed_abs, tag = 'smem constant byte address 0x4 - core index']
  #allocation1 [shape = 'u32[144,128]{1,0:T(1,128)}', space=vmem, size = 0x12000, scoped, tag = 'internal scratch']
  %s0 = inlined_call_operand.vmem [shape: bf16[1,98,144], index: 0, kind: input, shape index: {}]
  %s1 = inlined_call_operand.vmem [shape: bf16[144,512], index: 1, kind: input, shape index: {}]
  %s2 = inlined_call_operand.vmem [shape: f32[1,128], index: 2, kind: input, shape index: {}]
  %s3 = inlined_call_operand.vmem [shape: bf16[1,98,128], index: 3, kind: output, shape index: {}]
  %s4 = sld [smem:[#allocation0]]
  $region22: #{simple_cnn_pallas.2} parent=0
    _
  %s6 = ssub.s32 1, %s4
  %s7 = scalar_select 0, %s6, %s4
  // Predicated region
  $region2: #{simple_cnn_pallas.2} parent=0 // pred_check
    _
  $region3: #{simple_cnn_pallas.2} parent=0 // pred_check_branch
    %9 = sbr.rel (0) target = $region5
  $region4: #{simple_cnn_pallas.2} parent=0 // pred_region
    _
  $region5: #{simple_cnn_pallas.2} parent=0 // pred_fallthru
    _
  // Predicated region
  $region6: #{simple_cnn_pallas.2} parent=0 // pred_check
    _
  $region7: #{simple_cnn_pallas.2} parent=0 // pred_check_branch
    %11 = sbr.rel (0) target = $region9
  $region8: #{simple_cnn_pallas.2} parent=0 // pred_region
    _
  $region9: #{simple_cnn_pallas.2} parent=0 // pred_fallthru
    _
  // Predicated region
  $region10: #{simple_cnn_pallas.2} parent=0 // pred_check
    _
  $region11: #{simple_cnn_pallas.2} parent=0 // pred_check_branch
    %13 = sbr.rel (0) target = $region13
  $region12: #{simple_cnn_pallas.2} parent=0 // pred_region
    _
  $region13: #{simple_cnn_pallas.2} parent=0 // pred_fallthru
    _
  %v15 = vld [vmem:[%s0] sm:$0xff]
  %v16 = vld [vmem:[%s0 + $0x8] sm:$0xff]
  %v17 = vld [vmem:[%s0 + $0x10] sm:$0xff]
  %v18 = vld [vmem:[%s0 + $0x18] sm:$0xff]
  %v19 = vld [vmem:[%s0 + $0x20] sm:$0xff]
  %v20 = vld [vmem:[%s0 + $0x28] sm:$0xff]
  %v21 = vld [vmem:[%s0 + $0x30] sm:$0xff]
  %v22 = vld [vmem:[%s0 + $0x38] sm:$0xff]
  %v23 = vld [vmem:[%s0 + $0x40] sm:$0xff]
  %v24 = vld [vmem:[%s0 + $0x48] sm:$0xff]
  %v25 = vld [vmem:[%s0 + $0x50] sm:$0xff]
  %v26 = vld [vmem:[%s0 + $0x58] sm:$0xff]
  %v27 = vld [vmem:[%s0 + $0x60] sm:$0x11]
  %v28 = vld [vmem:[%s1] sm:$0xff]
  %v29 = vld [vmem:[%s1 + $0x8] sm:$0xff]
  %v30 = vld [vmem:[%s1 + $0x10] sm:$0xff]
  %v31 = vld [vmem:[%s1 + $0x18] sm:$0xff]
  %v32 = vld [vmem:[%s1 + $0x20] sm:$0xff]
  %v33 = vld [vmem:[%s1 + $0x28] sm:$0xff]
  %v34 = vld [vmem:[%s1 + $0x30] sm:$0xff]
  %v35 = vld [vmem:[%s1 + $0x38] sm:$0xff]
  %v36 = vld [vmem:[%s1 + $0x40] sm:$0xff]
  %v37 = vld [vmem:[%s1 + $0x48] sm:$0xff]
  %v38 = vld [vmem:[%s1 + $0x50] sm:$0xff]
  %v39 = vld [vmem:[%s1 + $0x58] sm:$0xff]
  %v40 = vld [vmem:[%s1 + $0x60] sm:$0xff]
  %v41 = vld [vmem:[%s1 + $0x68] sm:$0xff]
  %v42 = vld [vmem:[%s1 + $0x70] sm:$0xff]
  %v43 = vld [vmem:[%s1 + $0x78] sm:$0xff]
  %v44 = vld [vmem:[%s1 + $0x80] sm:$0xff]
  %v45 = vld [vmem:[%s1 + $0x88] sm:$0xff]
  %v46 = vld [vmem:[%s1 + $0x90] sm:$0xff]
  %v47 = vld [vmem:[%s1 + $0x98] sm:$0xff]
  %v48 = vld [vmem:[%s1 + $0xa0] sm:$0xff]
  %v49 = vld [vmem:[%s1 + $0xa8] sm:$0xff]
  %v50 = vld [vmem:[%s1 + $0xb0] sm:$0xff]
  %v51 = vld [vmem:[%s1 + $0xb8] sm:$0xff]
  %v52 = vld [vmem:[%s1 + $0xc0] sm:$0xff]
  %v53 = vld [vmem:[%s1 + $0xc8] sm:$0xff]
  %v54 = vld [vmem:[%s1 + $0xd0] sm:$0xff]
  %v55 = vld [vmem:[%s1 + $0xd8] sm:$0xff]
  %v56 = vld [vmem:[%s1 + $0xe0] sm:$0xff]
  %v57 = vld [vmem:[%s1 + $0xe8] sm:$0xff]
  %v58 = vld [vmem:[%s1 + $0xf0] sm:$0xff]
  %v59 = vld [vmem:[%s1 + $0xf8] sm:$0xff]
  %v60 = vld [vmem:[%s1 + $0x100] sm:$0xff]
  %v61 = vld [vmem:[%s1 + $0x108] sm:$0xff]
  %v62 = vld [vmem:[%s1 + $0x110] sm:$0xff]
  %v63 = vld [vmem:[%s1 + $0x118] sm:$0xff]
  %v77 = vunpack.c.l.b16 %v15
  %v78 = vunpack.c.h.b16 %v15
  %v79 = vunpack.c.l.b16 %v16
  %v80 = vunpack.c.h.b16 %v16
  %v81 = vunpack.c.l.b16 %v17
  %v82 = vunpack.c.h.b16 %v17
  %v83 = vunpack.c.l.b16 %v18
  %v84 = vunpack.c.h.b16 %v18
  %v85 = vunpack.c.l.b16 %v19
  %v86 = vunpack.c.h.b16 %v19
  %v87 = vunpack.c.l.b16 %v20
  %v88 = vunpack.c.h.b16 %v20
  %v89 = vunpack.c.l.b16 %v21
  %v90 = vunpack.c.h.b16 %v21
  %v91 = vunpack.c.l.b16 %v22
  %v92 = vunpack.c.h.b16 %v22
  %v93 = vunpack.c.l.b16 %v23
  %v94 = vunpack.c.h.b16 %v23
  %v95 = vunpack.c.l.b16 %v24
  %v96 = vunpack.c.h.b16 %v24
  %v97 = vunpack.c.l.b16 %v25
  %v98 = vunpack.c.h.b16 %v25
  %v99 = vunpack.c.l.b16 %v26
  %v100 = vunpack.c.h.b16 %v26
  %v101 = vunpack.c.l.b16 %v27
  %v102 = vunpack.c.h.b16 %v27
  %v103 = vpack.c.b16 %v79, %v77
  %v104 = vpack.c.b16 %v80, %v78
  %v105 = vpack.c.b16 %v83, %v81
  %v106 = vpack.c.b16 %v84, %v82
  %v107 = vpack.c.b16 %v87, %v85
  %v108 = vpack.c.b16 %v88, %v86
  %v109 = vpack.c.b16 %v91, %v89
  %v110 = vpack.c.b16 %v92, %v90
  %v111 = vpack.c.b16 %v95, %v93
  %v112 = vpack.c.b16 %v96, %v94
  %v113 = vpack.c.b16 %v99, %v97
  %v114 = vpack.c.b16 %v100, %v98
  %v115 = vpack.c.b16 %v101, %v101
  %v116 = vpack.c.b16 %v102, %v102
  %v160 = vunpack.c.l.b16 %v28
  %v161 = vunpack.c.h.b16 %v28
  %v162 = vunpack.c.l.b16 %v29
  %v163 = vunpack.c.h.b16 %v29
  %v164 = vunpack.c.l.b16 %v30
  %v165 = vunpack.c.h.b16 %v30
  %v166 = vunpack.c.l.b16 %v31
  %v167 = vunpack.c.h.b16 %v31
  %v168 = vunpack.c.l.b16 %v32
  %v169 = vunpack.c.h.b16 %v32
  %v170 = vunpack.c.l.b16 %v33
  %v171 = vunpack.c.h.b16 %v33
  %v172 = vunpack.c.l.b16 %v34
  %v173 = vunpack.c.h.b16 %v34
  %v174 = vunpack.c.l.b16 %v35
  %v175 = vunpack.c.h.b16 %v35
  %v176 = vunpack.c.l.b16 %v36
  %v177 = vunpack.c.h.b16 %v36
  %v178 = vunpack.c.l.b16 %v37
  %v179 = vunpack.c.h.b16 %v37
  %v180 = vunpack.c.l.b16 %v38
  %v181 = vunpack.c.h.b16 %v38
  %v182 = vunpack.c.l.b16 %v39
  %v183 = vunpack.c.h.b16 %v39
  %v184 = vunpack.c.l.b16 %v40
  %v185 = vunpack.c.h.b16 %v40
  %v186 = vunpack.c.l.b16 %v41
  %v187 = vunpack.c.h.b16 %v41
  %v188 = vunpack.c.l.b16 %v42
  %v189 = vunpack.c.h.b16 %v42
  %v190 = vunpack.c.l.b16 %v43
  %v191 = vunpack.c.h.b16 %v43
  %v192 = vunpack.c.l.b16 %v44
  %v193 = vunpack.c.h.b16 %v44
  %v194 = vunpack.c.l.b16 %v45
  %v195 = vunpack.c.h.b16 %v45
  %v196 = vunpack.c.l.b16 %v46
  %v197 = vunpack.c.h.b16 %v46
  %v198 = vunpack.c.l.b16 %v47
  %v199 = vunpack.c.h.b16 %v47
  %v200 = vunpack.c.l.b16 %v48
  %v201 = vunpack.c.h.b16 %v48
  %v202 = vunpack.c.l.b16 %v49
  %v203 = vunpack.c.h.b16 %v49
  %v204 = vunpack.c.l.b16 %v50
  %v205 = vunpack.c.h.b16 %v50
  %v206 = vunpack.c.l.b16 %v51
  %v207 = vunpack.c.h.b16 %v51
  %v208 = vunpack.c.l.b16 %v52
  %v209 = vunpack.c.h.b16 %v52
  %v210 = vunpack.c.l.b16 %v53
  %v211 = vunpack.c.h.b16 %v53
  %v212 = vunpack.c.l.b16 %v54
  %v213 = vunpack.c.h.b16 %v54
  %v214 = vunpack.c.l.b16 %v55
  %v215 = vunpack.c.h.b16 %v55
  %v216 = vunpack.c.l.b16 %v56
  %v217 = vunpack.c.h.b16 %v56
  %v218 = vunpack.c.l.b16 %v57
  %v219 = vunpack.c.h.b16 %v57
  %v220 = vunpack.c.l.b16 %v58
  %v221 = vunpack.c.h.b16 %v58
  %v222 = vunpack.c.l.b16 %v59
  %v223 = vunpack.c.h.b16 %v59
  %v224 = vunpack.c.l.b16 %v60
  %v225 = vunpack.c.h.b16 %v60
  %v226 = vunpack.c.l.b16 %v61
  %v227 = vunpack.c.h.b16 %v61
  %v228 = vunpack.c.l.b16 %v62
  %v229 = vunpack.c.h.b16 %v62
  %v230 = vunpack.c.l.b16 %v63
  %v231 = vunpack.c.h.b16 %v63
  %v232 = vpack.c.b16 %v164, %v160
  %v233 = vpack.c.b16 %v165, %v161
  %v234 = vpack.c.b16 %v166, %v162
  %v235 = vpack.c.b16 %v167, %v163
  %v236 = vpack.c.b16 %v172, %v168
  %v237 = vpack.c.b16 %v173, %v169
  %v238 = vpack.c.b16 %v174, %v170
  %v239 = vpack.c.b16 %v175, %v171
  %v240 = vpack.c.b16 %v180, %v176
  %v241 = vpack.c.b16 %v181, %v177
  %v242 = vpack.c.b16 %v182, %v178
  %v243 = vpack.c.b16 %v183, %v179
  %v244 = vpack.c.b16 %v188, %v184
  %v245 = vpack.c.b16 %v189, %v185
  %v246 = vpack.c.b16 %v190, %v186
  %v247 = vpack.c.b16 %v191, %v187
  %v248 = vpack.c.b16 %v196, %v192
  %v249 = vpack.c.b16 %v197, %v193
  %v250 = vpack.c.b16 %v198, %v194
  %v251 = vpack.c.b16 %v199, %v195
  %v252 = vpack.c.b16 %v204, %v200
  %v253 = vpack.c.b16 %v205, %v201
  %v254 = vpack.c.b16 %v206, %v202
  %v255 = vpack.c.b16 %v207, %v203
  %v256 = vpack.c.b16 %v212, %v208
  %v257 = vpack.c.b16 %v213, %v209
  %v258 = vpack.c.b16 %v214, %v210
  %v259 = vpack.c.b16 %v215, %v211
  %v260 = vpack.c.b16 %v220, %v216
  %v261 = vpack.c.b16 %v221, %v217
  %v262 = vpack.c.b16 %v222, %v218
  %v263 = vpack.c.b16 %v223, %v219
  %v264 = vpack.c.b16 %v228, %v224
  %v265 = vpack.c.b16 %v229, %v225
  %v266 = vpack.c.b16 %v230, %v226
  %v267 = vpack.c.b16 %v231, %v227
  %vm304 = vcmask 130048
  %v306 = vsel %vm304, %v104, 0
  %v309 = vsel %vm304, %v106, 0
  %v312 = vsel %vm304, %v108, 0
  %v315 = vsel %vm304, %v110, 0
  %v318 = vsel %vm304, %v112, 0
  %v321 = vsel %vm304, %v114, 0
  %v324 = vsel %vm304, %v116, 0
  %326 = vmatprep.subr.bf16.mxu0 %v261
  %327 = vmatpush1.bf16.msra.mxu0 %v260
  %328 = vmatprep.subr.bf16.mxu0 %v257
  %329 = vmatpush1.bf16.msra.mxu0 %v256
  %330 = vmatprep.subr.bf16.mxu0 %v253
  %331 = vmatpush1.bf16.msra.mxu0 %v252
  %332 = vmatprep.subr.bf16.mxu0 %v249
  %333 = vmatpush1.bf16.msra.mxu0 %v248
  %334 = vmatprep.subr.bf16.mxu0 %v245
  %335 = vmatpush1.bf16.msra.mxu0 %v244
  %336 = vmatprep.subr.bf16.mxu0 %v241
  %337 = vmatpush1.bf16.msra.mxu0 %v240
  %338 = vmatprep.subr.bf16.mxu0 %v237
  %339 = vmatpush1.bf16.msra.mxu0 %v236
  %340 = vmatprep.subr.bf16.mxu0 %v233
  %341 = vmatpush1.bf16.msra.mxu0 %v232
  %342 = vmatprep.subr.bf16.mxu0 0
  %343 = vmatpush2.bf16.msra.mxu0 0
  %344 = vmatprep.subr.bf16.mxu0 0
  %345 = vmatpush2.bf16.msra.mxu0 0
  %346 = vmatprep.subr.bf16.mxu0 0
  %347 = vmatpush2.bf16.msra.mxu0 0
  %348 = vmatprep.subr.bf16.mxu0 0
  %349 = vmatpush2.bf16.msra.mxu0 0
  %350 = vmatprep.subr.bf16.mxu0 0
  %351 = vmatpush2.bf16.msra.mxu0 0
  %352 = vmatprep.subr.bf16.mxu0 0
  %353 = vmatpush2.bf16.msra.mxu0 0
  %354 = vmatprep.subr.bf16.mxu0 0
  %355 = vmatpush2.bf16.msra.mxu0 0
  %356 = vmatprep.subr.bf16.mxu0 %v265
  %357 = vmatpush2.bf16.msra.mxu0 %v264
  %358 = vmatprep.mubr.bf16.mxu0 %v306
  %359 = vmatmul.mubr.bf16.gmra.mxu0 %v103
  %v360 = vpop.f32.mrf.mxu0
  %v361 = vadd.f32 0.0, %v360
  %v362 = vpop.f32.mrf.mxu0
  %v363 = vadd.f32 0.0, %v362
  %v364 = vpop.f32.mrf.mxu0
  %v365 = vadd.f32 0.0, %v364
  %v366 = vpop.f32.mrf.mxu0
  %v367 = vadd.f32 0.0, %v366
  %368 = vmatprep.mubr.bf16.mxu0 %v309
  %369 = vmatmul.mubr.bf16.gmra.mxu0 %v105
  %v370 = vpop.f32.mrf.mxu0
  %v371 = vadd.f32 0.0, %v370
  %v372 = vpop.f32.mrf.mxu0
  %v373 = vadd.f32 0.0, %v372
  %v374 = vpop.f32.mrf.mxu0
  %v375 = vadd.f32 0.0, %v374
  %v376 = vpop.f32.mrf.mxu0
  %v377 = vadd.f32 0.0, %v376
  %378 = vmatprep.mubr.bf16.mxu0 %v312
  %379 = vmatmul.mubr.bf16.gmra.mxu0 %v107
  %v380 = vpop.f32.mrf.mxu0
  %v381 = vadd.f32 0.0, %v380
  %v382 = vpop.f32.mrf.mxu0
  %v383 = vadd.f32 0.0, %v382
  %v384 = vpop.f32.mrf.mxu0
  %v385 = vadd.f32 0.0, %v384
  %v386 = vpop.f32.mrf.mxu0
  %v387 = vadd.f32 0.0, %v386
  %388 = vmatprep.mubr.bf16.mxu0 %v315
  %389 = vmatmul.mubr.bf16.gmra.mxu0 %v109
  %v390 = vpop.f32.mrf.mxu0
  %v391 = vadd.f32 0.0, %v390
  %v392 = vpop.f32.mrf.mxu0
  %v393 = vadd.f32 0.0, %v392
  %v394 = vpop.f32.mrf.mxu0
  %v395 = vadd.f32 0.0, %v394
  %v396 = vpop.f32.mrf.mxu0
  %v397 = vadd.f32 0.0, %v396
  %398 = vmatprep.mubr.bf16.mxu0 %v318
  %399 = vmatmul.mubr.bf16.gmra.mxu0 %v111
  %v400 = vpop.f32.mrf.mxu0
  %v401 = vadd.f32 0.0, %v400
  %v402 = vpop.f32.mrf.mxu0
  %v403 = vadd.f32 0.0, %v402
  %v404 = vpop.f32.mrf.mxu0
  %v405 = vadd.f32 0.0, %v404
  %v406 = vpop.f32.mrf.mxu0
  %v407 = vadd.f32 0.0, %v406
  %408 = vmatprep.mubr.bf16.mxu0 %v321
  %409 = vmatmul.mubr.bf16.gmra.mxu0 %v113
  %v410 = vpop.f32.mrf.mxu0
  %v411 = vadd.f32 0.0, %v410
  %v412 = vpop.f32.mrf.mxu0
  %v413 = vadd.f32 0.0, %v412
  %v414 = vpop.f32.mrf.mxu0
  %v415 = vadd.f32 0.0, %v414
  %v416 = vpop.f32.mrf.mxu0
  %v417 = vadd.f32 0.0, %v416
  %418 = vmatprep.mubr.bf16.mxu0 %v324
  %419 = vmatmul.mubr.bf16.gmra.mxu0 %v115
  %v420 = vpop.f32.mrf.mxu0
  %v421 = vadd.f32 0.0, %v420
  %v422 = vpop.f32.mrf.mxu0
  %v423 = vadd.f32 0.0, %v422
  %v424 = vpop.f32.mrf.mxu0
  %v425 = vpop.f32.mrf.mxu0
  %426 = vdwg.mxu0
  %427 = vmatprep.subr.bf16.mxu0 %v263
  %428 = vmatpush1.bf16.msra.mxu0 %v262
  %429 = vmatprep.subr.bf16.mxu0 %v259
  %430 = vmatpush1.bf16.msra.mxu0 %v258
  %431 = vmatprep.subr.bf16.mxu0 %v255
  %432 = vmatpush1.bf16.msra.mxu0 %v254
  %433 = vmatprep.subr.bf16.mxu0 %v251
  %434 = vmatpush1.bf16.msra.mxu0 %v250
  %435 = vmatprep.subr.bf16.mxu0 %v247
  %436 = vmatpush1.bf16.msra.mxu0 %v246
  %437 = vmatprep.subr.bf16.mxu0 %v243
  %438 = vmatpush1.bf16.msra.mxu0 %v242
  %439 = vmatprep.subr.bf16.mxu0 %v239
  %440 = vmatpush1.bf16.msra.mxu0 %v238
  %441 = vmatprep.subr.bf16.mxu0 %v235
  %442 = vmatpush1.bf16.msra.mxu0 %v234
  %443 = vmatprep.subr.bf16.mxu0 0
  %444 = vmatpush2.bf16.msra.mxu0 0
  %445 = vmatprep.subr.bf16.mxu0 0
  %446 = vmatpush2.bf16.msra.mxu0 0
  %447 = vmatprep.subr.bf16.mxu0 0
  %448 = vmatpush2.bf16.msra.mxu0 0
  %449 = vmatprep.subr.bf16.mxu0 0
  %450 = vmatpush2.bf16.msra.mxu0 0
  %451 = vmatprep.subr.bf16.mxu0 0
  %452 = vmatpush2.bf16.msra.mxu0 0
  %453 = vmatprep.subr.bf16.mxu0 0
  %454 = vmatpush2.bf16.msra.mxu0 0
  %455 = vmatprep.subr.bf16.mxu0 0
  %456 = vmatpush2.bf16.msra.mxu0 0
  %457 = vmatprep.subr.bf16.mxu0 %v267
  %458 = vmatpush2.bf16.msra.mxu0 %v266
  %459 = vmatprep.mubr.bf16.mxu0 %v306
  %460 = vmatmul.mubr.bf16.gmra.mxu0 %v103
  %v461 = vpop.f32.mrf.mxu0
  %v462 = vadd.f32 0.0, %v461
  %v463 = vpop.f32.mrf.mxu0
  %v464 = vadd.f32 0.0, %v463
  %v465 = vpop.f32.mrf.mxu0
  %v466 = vadd.f32 0.0, %v465
  %v467 = vpop.f32.mrf.mxu0
  %v468 = vadd.f32 0.0, %v467
  %469 = vmatprep.mubr.bf16.mxu0 %v309
  %470 = vmatmul.mubr.bf16.gmra.mxu0 %v105
  %v471 = vpop.f32.mrf.mxu0
  %v472 = vadd.f32 0.0, %v471
  %v473 = vpop.f32.mrf.mxu0
  %v474 = vadd.f32 0.0, %v473
  %v475 = vpop.f32.mrf.mxu0
  %v476 = vadd.f32 0.0, %v475
  %v477 = vpop.f32.mrf.mxu0
  %v478 = vadd.f32 0.0, %v477
  %479 = vmatprep.mubr.bf16.mxu0 %v312
  %480 = vmatmul.mubr.bf16.gmra.mxu0 %v107
  %v481 = vpop.f32.mrf.mxu0
  %v482 = vadd.f32 0.0, %v481
  %v483 = vpop.f32.mrf.mxu0
  %v484 = vadd.f32 0.0, %v483
  %v485 = vpop.f32.mrf.mxu0
  %v486 = vadd.f32 0.0, %v485
  %v487 = vpop.f32.mrf.mxu0
  %v488 = vadd.f32 0.0, %v487
  %489 = vmatprep.mubr.bf16.mxu0 %v315
  %490 = vmatmul.mubr.bf16.gmra.mxu0 %v109
  %v491 = vpop.f32.mrf.mxu0
  %v492 = vadd.f32 0.0, %v491
  %v493 = vpop.f32.mrf.mxu0
  %v494 = vadd.f32 0.0, %v493
  %v495 = vpop.f32.mrf.mxu0
  %v496 = vadd.f32 0.0, %v495
  %v497 = vpop.f32.mrf.mxu0
  %v498 = vadd.f32 0.0, %v497
  %499 = vmatprep.mubr.bf16.mxu0 %v318
  %500 = vmatmul.mubr.bf16.gmra.mxu0 %v111
  %v501 = vpop.f32.mrf.mxu0
  %v502 = vadd.f32 0.0, %v501
  %v503 = vpop.f32.mrf.mxu0
  %v504 = vadd.f32 0.0, %v503
  %v505 = vpop.f32.mrf.mxu0
  %v506 = vadd.f32 0.0, %v505
  %v507 = vpop.f32.mrf.mxu0
  %v508 = vadd.f32 0.0, %v507
  %509 = vmatprep.mubr.bf16.mxu0 %v321
  %510 = vmatmul.mubr.bf16.gmra.mxu0 %v113
  %v511 = vpop.f32.mrf.mxu0
  %v512 = vadd.f32 0.0, %v511
  %v513 = vpop.f32.mrf.mxu0
  %v514 = vadd.f32 0.0, %v513
  %v515 = vpop.f32.mrf.mxu0
  %v516 = vadd.f32 0.0, %v515
  %v517 = vpop.f32.mrf.mxu0
  %v518 = vadd.f32 0.0, %v517
  %519 = vmatprep.mubr.bf16.mxu0 %v324
  %520 = vmatmul.mubr.bf16.gmra.mxu0 %v115
  %v521 = vpop.f32.mrf.mxu0
  %v522 = vadd.f32 0.0, %v521
  %v523 = vpop.f32.mrf.mxu0
  %v524 = vadd.f32 0.0, %v523
  %v525 = vpop.f32.mrf.mxu0
  %v526 = vpop.f32.mrf.mxu0
  %527 = vdwg.mxu0
  %v528 = vmax.f32 %v361, %v363
  %v529 = vmax.f32 %v365, %v367
  %v530 = vmax.f32 %v371, %v373
  %v531 = vmax.f32 %v375, %v377
  %v532 = vmax.f32 %v381, %v383
  %v533 = vmax.f32 %v385, %v387
  %v534 = vmax.f32 %v391, %v393
  %v535 = vmax.f32 %v395, %v397
  %v536 = vmax.f32 %v401, %v403
  %v537 = vmax.f32 %v405, %v407
  %v538 = vmax.f32 %v411, %v413
  %v539 = vmax.f32 %v415, %v417
  %v540 = vmax.f32 %v421, %v423
  %v541 = vmax.f32 %v462, %v464
  %v542 = vmax.f32 %v466, %v468
  %v543 = vmax.f32 %v472, %v474
  %v544 = vmax.f32 %v476, %v478
  %v545 = vmax.f32 %v482, %v484
  %v546 = vmax.f32 %v486, %v488
  %v547 = vmax.f32 %v492, %v494
  %v548 = vmax.f32 %v496, %v498
  %v549 = vmax.f32 %v502, %v504
  %v550 = vmax.f32 %v506, %v508
  %v551 = vmax.f32 %v512, %v514
  %v552 = vmax.f32 %v516, %v518
  %v553 = vmax.f32 %v522, %v524
  %v554 = vmax.f32 %v528, %v541
  %v555 = vmax.f32 %v529, %v542
  %v556 = vmax.f32 %v530, %v543
  %v557 = vmax.f32 %v531, %v544
  %v558 = vmax.f32 %v532, %v545
  %v559 = vmax.f32 %v533, %v546
  %v560 = vmax.f32 %v534, %v547
  %v561 = vmax.f32 %v535, %v548
  %v562 = vmax.f32 %v536, %v549
  %v563 = vmax.f32 %v537, %v550
  %v564 = vmax.f32 %v538, %v551
  %v565 = vmax.f32 %v539, %v552
  %v566 = vmax.f32 %v540, %v553
  %v567 = vld [vmem:[%s2] sm:$0x1]
  %v569 = vlaneseq
  %v570 = vshrl.u32 %v569, 7
  %v571 = vsub.s32 0, %v570
  %v572 = vrot.slane %v567, %v571
  %v574 = vadd.f32 %v554, %v572
  %v575 = vadd.f32 %v555, %v572
  %v576 = vadd.f32 %v556, %v572
  %v577 = vadd.f32 %v557, %v572
  %v578 = vadd.f32 %v558, %v572
  %v579 = vadd.f32 %v559, %v572
  %v580 = vadd.f32 %v560, %v572
  %v581 = vadd.f32 %v561, %v572
  %v582 = vadd.f32 %v562, %v572
  %v583 = vadd.f32 %v563, %v572
  %v584 = vadd.f32 %v564, %v572
  %v585 = vadd.f32 %v565, %v572
  %v586 = vadd.f32 %v566, %v572
  %v587 = vmax.f32 %v574, 0.0
  %v588 = vmax.f32 %v575, 0.0
  %v589 = vmax.f32 %v576, 0.0
  %v590 = vmax.f32 %v577, 0.0
  %v591 = vmax.f32 %v578, 0.0
  %v592 = vmax.f32 %v579, 0.0
  %v593 = vmax.f32 %v580, 0.0
  %v594 = vmax.f32 %v581, 0.0
  %v595 = vmax.f32 %v582, 0.0
  %v596 = vmax.f32 %v583, 0.0
  %v597 = vmax.f32 %v584, 0.0
  %v598 = vmax.f32 %v585, 0.0
  %v599 = vmax.f32 %v586, 0.0
  %v600 = vpack.c.bf16 %v588, %v587
  %v601 = vpack.c.bf16 %v590, %v589
  %v602 = vpack.c.bf16 %v592, %v591
  %v603 = vpack.c.bf16 %v594, %v593
  %v604 = vpack.c.bf16 %v596, %v595
  %v605 = vpack.c.bf16 %v598, %v597
  %v606 = vpack.c.bf16 %v599, %v599
  %v614 = vunpack.c.l.b16 %v600
  %v615 = vunpack.c.h.b16 %v600
  %v616 = vunpack.c.l.b16 %v601
  %v617 = vunpack.c.h.b16 %v601
  %v618 = vunpack.c.l.b16 %v602
  %v619 = vunpack.c.h.b16 %v602
  %v620 = vunpack.c.l.b16 %v603
  %v621 = vunpack.c.h.b16 %v603
  %v622 = vunpack.c.l.b16 %v604
  %v623 = vunpack.c.h.b16 %v604
  %v624 = vunpack.c.l.b16 %v605
  %v625 = vunpack.c.h.b16 %v605
  %v626 = vunpack.c.l.b16 %v606
  %v627 = vpack.c.b16 %v614, %v614
  %v628 = vpack.c.b16 %v615, %v615
  %v629 = vpack.c.b16 %v616, %v616
  %v630 = vpack.c.b16 %v617, %v617
  %v631 = vpack.c.b16 %v618, %v618
  %v632 = vpack.c.b16 %v619, %v619
  %v633 = vpack.c.b16 %v620, %v620
  %v634 = vpack.c.b16 %v621, %v621
  %v635 = vpack.c.b16 %v622, %v622
  %v636 = vpack.c.b16 %v623, %v623
  %v637 = vpack.c.b16 %v624, %v624
  %v638 = vpack.c.b16 %v625, %v625
  %v639 = vpack.c.b16 %v626, %v626
  %653 = vst [vmem:[%s3] sm:$0xf] %v627
  %654 = vst [vmem:[%s3 + $0x4] sm:$0xf] %v628
  %655 = vst [vmem:[%s3 + $0x8] sm:$0xf] %v629
  %656 = vst [vmem:[%s3 + $0xc] sm:$0xf] %v630
  %657 = vst [vmem:[%s3 + $0x10] sm:$0xf] %v631
  %658 = vst [vmem:[%s3 + $0x14] sm:$0xf] %v632
  %659 = vst [vmem:[%s3 + $0x18] sm:$0xf] %v633
  %660 = vst [vmem:[%s3 + $0x1c] sm:$0xf] %v634
  %661 = vst [vmem:[%s3 + $0x20] sm:$0xf] %v635
  %662 = vst [vmem:[%s3 + $0x24] sm:$0xf] %v636
  %663 = vst [vmem:[%s3 + $0x28] sm:$0xf] %v637
  %664 = vst [vmem:[%s3 + $0x2c] sm:$0xf] %v638
  %665 = vst [vmem:[%s3 + $0x30] sm:$0x1] %v639
  // Predicated region
  $region14: #{simple_cnn_pallas.2} parent=0 // pred_check
    _
  $region15: #{simple_cnn_pallas.2} parent=0 // pred_check_branch
    %667 = sbr.rel (0) target = $region17
  $region16: #{simple_cnn_pallas.2} parent=0 // pred_region
    _
  $region17: #{simple_cnn_pallas.2} parent=0 // pred_fallthru
    _
  // Predicated region
  $region18: #{simple_cnn_pallas.2} parent=0 // pred_check
    _
  $region19: #{simple_cnn_pallas.2} parent=0 // pred_check_branch
    %669 = sbr.rel (0) target = $region21
  $region20: #{simple_cnn_pallas.2} parent=0 // pred_region
    _
  $region21: #{simple_cnn_pallas.2} parent=0 // pred_fallthru
    _

// kernel: simple_cnn_pallas.3
$region0: #{simple_cnn_pallas.3}
  #allocation0 [shape = 'u32[]', space=smem, size = 0x4, offset = 0x4, fixed_abs, tag = 'smem constant byte address 0x4 - core index']
  #allocation1 [shape = 'u32[144,128]{1,0:T(1,128)}', space=vmem, size = 0x12000, scoped, tag = 'internal scratch']
  %s0 = inlined_call_operand.vmem [shape: bf16[1,2,6272], index: 0, kind: input, shape index: {}]
  %s1 = inlined_call_operand.vmem [shape: bf16[6272,128], index: 1, kind: input, shape index: {}]
  %s2 = inlined_call_operand.vmem [shape: f32[1,128], index: 2, kind: input, shape index: {}]
  %s3 = inlined_call_operand.vmem [shape: bf16[128,128], index: 3, kind: input, shape index: {}]
  %s4 = inlined_call_operand.vmem [shape: f32[1,128], index: 4, kind: input, shape index: {}]
  %s5 = inlined_call_operand.hbm [shape: f32[1,2,128], index: 5, kind: output, shape index: {}]
  %s6 = sld [smem:[#allocation0]]
  $region30: #{simple_cnn_pallas.3} parent=0
    _
  %s8 = ssub.s32 1, %s6
  %s9 = scalar_select 0, %s8, %s6
  $region1: #{simple_cnn_pallas.3} parent=0
    #allocation2 [shape = 'u8[1024]{0}', space=vmem, size = 0x400, scoped, tag = 'output window, operand 0, single buffered']
    #allocation3 [shape = 's32[1]{0}', space=sflag, size = 0x4, scoped, tag = 'scoped memory for simple_cnn_pallas.3']
    %10 = vsyncpa [#allocation3], 0
    // Predicated region
    $region2: #{simple_cnn_pallas.3} parent=1 // pred_check
      _
    $region3: #{simple_cnn_pallas.3} parent=1 // pred_check_branch
      %12 = sbr.rel (0) target = $region5
    $region4: #{simple_cnn_pallas.3} parent=1 // pred_region
      _
    $region5: #{simple_cnn_pallas.3} parent=1 // pred_fallthru
      _
    // Predicated region
    $region6: #{simple_cnn_pallas.3} parent=1 // pred_check
      _
    $region7: #{simple_cnn_pallas.3} parent=1 // pred_check_branch
      %14 = sbr.rel (0) target = $region9
    $region8: #{simple_cnn_pallas.3} parent=1 // pred_region
      _
    $region9: #{simple_cnn_pallas.3} parent=1 // pred_fallthru
      _
    // Predicated region
    $region10: #{simple_cnn_pallas.3} parent=1 // pred_check
      _
    $region11: #{simple_cnn_pallas.3} parent=1 // pred_check_branch
      %16 = sbr.rel (0) target = $region13
    $region12: #{simple_cnn_pallas.3} parent=1 // pred_region
      _
    $region13: #{simple_cnn_pallas.3} parent=1 // pred_fallthru
      _
    // Predicated region
    $region14: #{simple_cnn_pallas.3} parent=1 // pred_check
      _
    $region15: #{simple_cnn_pallas.3} parent=1 // pred_check_branch
      %18 = sbr.rel (0) target = $region17
    $region16: #{simple_cnn_pallas.3} parent=1 // pred_region
      _
    $region17: #{simple_cnn_pallas.3} parent=1 // pred_fallthru
      _
    // Predicated region
    $region18: #{simple_cnn_pallas.3} parent=1 // pred_check
      _
    $region19: #{simple_cnn_pallas.3} parent=1 // pred_check_branch
      %20 = sbr.rel (0) target = $region21
    $region20: #{simple_cnn_pallas.3} parent=1 // pred_region
      _
    $region21: #{simple_cnn_pallas.3} parent=1 // pred_fallthru
      _
    %v22 = vld [vmem:[%s0] sm:$0xff]
    %v23 = vld [vmem:[%s0 + $0x8] sm:$0xff]
    %v24 = vld [vmem:[%s0 + $0x10] sm:$0xff]
    %v25 = vld [vmem:[%s0 + $0x18] sm:$0xff]
    %v26 = vld [vmem:[%s0 + $0x20] sm:$0xff]
    %v27 = vld [vmem:[%s0 + $0x28] sm:$0xff]
    %v28 = vld [vmem:[%s0 + $0x30] sm:$0x1]
    %v29 = vld [vmem:[%s1] sm:$0xf]
    %v30 = vld [vmem:[%s1 + $0x4] sm:$0xf]
    %v31 = vld [vmem:[%s1 + $0x8] sm:$0xf]
    %v32 = vld [vmem:[%s1 + $0xc] sm:$0xf]
    %v33 = vld [vmem:[%s1 + $0x10] sm:$0xf]
    %v34 = vld [vmem:[%s1 + $0x14] sm:$0xf]
    %v35 = vld [vmem:[%s1 + $0x18] sm:$0xf]
    %v36 = vld [vmem:[%s1 + $0x1c] sm:$0xf]
    %v37 = vld [vmem:[%s1 + $0x20] sm:$0xf]
    %v38 = vld [vmem:[%s1 + $0x24] sm:$0xf]
    %v39 = vld [vmem:[%s1 + $0x28] sm:$0xf]
    %v40 = vld [vmem:[%s1 + $0x2c] sm:$0xf]
    %v41 = vld [vmem:[%s1 + $0x30] sm:$0xf]
    %v42 = vld [vmem:[%s1 + $0x34] sm:$0xf]
    %v43 = vld [vmem:[%s1 + $0x38] sm:$0xf]
    %v44 = vld [vmem:[%s1 + $0x3c] sm:$0xf]
    %v45 = vld [vmem:[%s1 + $0x40] sm:$0xf]
    %v46 = vld [vmem:[%s1 + $0x44] sm:$0xf]
    %v47 = vld [vmem:[%s1 + $0x48] sm:$0xf]
    %v48 = vld [vmem:[%s1 + $0x4c] sm:$0xf]
    %v49 = vld [vmem:[%s1 + $0x50] sm:$0xf]
    %v50 = vld [vmem:[%s1 + $0x54] sm:$0xf]
    %v51 = vld [vmem:[%s1 + $0x58] sm:$0xf]
    %v52 = vld [vmem:[%s1 + $0x5c] sm:$0xf]
    %v53 = vld [vmem:[%s1 + $0x60] sm:$0xf]
    %v54 = vld [vmem:[%s1 + $0x64] sm:$0xf]
    %v55 = vld [vmem:[%s1 + $0x68] sm:$0xf]
    %v56 = vld [vmem:[%s1 + $0x6c] sm:$0xf]
    %v57 = vld [vmem:[%s1 + $0x70] sm:$0xf]
    %v58 = vld [vmem:[%s1 + $0x74] sm:$0xf]
    %v59 = vld [vmem:[%s1 + $0x78] sm:$0xf]
    %v60 = vld [vmem:[%s1 + $0x7c] sm:$0xf]
    %v61 = vld [vmem:[%s1 + $0x80] sm:$0xf]
    %v62 = vld [vmem:[%s1 + $0x84] sm:$0xf]
    %v63 = vld [vmem:[%s1 + $0x88] sm:$0xf]
    %v64 = vld [vmem:[%s1 + $0x8c] sm:$0xf]
    %v65 = vld [vmem:[%s1 + $0x90] sm:$0xf]
    %v66 = vld [vmem:[%s1 + $0x94] sm:$0xf]
    %v67 = vld [vmem:[%s1 + $0x98] sm:$0xf]
    %v68 = vld [vmem:[%s1 + $0x9c] sm:$0xf]
    %v69 = vld [vmem:[%s1 + $0xa0] sm:$0xf]
    %v70 = vld [vmem:[%s1 + $0xa4] sm:$0xf]
    %v71 = vld [vmem:[%s1 + $0xa8] sm:$0xf]
    %v72 = vld [vmem:[%s1 + $0xac] sm:$0xf]
    %v73 = vld [vmem:[%s1 + $0xb0] sm:$0xf]
    %v74 = vld [vmem:[%s1 + $0xb4] sm:$0xf]
    %v75 = vld [vmem:[%s1 + $0xb8] sm:$0xf]
    %v76 = vld [vmem:[%s1 + $0xbc] sm:$0xf]
    %v77 = vld [vmem:[%s1 + $0xc0] sm:$0xf]
    %v78 = vld [vmem:[%s1 + $0xc4] sm:$0xf]
    %v79 = vld [vmem:[%s1 + $0xc8] sm:$0xf]
    %v80 = vld [vmem:[%s1 + $0xcc] sm:$0xf]
    %v81 = vld [vmem:[%s1 + $0xd0] sm:$0xf]
    %v82 = vld [vmem:[%s1 + $0xd4] sm:$0xf]
    %v83 = vld [vmem:[%s1 + $0xd8] sm:$0xf]
    %v84 = vld [vmem:[%s1 + $0xdc] sm:$0xf]
    %v85 = vld [vmem:[%s1 + $0xe0] sm:$0xf]
    %v86 = vld [vmem:[%s1 + $0xe4] sm:$0xf]
    %v87 = vld [vmem:[%s1 + $0xe8] sm:$0xf]
    %v88 = vld [vmem:[%s1 + $0xec] sm:$0xf]
    %v89 = vld [vmem:[%s1 + $0xf0] sm:$0xf]
    %v90 = vld [vmem:[%s1 + $0xf4] sm:$0xf]
    %v91 = vld [vmem:[%s1 + $0xf8] sm:$0xf]
    %v92 = vld [vmem:[%s1 + $0xfc] sm:$0xf]
    %v93 = vld [vmem:[%s1 + $0x100] sm:$0xf]
    %v94 = vld [vmem:[%s1 + $0x104] sm:$0xf]
    %v95 = vld [vmem:[%s1 + $0x108] sm:$0xf]
    %v96 = vld [vmem:[%s1 + $0x10c] sm:$0xf]
    %v97 = vld [vmem:[%s1 + $0x110] sm:$0xf]
    %v98 = vld [vmem:[%s1 + $0x114] sm:$0xf]
    %v99 = vld [vmem:[%s1 + $0x118] sm:$0xf]
    %v100 = vld [vmem:[%s1 + $0x11c] sm:$0xf]
    %v101 = vld [vmem:[%s1 + $0x120] sm:$0xf]
    %v102 = vld [vmem:[%s1 + $0x124] sm:$0xf]
    %v103 = vld [vmem:[%s1 + $0x128] sm:$0xf]
    %v104 = vld [vmem:[%s1 + $0x12c] sm:$0xf]
    %v105 = vld [vmem:[%s1 + $0x130] sm:$0xf]
    %v106 = vld [vmem:[%s1 + $0x134] sm:$0xf]
    %v107 = vld [vmem:[%s1 + $0x138] sm:$0xf]
    %v108 = vld [vmem:[%s1 + $0x13c] sm:$0xf]
    %v109 = vld [vmem:[%s1 + $0x140] sm:$0xf]
    %v110 = vld [vmem:[%s1 + $0x144] sm:$0xf]
    %v111 = vld [vmem:[%s1 + $0x148] sm:$0xf]
    %v112 = vld [vmem:[%s1 + $0x14c] sm:$0xf]
    %v113 = vld [vmem:[%s1 + $0x150] sm:$0xf]
    %v114 = vld [vmem:[%s1 + $0x154] sm:$0xf]
    %v115 = vld [vmem:[%s1 + $0x158] sm:$0xf]
    %v116 = vld [vmem:[%s1 + $0x15c] sm:$0xf]
    %v117 = vld [vmem:[%s1 + $0x160] sm:$0xf]
    %v118 = vld [vmem:[%s1 + $0x164] sm:$0xf]
    %v119 = vld [vmem:[%s1 + $0x168] sm:$0xf]
    %v120 = vld [vmem:[%s1 + $0x16c] sm:$0xf]
    %v121 = vld [vmem:[%s1 + $0x170] sm:$0xf]
    %v122 = vld [vmem:[%s1 + $0x174] sm:$0xf]
    %v123 = vld [vmem:[%s1 + $0x178] sm:$0xf]
    %v124 = vld [vmem:[%s1 + $0x17c] sm:$0xf]
    %v125 = vld [vmem:[%s1 + $0x180] sm:$0xf]
    %v126 = vld [vmem:[%s1 + $0x184] sm:$0xf]
    %v127 = vld [vmem:[%s1 + $0x188] sm:$0xf]
    %v128 = vld [vmem:[%s1 + $0x18c] sm:$0xf]
    %v129 = vld [vmem:[%s1 + $0x190] sm:$0xf]
    %v130 = vld [vmem:[%s1 + $0x194] sm:$0xf]
    %v131 = vld [vmem:[%s1 + $0x198] sm:$0xf]
    %v132 = vld [vmem:[%s1 + $0x19c] sm:$0xf]
    %v133 = vld [vmem:[%s1 + $0x1a0] sm:$0xf]
    %v134 = vld [vmem:[%s1 + $0x1a4] sm:$0xf]
    %v135 = vld [vmem:[%s1 + $0x1a8] sm:$0xf]
    %v136 = vld [vmem:[%s1 + $0x1ac] sm:$0xf]
    %v137 = vld [vmem:[%s1 + $0x1b0] sm:$0xf]
    %v138 = vld [vmem:[%s1 + $0x1b4] sm:$0xf]
    %v139 = vld [vmem:[%s1 + $0x1b8] sm:$0xf]
    %v140 = vld [vmem:[%s1 + $0x1bc] sm:$0xf]
    %v141 = vld [vmem:[%s1 + $0x1c0] sm:$0xf]
    %v142 = vld [vmem:[%s1 + $0x1c4] sm:$0xf]
    %v143 = vld [vmem:[%s1 + $0x1c8] sm:$0xf]
    %v144 = vld [vmem:[%s1 + $0x1cc] sm:$0xf]
    %v145 = vld [vmem:[%s1 + $0x1d0] sm:$0xf]
    %v146 = vld [vmem:[%s1 + $0x1d4] sm:$0xf]
    %v147 = vld [vmem:[%s1 + $0x1d8] sm:$0xf]
    %v148 = vld [vmem:[%s1 + $0x1dc] sm:$0xf]
    %v149 = vld [vmem:[%s1 + $0x1e0] sm:$0xf]
    %v150 = vld [vmem:[%s1 + $0x1e4] sm:$0xf]
    %v151 = vld [vmem:[%s1 + $0x1e8] sm:$0xf]
    %v152 = vld [vmem:[%s1 + $0x1ec] sm:$0xf]
    %v153 = vld [vmem:[%s1 + $0x1f0] sm:$0xf]
    %v154 = vld [vmem:[%s1 + $0x1f4] sm:$0xf]
    %v155 = vld [vmem:[%s1 + $0x1f8] sm:$0xf]
    %v156 = vld [vmem:[%s1 + $0x1fc] sm:$0xf]
    %v157 = vld [vmem:[%s1 + $0x200] sm:$0xf]
    %v158 = vld [vmem:[%s1 + $0x204] sm:$0xf]
    %v159 = vld [vmem:[%s1 + $0x208] sm:$0xf]
    %v160 = vld [vmem:[%s1 + $0x20c] sm:$0xf]
    %v161 = vld [vmem:[%s1 + $0x210] sm:$0xf]
    %v162 = vld [vmem:[%s1 + $0x214] sm:$0xf]
    %v163 = vld [vmem:[%s1 + $0x218] sm:$0xf]
    %v164 = vld [vmem:[%s1 + $0x21c] sm:$0xf]
    %v165 = vld [vmem:[%s1 + $0x220] sm:$0xf]
    %v166 = vld [vmem:[%s1 + $0x224] sm:$0xf]
    %v167 = vld [vmem:[%s1 + $0x228] sm:$0xf]
    %v168 = vld [vmem:[%s1 + $0x22c] sm:$0xf]
    %v169 = vld [vmem:[%s1 + $0x230] sm:$0xf]
    %v170 = vld [vmem:[%s1 + $0x234] sm:$0xf]
    %v171 = vld [vmem:[%s1 + $0x238] sm:$0xf]
    %v172 = vld [vmem:[%s1 + $0x23c] sm:$0xf]
    %v173 = vld [vmem:[%s1 + $0x240] sm:$0xf]
    %v174 = vld [vmem:[%s1 + $0x244] sm:$0xf]
    %v175 = vld [vmem:[%s1 + $0x248] sm:$0xf]
    %v176 = vld [vmem:[%s1 + $0x24c] sm:$0xf]
    %v177 = vld [vmem:[%s1 + $0x250] sm:$0xf]
    %v178 = vld [vmem:[%s1 + $0x254] sm:$0xf]
    %v179 = vld [vmem:[%s1 + $0x258] sm:$0xf]
    %v180 = vld [vmem:[%s1 + $0x25c] sm:$0xf]
    %v181 = vld [vmem:[%s1 + $0x260] sm:$0xf]
    %v182 = vld [vmem:[%s1 + $0x264] sm:$0xf]
    %v183 = vld [vmem:[%s1 + $0x268] sm:$0xf]
    %v184 = vld [vmem:[%s1 + $0x26c] sm:$0xf]
    %v185 = vld [vmem:[%s1 + $0x270] sm:$0xf]
    %v186 = vld [vmem:[%s1 + $0x274] sm:$0xf]
    %v187 = vld [vmem:[%s1 + $0x278] sm:$0xf]
    %v188 = vld [vmem:[%s1 + $0x27c] sm:$0xf]
    %v189 = vld [vmem:[%s1 + $0x280] sm:$0xf]
    %v190 = vld [vmem:[%s1 + $0x284] sm:$0xf]
    %v191 = vld [vmem:[%s1 + $0x288] sm:$0xf]
    %v192 = vld [vmem:[%s1 + $0x28c] sm:$0xf]
    %v193 = vld [vmem:[%s1 + $0x290] sm:$0xf]
    %v194 = vld [vmem:[%s1 + $0x294] sm:$0xf]
    %v195 = vld [vmem:[%s1 + $0x298] sm:$0xf]
    %v196 = vld [vmem:[%s1 + $0x29c] sm:$0xf]
    %v197 = vld [vmem:[%s1 + $0x2a0] sm:$0xf]
    %v198 = vld [vmem:[%s1 + $0x2a4] sm:$0xf]
    %v199 = vld [vmem:[%s1 + $0x2a8] sm:$0xf]
    %v200 = vld [vmem:[%s1 + $0x2ac] sm:$0xf]
    %v201 = vld [vmem:[%s1 + $0x2b0] sm:$0xf]
    %v202 = vld [vmem:[%s1 + $0x2b4] sm:$0xf]
    %v203 = vld [vmem:[%s1 + $0x2b8] sm:$0xf]
    %v204 = vld [vmem:[%s1 + $0x2bc] sm:$0xf]
    %v205 = vld [vmem:[%s1 + $0x2c0] sm:$0xf]
    %v206 = vld [vmem:[%s1 + $0x2c4] sm:$0xf]
    %v207 = vld [vmem:[%s1 + $0x2c8] sm:$0xf]
    %v208 = vld [vmem:[%s1 + $0x2cc] sm:$0xf]
    %v209 = vld [vmem:[%s1 + $0x2d0] sm:$0xf]
    %v210 = vld [vmem:[%s1 + $0x2d4] sm:$0xf]
    %v211 = vld [vmem:[%s1 + $0x2d8] sm:$0xf]
    %v212 = vld [vmem:[%s1 + $0x2dc] sm:$0xf]
    %v213 = vld [vmem:[%s1 + $0x2e0] sm:$0xf]
    %v214 = vld [vmem:[%s1 + $0x2e4] sm:$0xf]
    %v215 = vld [vmem:[%s1 + $0x2e8] sm:$0xf]
    %v216 = vld [vmem:[%s1 + $0x2ec] sm:$0xf]
    %v217 = vld [vmem:[%s1 + $0x2f0] sm:$0xf]
    %v218 = vld [vmem:[%s1 + $0x2f4] sm:$0xf]
    %v219 = vld [vmem:[%s1 + $0x2f8] sm:$0xf]
    %v220 = vld [vmem:[%s1 + $0x2fc] sm:$0xf]
    %v221 = vld [vmem:[%s1 + $0x300] sm:$0xf]
    %v222 = vld [vmem:[%s1 + $0x304] sm:$0xf]
    %v223 = vld [vmem:[%s1 + $0x308] sm:$0xf]
    %v224 = vld [vmem:[%s1 + $0x30c] sm:$0xf]
    %v225 = vld [vmem:[%s1 + $0x310] sm:$0xf]
    %v226 = vld [vmem:[%s1 + $0x314] sm:$0xf]
    %v227 = vld [vmem:[%s1 + $0x318] sm:$0xf]
    %v228 = vld [vmem:[%s1 + $0x31c] sm:$0xf]
    %v229 = vld [vmem:[%s1 + $0x320] sm:$0xf]
    %v230 = vld [vmem:[%s1 + $0x324] sm:$0xf]
    %v231 = vld [vmem:[%s1 + $0x328] sm:$0xf]
    %v232 = vld [vmem:[%s1 + $0x32c] sm:$0xf]
    %v233 = vld [vmem:[%s1 + $0x330] sm:$0xf]
    %v234 = vld [vmem:[%s1 + $0x334] sm:$0xf]
    %v235 = vld [vmem:[%s1 + $0x338] sm:$0xf]
    %v236 = vld [vmem:[%s1 + $0x33c] sm:$0xf]
    %v237 = vld [vmem:[%s1 + $0x340] sm:$0xf]
    %v238 = vld [vmem:[%s1 + $0x344] sm:$0xf]
    %v239 = vld [vmem:[%s1 + $0x348] sm:$0xf]
    %v240 = vld [vmem:[%s1 + $0x34c] sm:$0xf]
    %v241 = vld [vmem:[%s1 + $0x350] sm:$0xf]
    %v242 = vld [vmem:[%s1 + $0x354] sm:$0xf]
    %v243 = vld [vmem:[%s1 + $0x358] sm:$0xf]
    %v244 = vld [vmem:[%s1 + $0x35c] sm:$0xf]
    %v245 = vld [vmem:[%s1 + $0x360] sm:$0xf]
    %v246 = vld [vmem:[%s1 + $0x364] sm:$0xf]
    %v247 = vld [vmem:[%s1 + $0x368] sm:$0xf]
    %v248 = vld [vmem:[%s1 + $0x36c] sm:$0xf]
    %v249 = vld [vmem:[%s1 + $0x370] sm:$0xf]
    %v250 = vld [vmem:[%s1 + $0x374] sm:$0xf]
    %v251 = vld [vmem:[%s1 + $0x378] sm:$0xf]
    %v252 = vld [vmem:[%s1 + $0x37c] sm:$0xf]
    %v253 = vld [vmem:[%s1 + $0x380] sm:$0xf]
    %v254 = vld [vmem:[%s1 + $0x384] sm:$0xf]
    %v255 = vld [vmem:[%s1 + $0x388] sm:$0xf]
    %v256 = vld [vmem:[%s1 + $0x38c] sm:$0xf]
    %v257 = vld [vmem:[%s1 + $0x390] sm:$0xf]
    %v258 = vld [vmem:[%s1 + $0x394] sm:$0xf]
    %v259 = vld [vmem:[%s1 + $0x398] sm:$0xf]
    %v260 = vld [vmem:[%s1 + $0x39c] sm:$0xf]
    %v261 = vld [vmem:[%s1 + $0x3a0] sm:$0xf]
    %v262 = vld [vmem:[%s1 + $0x3a4] sm:$0xf]
    %v263 = vld [vmem:[%s1 + $0x3a8] sm:$0xf]
    %v264 = vld [vmem:[%s1 + $0x3ac] sm:$0xf]
    %v265 = vld [vmem:[%s1 + $0x3b0] sm:$0xf]
    %v266 = vld [vmem:[%s1 + $0x3b4] sm:$0xf]
    %v267 = vld [vmem:[%s1 + $0x3b8] sm:$0xf]
    %v268 = vld [vmem:[%s1 + $0x3bc] sm:$0xf]
    %v269 = vld [vmem:[%s1 + $0x3c0] sm:$0xf]
    %v270 = vld [vmem:[%s1 + $0x3c4] sm:$0xf]
    %v271 = vld [vmem:[%s1 + $0x3c8] sm:$0xf]
    %v272 = vld [vmem:[%s1 + $0x3cc] sm:$0xf]
    %v273 = vld [vmem:[%s1 + $0x3d0] sm:$0xf]
    %v274 = vld [vmem:[%s1 + $0x3d4] sm:$0xf]
    %v275 = vld [vmem:[%s1 + $0x3d8] sm:$0xf]
    %v276 = vld [vmem:[%s1 + $0x3dc] sm:$0xf]
    %v277 = vld [vmem:[%s1 + $0x3e0] sm:$0xf]
    %v278 = vld [vmem:[%s1 + $0x3e4] sm:$0xf]
    %v279 = vld [vmem:[%s1 + $0x3e8] sm:$0xf]
    %v280 = vld [vmem:[%s1 + $0x3ec] sm:$0xf]
    %v281 = vld [vmem:[%s1 + $0x3f0] sm:$0xf]
    %v282 = vld [vmem:[%s1 + $0x3f4] sm:$0xf]
    %v283 = vld [vmem:[%s1 + $0x3f8] sm:$0xf]
    %v284 = vld [vmem:[%s1 + $0x3fc] sm:$0xf]
    %v285 = vld [vmem:[%s1 + $0x400] sm:$0xf]
    %v286 = vld [vmem:[%s1 + $0x404] sm:$0xf]
    %v287 = vld [vmem:[%s1 + $0x408] sm:$0xf]
    %v288 = vld [vmem:[%s1 + $0x40c] sm:$0xf]
    %v289 = vld [vmem:[%s1 + $0x410] sm:$0xf]
    %v290 = vld [vmem:[%s1 + $0x414] sm:$0xf]
    %v291 = vld [vmem:[%s1 + $0x418] sm:$0xf]
    %v292 = vld [vmem:[%s1 + $0x41c] sm:$0xf]
    %v293 = vld [vmem:[%s1 + $0x420] sm:$0xf]
    %v294 = vld [vmem:[%s1 + $0x424] sm:$0xf]
    %v295 = vld [vmem:[%s1 + $0x428] sm:$0xf]
    %v296 = vld [vmem:[%s1 + $0x42c] sm:$0xf]
    %v297 = vld [vmem:[%s1 + $0x430] sm:$0xf]
    %v298 = vld [vmem:[%s1 + $0x434] sm:$0xf]
    %v299 = vld [vmem:[%s1 + $0x438] sm:$0xf]
    %v300 = vld [vmem:[%s1 + $0x43c] sm:$0xf]
    %v301 = vld [vmem:[%s1 + $0x440] sm:$0xf]
    %v302 = vld [vmem:[%s1 + $0x444] sm:$0xf]
    %v303 = vld [vmem:[%s1 + $0x448] sm:$0xf]
    %v304 = vld [vmem:[%s1 + $0x44c] sm:$0xf]
    %v305 = vld [vmem:[%s1 + $0x450] sm:$0xf]
    %v306 = vld [vmem:[%s1 + $0x454] sm:$0xf]
    %v307 = vld [vmem:[%s1 + $0x458] sm:$0xf]
    %v308 = vld [vmem:[%s1 + $0x45c] sm:$0xf]
    %v309 = vld [vmem:[%s1 + $0x460] sm:$0xf]
    %v310 = vld [vmem:[%s1 + $0x464] sm:$0xf]
    %v311 = vld [vmem:[%s1 + $0x468] sm:$0xf]
    %v312 = vld [vmem:[%s1 + $0x46c] sm:$0xf]
    %v313 = vld [vmem:[%s1 + $0x470] sm:$0xf]
    %v314 = vld [vmem:[%s1 + $0x474] sm:$0xf]
    %v315 = vld [vmem:[%s1 + $0x478] sm:$0xf]
    %v316 = vld [vmem:[%s1 + $0x47c] sm:$0xf]
    %v317 = vld [vmem:[%s1 + $0x480] sm:$0xf]
    %v318 = vld [vmem:[%s1 + $0x484] sm:$0xf]
    %v319 = vld [vmem:[%s1 + $0x488] sm:$0xf]
    %v320 = vld [vmem:[%s1 + $0x48c] sm:$0xf]
    %v321 = vld [vmem:[%s1 + $0x490] sm:$0xf]
    %v322 = vld [vmem:[%s1 + $0x494] sm:$0xf]
    %v323 = vld [vmem:[%s1 + $0x498] sm:$0xf]
    %v324 = vld [vmem:[%s1 + $0x49c] sm:$0xf]
    %v325 = vld [vmem:[%s1 + $0x4a0] sm:$0xf]
    %v326 = vld [vmem:[%s1 + $0x4a4] sm:$0xf]
    %v327 = vld [vmem:[%s1 + $0x4a8] sm:$0xf]
    %v328 = vld [vmem:[%s1 + $0x4ac] sm:$0xf]
    %v329 = vld [vmem:[%s1 + $0x4b0] sm:$0xf]
    %v330 = vld [vmem:[%s1 + $0x4b4] sm:$0xf]
    %v331 = vld [vmem:[%s1 + $0x4b8] sm:$0xf]
    %v332 = vld [vmem:[%s1 + $0x4bc] sm:$0xf]
    %v333 = vld [vmem:[%s1 + $0x4c0] sm:$0xf]
    %v334 = vld [vmem:[%s1 + $0x4c4] sm:$0xf]
    %v335 = vld [vmem:[%s1 + $0x4c8] sm:$0xf]
    %v336 = vld [vmem:[%s1 + $0x4cc] sm:$0xf]
    %v337 = vld [vmem:[%s1 + $0x4d0] sm:$0xf]
    %v338 = vld [vmem:[%s1 + $0x4d4] sm:$0xf]
    %v339 = vld [vmem:[%s1 + $0x4d8] sm:$0xf]
    %v340 = vld [vmem:[%s1 + $0x4dc] sm:$0xf]
    %v341 = vld [vmem:[%s1 + $0x4e0] sm:$0xf]
    %v342 = vld [vmem:[%s1 + $0x4e4] sm:$0xf]
    %v343 = vld [vmem:[%s1 + $0x4e8] sm:$0xf]
    %v344 = vld [vmem:[%s1 + $0x4ec] sm:$0xf]
    %v345 = vld [vmem:[%s1 + $0x4f0] sm:$0xf]
    %v346 = vld [vmem:[%s1 + $0x4f4] sm:$0xf]
    %v347 = vld [vmem:[%s1 + $0x4f8] sm:$0xf]
    %v348 = vld [vmem:[%s1 + $0x4fc] sm:$0xf]
    %v349 = vld [vmem:[%s1 + $0x500] sm:$0xf]
    %v350 = vld [vmem:[%s1 + $0x504] sm:$0xf]
    %v351 = vld [vmem:[%s1 + $0x508] sm:$0xf]
    %v352 = vld [vmem:[%s1 + $0x50c] sm:$0xf]
    %v353 = vld [vmem:[%s1 + $0x510] sm:$0xf]
    %v354 = vld [vmem:[%s1 + $0x514] sm:$0xf]
    %v355 = vld [vmem:[%s1 + $0x518] sm:$0xf]
    %v356 = vld [vmem:[%s1 + $0x51c] sm:$0xf]
    %v357 = vld [vmem:[%s1 + $0x520] sm:$0xf]
    %v358 = vld [vmem:[%s1 + $0x524] sm:$0xf]
    %v359 = vld [vmem:[%s1 + $0x528] sm:$0xf]
    %v360 = vld [vmem:[%s1 + $0x52c] sm:$0xf]
    %v361 = vld [vmem:[%s1 + $0x530] sm:$0xf]
    %v362 = vld [vmem:[%s1 + $0x534] sm:$0xf]
    %v363 = vld [vmem:[%s1 + $0x538] sm:$0xf]
    %v364 = vld [vmem:[%s1 + $0x53c] sm:$0xf]
    %v365 = vld [vmem:[%s1 + $0x540] sm:$0xf]
    %v366 = vld [vmem:[%s1 + $0x544] sm:$0xf]
    %v367 = vld [vmem:[%s1 + $0x548] sm:$0xf]
    %v368 = vld [vmem:[%s1 + $0x54c] sm:$0xf]
    %v369 = vld [vmem:[%s1 + $0x550] sm:$0xf]
    %v370 = vld [vmem:[%s1 + $0x554] sm:$0xf]
    %v371 = vld [vmem:[%s1 + $0x558] sm:$0xf]
    %v372 = vld [vmem:[%s1 + $0x55c] sm:$0xf]
    %v373 = vld [vmem:[%s1 + $0x560] sm:$0xf]
    %v374 = vld [vmem:[%s1 + $0x564] sm:$0xf]
    %v375 = vld [vmem:[%s1 + $0x568] sm:$0xf]
    %v376 = vld [vmem:[%s1 + $0x56c] sm:$0xf]
    %v377 = vld [vmem:[%s1 + $0x570] sm:$0xf]
    %v378 = vld [vmem:[%s1 + $0x574] sm:$0xf]
    %v379 = vld [vmem:[%s1 + $0x578] sm:$0xf]
    %v380 = vld [vmem:[%s1 + $0x57c] sm:$0xf]
    %v381 = vld [vmem:[%s1 + $0x580] sm:$0xf]
    %v382 = vld [vmem:[%s1 + $0x584] sm:$0xf]
    %v383 = vld [vmem:[%s1 + $0x588] sm:$0xf]
    %v384 = vld [vmem:[%s1 + $0x58c] sm:$0xf]
    %v385 = vld [vmem:[%s1 + $0x590] sm:$0xf]
    %v386 = vld [vmem:[%s1 + $0x594] sm:$0xf]
    %v387 = vld [vmem:[%s1 + $0x598] sm:$0xf]
    %v388 = vld [vmem:[%s1 + $0x59c] sm:$0xf]
    %v389 = vld [vmem:[%s1 + $0x5a0] sm:$0xf]
    %v390 = vld [vmem:[%s1 + $0x5a4] sm:$0xf]
    %v391 = vld [vmem:[%s1 + $0x5a8] sm:$0xf]
    %v392 = vld [vmem:[%s1 + $0x5ac] sm:$0xf]
    %v393 = vld [vmem:[%s1 + $0x5b0] sm:$0xf]
    %v394 = vld [vmem:[%s1 + $0x5b4] sm:$0xf]
    %v395 = vld [vmem:[%s1 + $0x5b8] sm:$0xf]
    %v396 = vld [vmem:[%s1 + $0x5bc] sm:$0xf]
    %v397 = vld [vmem:[%s1 + $0x5c0] sm:$0xf]
    %v398 = vld [vmem:[%s1 + $0x5c4] sm:$0xf]
    %v399 = vld [vmem:[%s1 + $0x5c8] sm:$0xf]
    %v400 = vld [vmem:[%s1 + $0x5cc] sm:$0xf]
    %v401 = vld [vmem:[%s1 + $0x5d0] sm:$0xf]
    %v402 = vld [vmem:[%s1 + $0x5d4] sm:$0xf]
    %v403 = vld [vmem:[%s1 + $0x5d8] sm:$0xf]
    %v404 = vld [vmem:[%s1 + $0x5dc] sm:$0xf]
    %v405 = vld [vmem:[%s1 + $0x5e0] sm:$0xf]
    %v406 = vld [vmem:[%s1 + $0x5e4] sm:$0xf]
    %v407 = vld [vmem:[%s1 + $0x5e8] sm:$0xf]
    %v408 = vld [vmem:[%s1 + $0x5ec] sm:$0xf]
    %v409 = vld [vmem:[%s1 + $0x5f0] sm:$0xf]
    %v410 = vld [vmem:[%s1 + $0x5f4] sm:$0xf]
    %v411 = vld [vmem:[%s1 + $0x5f8] sm:$0xf]
    %v412 = vld [vmem:[%s1 + $0x5fc] sm:$0xf]
    %v413 = vld [vmem:[%s1 + $0x600] sm:$0xf]
    %v414 = vld [vmem:[%s1 + $0x604] sm:$0xf]
    %v415 = vld [vmem:[%s1 + $0x608] sm:$0xf]
    %v416 = vld [vmem:[%s1 + $0x60c] sm:$0xf]
    %v417 = vld [vmem:[%s1 + $0x610] sm:$0xf]
    %v418 = vld [vmem:[%s1 + $0x614] sm:$0xf]
    %v419 = vld [vmem:[%s1 + $0x618] sm:$0xf]
    %v420 = vld [vmem:[%s1 + $0x61c] sm:$0xf]
    %v421 = vld [vmem:[%s1 + $0x620] sm:$0xf]
    %v422 = vld [vmem:[%s1 + $0x624] sm:$0xf]
    %v423 = vld [vmem:[%s1 + $0x628] sm:$0xf]
    %v424 = vld [vmem:[%s1 + $0x62c] sm:$0xf]
    %v425 = vld [vmem:[%s1 + $0x630] sm:$0xf]
    %v426 = vld [vmem:[%s1 + $0x634] sm:$0xf]
    %v427 = vld [vmem:[%s1 + $0x638] sm:$0xf]
    %v428 = vld [vmem:[%s1 + $0x63c] sm:$0xf]
    %v429 = vld [vmem:[%s1 + $0x640] sm:$0xf]
    %v430 = vld [vmem:[%s1 + $0x644] sm:$0xf]
    %v431 = vld [vmem:[%s1 + $0x648] sm:$0xf]
    %v432 = vld [vmem:[%s1 + $0x64c] sm:$0xf]
    %v433 = vld [vmem:[%s1 + $0x650] sm:$0xf]
    %v434 = vld [vmem:[%s1 + $0x654] sm:$0xf]
    %v435 = vld [vmem:[%s1 + $0x658] sm:$0xf]
    %v436 = vld [vmem:[%s1 + $0x65c] sm:$0xf]
    %v437 = vld [vmem:[%s1 + $0x660] sm:$0xf]
    %v438 = vld [vmem:[%s1 + $0x664] sm:$0xf]
    %v439 = vld [vmem:[%s1 + $0x668] sm:$0xf]
    %v440 = vld [vmem:[%s1 + $0x66c] sm:$0xf]
    %v441 = vld [vmem:[%s1 + $0x670] sm:$0xf]
    %v442 = vld [vmem:[%s1 + $0x674] sm:$0xf]
    %v443 = vld [vmem:[%s1 + $0x678] sm:$0xf]
    %v444 = vld [vmem:[%s1 + $0x67c] sm:$0xf]
    %v445 = vld [vmem:[%s1 + $0x680] sm:$0xf]
    %v446 = vld [vmem:[%s1 + $0x684] sm:$0xf]
    %v447 = vld [vmem:[%s1 + $0x688] sm:$0xf]
    %v448 = vld [vmem:[%s1 + $0x68c] sm:$0xf]
    %v449 = vld [vmem:[%s1 + $0x690] sm:$0xf]
    %v450 = vld [vmem:[%s1 + $0x694] sm:$0xf]
    %v451 = vld [vmem:[%s1 + $0x698] sm:$0xf]
    %v452 = vld [vmem:[%s1 + $0x69c] sm:$0xf]
    %v453 = vld [vmem:[%s1 + $0x6a0] sm:$0xf]
    %v454 = vld [vmem:[%s1 + $0x6a4] sm:$0xf]
    %v455 = vld [vmem:[%s1 + $0x6a8] sm:$0xf]
    %v456 = vld [vmem:[%s1 + $0x6ac] sm:$0xf]
    %v457 = vld [vmem:[%s1 + $0x6b0] sm:$0xf]
    %v458 = vld [vmem:[%s1 + $0x6b4] sm:$0xf]
    %v459 = vld [vmem:[%s1 + $0x6b8] sm:$0xf]
    %v460 = vld [vmem:[%s1 + $0x6bc] sm:$0xf]
    %v461 = vld [vmem:[%s1 + $0x6c0] sm:$0xf]
    %v462 = vld [vmem:[%s1 + $0x6c4] sm:$0xf]
    %v463 = vld [vmem:[%s1 + $0x6c8] sm:$0xf]
    %v464 = vld [vmem:[%s1 + $0x6cc] sm:$0xf]
    %v465 = vld [vmem:[%s1 + $0x6d0] sm:$0xf]
    %v466 = vld [vmem:[%s1 + $0x6d4] sm:$0xf]
    %v467 = vld [vmem:[%s1 + $0x6d8] sm:$0xf]
    %v468 = vld [vmem:[%s1 + $0x6dc] sm:$0xf]
    %v469 = vld [vmem:[%s1 + $0x6e0] sm:$0xf]
    %v470 = vld [vmem:[%s1 + $0x6e4] sm:$0xf]
    %v471 = vld [vmem:[%s1 + $0x6e8] sm:$0xf]
    %v472 = vld [vmem:[%s1 + $0x6ec] sm:$0xf]
    %v473 = vld [vmem:[%s1 + $0x6f0] sm:$0xf]
    %v474 = vld [vmem:[%s1 + $0x6f4] sm:$0xf]
    %v475 = vld [vmem:[%s1 + $0x6f8] sm:$0xf]
    %v476 = vld [vmem:[%s1 + $0x6fc] sm:$0xf]
    %v477 = vld [vmem:[%s1 + $0x700] sm:$0xf]
    %v478 = vld [vmem:[%s1 + $0x704] sm:$0xf]
    %v479 = vld [vmem:[%s1 + $0x708] sm:$0xf]
    %v480 = vld [vmem:[%s1 + $0x70c] sm:$0xf]
    %v481 = vld [vmem:[%s1 + $0x710] sm:$0xf]
    %v482 = vld [vmem:[%s1 + $0x714] sm:$0xf]
    %v483 = vld [vmem:[%s1 + $0x718] sm:$0xf]
    %v484 = vld [vmem:[%s1 + $0x71c] sm:$0xf]
    %v485 = vld [vmem:[%s1 + $0x720] sm:$0xf]
    %v486 = vld [vmem:[%s1 + $0x724] sm:$0xf]
    %v487 = vld [vmem:[%s1 + $0x728] sm:$0xf]
    %v488 = vld [vmem:[%s1 + $0x72c] sm:$0xf]
    %v489 = vld [vmem:[%s1 + $0x730] sm:$0xf]
    %v490 = vld [vmem:[%s1 + $0x734] sm:$0xf]
    %v491 = vld [vmem:[%s1 + $0x738] sm:$0xf]
    %v492 = vld [vmem:[%s1 + $0x73c] sm:$0xf]
    %v493 = vld [vmem:[%s1 + $0x740] sm:$0xf]
    %v494 = vld [vmem:[%s1 + $0x744] sm:$0xf]
    %v495 = vld [vmem:[%s1 + $0x748] sm:$0xf]
    %v496 = vld [vmem:[%s1 + $0x74c] sm:$0xf]
    %v497 = vld [vmem:[%s1 + $0x750] sm:$0xf]
    %v498 = vld [vmem:[%s1 + $0x754] sm:$0xf]
    %v499 = vld [vmem:[%s1 + $0x758] sm:$0xf]
    %v500 = vld [vmem:[%s1 + $0x75c] sm:$0xf]
    %v501 = vld [vmem:[%s1 + $0x760] sm:$0xf]
    %v502 = vld [vmem:[%s1 + $0x764] sm:$0xf]
    %v503 = vld [vmem:[%s1 + $0x768] sm:$0xf]
    %v504 = vld [vmem:[%s1 + $0x76c] sm:$0xf]
    %v505 = vld [vmem:[%s1 + $0x770] sm:$0xf]
    %v506 = vld [vmem:[%s1 + $0x774] sm:$0xf]
    %v507 = vld [vmem:[%s1 + $0x778] sm:$0xf]
    %v508 = vld [vmem:[%s1 + $0x77c] sm:$0xf]
    %v509 = vld [vmem:[%s1 + $0x780] sm:$0xf]
    %v510 = vld [vmem:[%s1 + $0x784] sm:$0xf]
    %v511 = vld [vmem:[%s1 + $0x788] sm:$0xf]
    %v512 = vld [vmem:[%s1 + $0x78c] sm:$0xf]
    %v513 = vld [vmem:[%s1 + $0x790] sm:$0xf]
    %v514 = vld [vmem:[%s1 + $0x794] sm:$0xf]
    %v515 = vld [vmem:[%s1 + $0x798] sm:$0xf]
    %v516 = vld [vmem:[%s1 + $0x79c] sm:$0xf]
    %v517 = vld [vmem:[%s1 + $0x7a0] sm:$0xf]
    %v518 = vld [vmem:[%s1 + $0x7a4] sm:$0xf]
    %v519 = vld [vmem:[%s1 + $0x7a8] sm:$0xf]
    %v520 = vld [vmem:[%s1 + $0x7ac] sm:$0xf]
    %v521 = vld [vmem:[%s1 + $0x7b0] sm:$0xf]
    %v522 = vld [vmem:[%s1 + $0x7b4] sm:$0xf]
    %v523 = vld [vmem:[%s1 + $0x7b8] sm:$0xf]
    %v524 = vld [vmem:[%s1 + $0x7bc] sm:$0xf]
    %v525 = vld [vmem:[%s1 + $0x7c0] sm:$0xf]
    %v526 = vld [vmem:[%s1 + $0x7c4] sm:$0xf]
    %v527 = vld [vmem:[%s1 + $0x7c8] sm:$0xf]
    %v528 = vld [vmem:[%s1 + $0x7cc] sm:$0xf]
    %v529 = vld [vmem:[%s1 + $0x7d0] sm:$0xf]
    %v530 = vld [vmem:[%s1 + $0x7d4] sm:$0xf]
    %v531 = vld [vmem:[%s1 + $0x7d8] sm:$0xf]
    %v532 = vld [vmem:[%s1 + $0x7dc] sm:$0xf]
    %v533 = vld [vmem:[%s1 + $0x7e0] sm:$0xf]
    %v534 = vld [vmem:[%s1 + $0x7e4] sm:$0xf]
    %v535 = vld [vmem:[%s1 + $0x7e8] sm:$0xf]
    %v536 = vld [vmem:[%s1 + $0x7ec] sm:$0xf]
    %v537 = vld [vmem:[%s1 + $0x7f0] sm:$0xf]
    %v538 = vld [vmem:[%s1 + $0x7f4] sm:$0xf]
    %v539 = vld [vmem:[%s1 + $0x7f8] sm:$0xf]
    %v540 = vld [vmem:[%s1 + $0x7fc] sm:$0xf]
    %v541 = vld [vmem:[%s1 + $0x800] sm:$0xf]
    %v542 = vld [vmem:[%s1 + $0x804] sm:$0xf]
    %v543 = vld [vmem:[%s1 + $0x808] sm:$0xf]
    %v544 = vld [vmem:[%s1 + $0x80c] sm:$0xf]
    %v545 = vld [vmem:[%s1 + $0x810] sm:$0xf]
    %v546 = vld [vmem:[%s1 + $0x814] sm:$0xf]
    %v547 = vld [vmem:[%s1 + $0x818] sm:$0xf]
    %v548 = vld [vmem:[%s1 + $0x81c] sm:$0xf]
    %v549 = vld [vmem:[%s1 + $0x820] sm:$0xf]
    %v550 = vld [vmem:[%s1 + $0x824] sm:$0xf]
    %v551 = vld [vmem:[%s1 + $0x828] sm:$0xf]
    %v552 = vld [vmem:[%s1 + $0x82c] sm:$0xf]
    %v553 = vld [vmem:[%s1 + $0x830] sm:$0xf]
    %v554 = vld [vmem:[%s1 + $0x834] sm:$0xf]
    %v555 = vld [vmem:[%s1 + $0x838] sm:$0xf]
    %v556 = vld [vmem:[%s1 + $0x83c] sm:$0xf]
    %v557 = vld [vmem:[%s1 + $0x840] sm:$0xf]
    %v558 = vld [vmem:[%s1 + $0x844] sm:$0xf]
    %v559 = vld [vmem:[%s1 + $0x848] sm:$0xf]
    %v560 = vld [vmem:[%s1 + $0x84c] sm:$0xf]
    %v561 = vld [vmem:[%s1 + $0x850] sm:$0xf]
    %v562 = vld [vmem:[%s1 + $0x854] sm:$0xf]
    %v563 = vld [vmem:[%s1 + $0x858] sm:$0xf]
    %v564 = vld [vmem:[%s1 + $0x85c] sm:$0xf]
    %v565 = vld [vmem:[%s1 + $0x860] sm:$0xf]
    %v566 = vld [vmem:[%s1 + $0x864] sm:$0xf]
    %v567 = vld [vmem:[%s1 + $0x868] sm:$0xf]
    %v568 = vld [vmem:[%s1 + $0x86c] sm:$0xf]
    %v569 = vld [vmem:[%s1 + $0x870] sm:$0xf]
    %v570 = vld [vmem:[%s1 + $0x874] sm:$0xf]
    %v571 = vld [vmem:[%s1 + $0x878] sm:$0xf]
    %v572 = vld [vmem:[%s1 + $0x87c] sm:$0xf]
    %v573 = vld [vmem:[%s1 + $0x880] sm:$0xf]
    %v574 = vld [vmem:[%s1 + $0x884] sm:$0xf]
    %v575 = vld [vmem:[%s1 + $0x888] sm:$0xf]
    %v576 = vld [vmem:[%s1 + $0x88c] sm:$0xf]
    %v577 = vld [vmem:[%s1 + $0x890] sm:$0xf]
    %v578 = vld [vmem:[%s1 + $0x894] sm:$0xf]
    %v579 = vld [vmem:[%s1 + $0x898] sm:$0xf]
    %v580 = vld [vmem:[%s1 + $0x89c] sm:$0xf]
    %v581 = vld [vmem:[%s1 + $0x8a0] sm:$0xf]
    %v582 = vld [vmem:[%s1 + $0x8a4] sm:$0xf]
    %v583 = vld [vmem:[%s1 + $0x8a8] sm:$0xf]
    %v584 = vld [vmem:[%s1 + $0x8ac] sm:$0xf]
    %v585 = vld [vmem:[%s1 + $0x8b0] sm:$0xf]
    %v586 = vld [vmem:[%s1 + $0x8b4] sm:$0xf]
    %v587 = vld [vmem:[%s1 + $0x8b8] sm:$0xf]
    %v588 = vld [vmem:[%s1 + $0x8bc] sm:$0xf]
    %v589 = vld [vmem:[%s1 + $0x8c0] sm:$0xf]
    %v590 = vld [vmem:[%s1 + $0x8c4] sm:$0xf]
    %v591 = vld [vmem:[%s1 + $0x8c8] sm:$0xf]
    %v592 = vld [vmem:[%s1 + $0x8cc] sm:$0xf]
    %v593 = vld [vmem:[%s1 + $0x8d0] sm:$0xf]
    %v594 = vld [vmem:[%s1 + $0x8d4] sm:$0xf]
    %v595 = vld [vmem:[%s1 + $0x8d8] sm:$0xf]
    %v596 = vld [vmem:[%s1 + $0x8dc] sm:$0xf]
    %v597 = vld [vmem:[%s1 + $0x8e0] sm:$0xf]
    %v598 = vld [vmem:[%s1 + $0x8e4] sm:$0xf]
    %v599 = vld [vmem:[%s1 + $0x8e8] sm:$0xf]
    %v600 = vld [vmem:[%s1 + $0x8ec] sm:$0xf]
    %v601 = vld [vmem:[%s1 + $0x8f0] sm:$0xf]
    %v602 = vld [vmem:[%s1 + $0x8f4] sm:$0xf]
    %v603 = vld [vmem:[%s1 + $0x8f8] sm:$0xf]
    %v604 = vld [vmem:[%s1 + $0x8fc] sm:$0xf]
    %v605 = vld [vmem:[%s1 + $0x900] sm:$0xf]
    %v606 = vld [vmem:[%s1 + $0x904] sm:$0xf]
    %v607 = vld [vmem:[%s1 + $0x908] sm:$0xf]
    %v608 = vld [vmem:[%s1 + $0x90c] sm:$0xf]
    %v609 = vld [vmem:[%s1 + $0x910] sm:$0xf]
    %v610 = vld [vmem:[%s1 + $0x914] sm:$0xf]
    %v611 = vld [vmem:[%s1 + $0x918] sm:$0xf]
    %v612 = vld [vmem:[%s1 + $0x91c] sm:$0xf]
    %v613 = vld [vmem:[%s1 + $0x920] sm:$0xf]
    %v614 = vld [vmem:[%s1 + $0x924] sm:$0xf]
    %v615 = vld [vmem:[%s1 + $0x928] sm:$0xf]
    %v616 = vld [vmem:[%s1 + $0x92c] sm:$0xf]
    %v617 = vld [vmem:[%s1 + $0x930] sm:$0xf]
    %v618 = vld [vmem:[%s1 + $0x934] sm:$0xf]
    %v619 = vld [vmem:[%s1 + $0x938] sm:$0xf]
    %v620 = vld [vmem:[%s1 + $0x93c] sm:$0xf]
    %v621 = vld [vmem:[%s1 + $0x940] sm:$0xf]
    %v622 = vld [vmem:[%s1 + $0x944] sm:$0xf]
    %v623 = vld [vmem:[%s1 + $0x948] sm:$0xf]
    %v624 = vld [vmem:[%s1 + $0x94c] sm:$0xf]
    %v625 = vld [vmem:[%s1 + $0x950] sm:$0xf]
    %v626 = vld [vmem:[%s1 + $0x954] sm:$0xf]
    %v627 = vld [vmem:[%s1 + $0x958] sm:$0xf]
    %v628 = vld [vmem:[%s1 + $0x95c] sm:$0xf]
    %v629 = vld [vmem:[%s1 + $0x960] sm:$0xf]
    %v630 = vld [vmem:[%s1 + $0x964] sm:$0xf]
    %v631 = vld [vmem:[%s1 + $0x968] sm:$0xf]
    %v632 = vld [vmem:[%s1 + $0x96c] sm:$0xf]
    %v633 = vld [vmem:[%s1 + $0x970] sm:$0xf]
    %v634 = vld [vmem:[%s1 + $0x974] sm:$0xf]
    %v635 = vld [vmem:[%s1 + $0x978] sm:$0xf]
    %v636 = vld [vmem:[%s1 + $0x97c] sm:$0xf]
    %v637 = vld [vmem:[%s1 + $0x980] sm:$0xf]
    %v638 = vld [vmem:[%s1 + $0x984] sm:$0xf]
    %v639 = vld [vmem:[%s1 + $0x988] sm:$0xf]
    %v640 = vld [vmem:[%s1 + $0x98c] sm:$0xf]
    %v641 = vld [vmem:[%s1 + $0x990] sm:$0xf]
    %v642 = vld [vmem:[%s1 + $0x994] sm:$0xf]
    %v643 = vld [vmem:[%s1 + $0x998] sm:$0xf]
    %v644 = vld [vmem:[%s1 + $0x99c] sm:$0xf]
    %v645 = vld [vmem:[%s1 + $0x9a0] sm:$0xf]
    %v646 = vld [vmem:[%s1 + $0x9a4] sm:$0xf]
    %v647 = vld [vmem:[%s1 + $0x9a8] sm:$0xf]
    %v648 = vld [vmem:[%s1 + $0x9ac] sm:$0xf]
    %v649 = vld [vmem:[%s1 + $0x9b0] sm:$0xf]
    %v650 = vld [vmem:[%s1 + $0x9b4] sm:$0xf]
    %v651 = vld [vmem:[%s1 + $0x9b8] sm:$0xf]
    %v652 = vld [vmem:[%s1 + $0x9bc] sm:$0xf]
    %v653 = vld [vmem:[%s1 + $0x9c0] sm:$0xf]
    %v654 = vld [vmem:[%s1 + $0x9c4] sm:$0xf]
    %v655 = vld [vmem:[%s1 + $0x9c8] sm:$0xf]
    %v656 = vld [vmem:[%s1 + $0x9cc] sm:$0xf]
    %v657 = vld [vmem:[%s1 + $0x9d0] sm:$0xf]
    %v658 = vld [vmem:[%s1 + $0x9d4] sm:$0xf]
    %v659 = vld [vmem:[%s1 + $0x9d8] sm:$0xf]
    %v660 = vld [vmem:[%s1 + $0x9dc] sm:$0xf]
    %v661 = vld [vmem:[%s1 + $0x9e0] sm:$0xf]
    %v662 = vld [vmem:[%s1 + $0x9e4] sm:$0xf]
    %v663 = vld [vmem:[%s1 + $0x9e8] sm:$0xf]
    %v664 = vld [vmem:[%s1 + $0x9ec] sm:$0xf]
    %v665 = vld [vmem:[%s1 + $0x9f0] sm:$0xf]
    %v666 = vld [vmem:[%s1 + $0x9f4] sm:$0xf]
    %v667 = vld [vmem:[%s1 + $0x9f8] sm:$0xf]
    %v668 = vld [vmem:[%s1 + $0x9fc] sm:$0xf]
    %v669 = vld [vmem:[%s1 + $0xa00] sm:$0xf]
    %v670 = vld [vmem:[%s1 + $0xa04] sm:$0xf]
    %v671 = vld [vmem:[%s1 + $0xa08] sm:$0xf]
    %v672 = vld [vmem:[%s1 + $0xa0c] sm:$0xf]
    %v673 = vld [vmem:[%s1 + $0xa10] sm:$0xf]
    %v674 = vld [vmem:[%s1 + $0xa14] sm:$0xf]
    %v675 = vld [vmem:[%s1 + $0xa18] sm:$0xf]
    %v676 = vld [vmem:[%s1 + $0xa1c] sm:$0xf]
    %v677 = vld [vmem:[%s1 + $0xa20] sm:$0xf]
    %v678 = vld [vmem:[%s1 + $0xa24] sm:$0xf]
    %v679 = vld [vmem:[%s1 + $0xa28] sm:$0xf]
    %v680 = vld [vmem:[%s1 + $0xa2c] sm:$0xf]
    %v681 = vld [vmem:[%s1 + $0xa30] sm:$0xf]
    %v682 = vld [vmem:[%s1 + $0xa34] sm:$0xf]
    %v683 = vld [vmem:[%s1 + $0xa38] sm:$0xf]
    %v684 = vld [vmem:[%s1 + $0xa3c] sm:$0xf]
    %v685 = vld [vmem:[%s1 + $0xa40] sm:$0xf]
    %v686 = vld [vmem:[%s1 + $0xa44] sm:$0xf]
    %v687 = vld [vmem:[%s1 + $0xa48] sm:$0xf]
    %v688 = vld [vmem:[%s1 + $0xa4c] sm:$0xf]
    %v689 = vld [vmem:[%s1 + $0xa50] sm:$0xf]
    %v690 = vld [vmem:[%s1 + $0xa54] sm:$0xf]
    %v691 = vld [vmem:[%s1 + $0xa58] sm:$0xf]
    %v692 = vld [vmem:[%s1 + $0xa5c] sm:$0xf]
    %v693 = vld [vmem:[%s1 + $0xa60] sm:$0xf]
    %v694 = vld [vmem:[%s1 + $0xa64] sm:$0xf]
    %v695 = vld [vmem:[%s1 + $0xa68] sm:$0xf]
    %v696 = vld [vmem:[%s1 + $0xa6c] sm:$0xf]
    %v697 = vld [vmem:[%s1 + $0xa70] sm:$0xf]
    %v698 = vld [vmem:[%s1 + $0xa74] sm:$0xf]
    %v699 = vld [vmem:[%s1 + $0xa78] sm:$0xf]
    %v700 = vld [vmem:[%s1 + $0xa7c] sm:$0xf]
    %v701 = vld [vmem:[%s1 + $0xa80] sm:$0xf]
    %v702 = vld [vmem:[%s1 + $0xa84] sm:$0xf]
    %v703 = vld [vmem:[%s1 + $0xa88] sm:$0xf]
    %v704 = vld [vmem:[%s1 + $0xa8c] sm:$0xf]
    %v705 = vld [vmem:[%s1 + $0xa90] sm:$0xf]
    %v706 = vld [vmem:[%s1 + $0xa94] sm:$0xf]
    %v707 = vld [vmem:[%s1 + $0xa98] sm:$0xf]
    %v708 = vld [vmem:[%s1 + $0xa9c] sm:$0xf]
    %v709 = vld [vmem:[%s1 + $0xaa0] sm:$0xf]
    %v710 = vld [vmem:[%s1 + $0xaa4] sm:$0xf]
    %v711 = vld [vmem:[%s1 + $0xaa8] sm:$0xf]
    %v712 = vld [vmem:[%s1 + $0xaac] sm:$0xf]
    %v713 = vld [vmem:[%s1 + $0xab0] sm:$0xf]
    %v714 = vld [vmem:[%s1 + $0xab4] sm:$0xf]
    %v715 = vld [vmem:[%s1 + $0xab8] sm:$0xf]
    %v716 = vld [vmem:[%s1 + $0xabc] sm:$0xf]
    %v717 = vld [vmem:[%s1 + $0xac0] sm:$0xf]
    %v718 = vld [vmem:[%s1 + $0xac4] sm:$0xf]
    %v719 = vld [vmem:[%s1 + $0xac8] sm:$0xf]
    %v720 = vld [vmem:[%s1 + $0xacc] sm:$0xf]
    %v721 = vld [vmem:[%s1 + $0xad0] sm:$0xf]
    %v722 = vld [vmem:[%s1 + $0xad4] sm:$0xf]
    %v723 = vld [vmem:[%s1 + $0xad8] sm:$0xf]
    %v724 = vld [vmem:[%s1 + $0xadc] sm:$0xf]
    %v725 = vld [vmem:[%s1 + $0xae0] sm:$0xf]
    %v726 = vld [vmem:[%s1 + $0xae4] sm:$0xf]
    %v727 = vld [vmem:[%s1 + $0xae8] sm:$0xf]
    %v728 = vld [vmem:[%s1 + $0xaec] sm:$0xf]
    %v729 = vld [vmem:[%s1 + $0xaf0] sm:$0xf]
    %v730 = vld [vmem:[%s1 + $0xaf4] sm:$0xf]
    %v731 = vld [vmem:[%s1 + $0xaf8] sm:$0xf]
    %v732 = vld [vmem:[%s1 + $0xafc] sm:$0xf]
    %v733 = vld [vmem:[%s1 + $0xb00] sm:$0xf]
    %v734 = vld [vmem:[%s1 + $0xb04] sm:$0xf]
    %v735 = vld [vmem:[%s1 + $0xb08] sm:$0xf]
    %v736 = vld [vmem:[%s1 + $0xb0c] sm:$0xf]
    %v737 = vld [vmem:[%s1 + $0xb10] sm:$0xf]
    %v738 = vld [vmem:[%s1 + $0xb14] sm:$0xf]
    %v739 = vld [vmem:[%s1 + $0xb18] sm:$0xf]
    %v740 = vld [vmem:[%s1 + $0xb1c] sm:$0xf]
    %v741 = vld [vmem:[%s1 + $0xb20] sm:$0xf]
    %v742 = vld [vmem:[%s1 + $0xb24] sm:$0xf]
    %v743 = vld [vmem:[%s1 + $0xb28] sm:$0xf]
    %v744 = vld [vmem:[%s1 + $0xb2c] sm:$0xf]
    %v745 = vld [vmem:[%s1 + $0xb30] sm:$0xf]
    %v746 = vld [vmem:[%s1 + $0xb34] sm:$0xf]
    %v747 = vld [vmem:[%s1 + $0xb38] sm:$0xf]
    %v748 = vld [vmem:[%s1 + $0xb3c] sm:$0xf]
    %v749 = vld [vmem:[%s1 + $0xb40] sm:$0xf]
    %v750 = vld [vmem:[%s1 + $0xb44] sm:$0xf]
    %v751 = vld [vmem:[%s1 + $0xb48] sm:$0xf]
    %v752 = vld [vmem:[%s1 + $0xb4c] sm:$0xf]
    %v753 = vld [vmem:[%s1 + $0xb50] sm:$0xf]
    %v754 = vld [vmem:[%s1 + $0xb54] sm:$0xf]
    %v755 = vld [vmem:[%s1 + $0xb58] sm:$0xf]
    %v756 = vld [vmem:[%s1 + $0xb5c] sm:$0xf]
    %v757 = vld [vmem:[%s1 + $0xb60] sm:$0xf]
    %v758 = vld [vmem:[%s1 + $0xb64] sm:$0xf]
    %v759 = vld [vmem:[%s1 + $0xb68] sm:$0xf]
    %v760 = vld [vmem:[%s1 + $0xb6c] sm:$0xf]
    %v761 = vld [vmem:[%s1 + $0xb70] sm:$0xf]
    %v762 = vld [vmem:[%s1 + $0xb74] sm:$0xf]
    %v763 = vld [vmem:[%s1 + $0xb78] sm:$0xf]
    %v764 = vld [vmem:[%s1 + $0xb7c] sm:$0xf]
    %v765 = vld [vmem:[%s1 + $0xb80] sm:$0xf]
    %v766 = vld [vmem:[%s1 + $0xb84] sm:$0xf]
    %v767 = vld [vmem:[%s1 + $0xb88] sm:$0xf]
    %v768 = vld [vmem:[%s1 + $0xb8c] sm:$0xf]
    %v769 = vld [vmem:[%s1 + $0xb90] sm:$0xf]
    %v770 = vld [vmem:[%s1 + $0xb94] sm:$0xf]
    %v771 = vld [vmem:[%s1 + $0xb98] sm:$0xf]
    %v772 = vld [vmem:[%s1 + $0xb9c] sm:$0xf]
    %v773 = vld [vmem:[%s1 + $0xba0] sm:$0xf]
    %v774 = vld [vmem:[%s1 + $0xba4] sm:$0xf]
    %v775 = vld [vmem:[%s1 + $0xba8] sm:$0xf]
    %v776 = vld [vmem:[%s1 + $0xbac] sm:$0xf]
    %v777 = vld [vmem:[%s1 + $0xbb0] sm:$0xf]
    %v778 = vld [vmem:[%s1 + $0xbb4] sm:$0xf]
    %v779 = vld [vmem:[%s1 + $0xbb8] sm:$0xf]
    %v780 = vld [vmem:[%s1 + $0xbbc] sm:$0xf]
    %v781 = vld [vmem:[%s1 + $0xbc0] sm:$0xf]
    %v782 = vld [vmem:[%s1 + $0xbc4] sm:$0xf]
    %v783 = vld [vmem:[%s1 + $0xbc8] sm:$0xf]
    %v784 = vld [vmem:[%s1 + $0xbcc] sm:$0xf]
    %v785 = vld [vmem:[%s1 + $0xbd0] sm:$0xf]
    %v786 = vld [vmem:[%s1 + $0xbd4] sm:$0xf]
    %v787 = vld [vmem:[%s1 + $0xbd8] sm:$0xf]
    %v788 = vld [vmem:[%s1 + $0xbdc] sm:$0xf]
    %v789 = vld [vmem:[%s1 + $0xbe0] sm:$0xf]
    %v790 = vld [vmem:[%s1 + $0xbe4] sm:$0xf]
    %v791 = vld [vmem:[%s1 + $0xbe8] sm:$0xf]
    %v792 = vld [vmem:[%s1 + $0xbec] sm:$0xf]
    %v793 = vld [vmem:[%s1 + $0xbf0] sm:$0xf]
    %v794 = vld [vmem:[%s1 + $0xbf4] sm:$0xf]
    %v795 = vld [vmem:[%s1 + $0xbf8] sm:$0xf]
    %v796 = vld [vmem:[%s1 + $0xbfc] sm:$0xf]
    %v797 = vld [vmem:[%s1 + $0xc00] sm:$0xf]
    %v798 = vld [vmem:[%s1 + $0xc04] sm:$0xf]
    %v799 = vld [vmem:[%s1 + $0xc08] sm:$0xf]
    %v800 = vld [vmem:[%s1 + $0xc0c] sm:$0xf]
    %v801 = vld [vmem:[%s1 + $0xc10] sm:$0xf]
    %v802 = vld [vmem:[%s1 + $0xc14] sm:$0xf]
    %v803 = vld [vmem:[%s1 + $0xc18] sm:$0xf]
    %v804 = vld [vmem:[%s1 + $0xc1c] sm:$0xf]
    %v805 = vld [vmem:[%s1 + $0xc20] sm:$0xf]
    %v806 = vld [vmem:[%s1 + $0xc24] sm:$0xf]
    %v807 = vld [vmem:[%s1 + $0xc28] sm:$0xf]
    %v808 = vld [vmem:[%s1 + $0xc2c] sm:$0xf]
    %v809 = vld [vmem:[%s1 + $0xc30] sm:$0xf]
    %v810 = vld [vmem:[%s1 + $0xc34] sm:$0xf]
    %v811 = vld [vmem:[%s1 + $0xc38] sm:$0xf]
    %v812 = vld [vmem:[%s1 + $0xc3c] sm:$0xf]
    %v813 = vld [vmem:[%s2] sm:$0x1]
    %v815 = vlaneseq
    %v816 = vshrl.u32 %v815, 7
    %v817 = vsub.s32 0, %v816
    %v818 = vrot.slane %v813, %v817
    %v827 = vcombine.high %v22, %v22
    %v829 = vunpack.c.l.s4 1966171168
    %v830 = vunpack.c.0.s8 %v829
    %v831 = vlaneseq
    %v832 = vshrl.u32 %v831, 7
    %v833 = vsub.s32 %v830, %v832
    %v834 = vrot.slane %v22, %v833
    %v836 = vunpack.c.l.s4 1966171168
    %v837 = vunpack.c.0.s8 %v836
    %v838 = vlaneseq
    %v839 = vshrl.u32 %v838, 7
    %v840 = vsub.s32 %v837, %v839
    %v841 = vrot.slane %v827, %v840
    %v842 = vcombine.high %v834, %v834
    %v843 = vcombine.high %v841, %v841
    %v845 = vunpack.c.l.s4 1966171168
    %v846 = vunpack.c.0.s8 %v845
    %v847 = vlaneseq
    %v848 = vshrl.u32 %v847, 7
    %v849 = vsub.s32 %v846, %v848
    %v850 = vrot.slane %v834, %v849
    %v852 = vunpack.c.l.s4 1966171168
    %v853 = vunpack.c.0.s8 %v852
    %v854 = vlaneseq
    %v855 = vshrl.u32 %v854, 7
    %v856 = vsub.s32 %v853, %v855
    %v857 = vrot.slane %v841, %v856
    %v859 = vunpack.c.l.s4 1966171168
    %v860 = vunpack.c.0.s8 %v859
    %v861 = vlaneseq
    %v862 = vshrl.u32 %v861, 7
    %v863 = vsub.s32 %v860, %v862
    %v864 = vrot.slane %v842, %v863
    %v866 = vunpack.c.l.s4 1966171168
    %v867 = vunpack.c.0.s8 %v866
    %v868 = vlaneseq
    %v869 = vshrl.u32 %v868, 7
    %v870 = vsub.s32 %v867, %v869
    %v871 = vrot.slane %v843, %v870
    %v872 = vcombine.high %v850, %v850
    %v873 = vcombine.high %v857, %v857
    %v874 = vcombine.high %v864, %v864
    %v875 = vcombine.high %v871, %v871
    %v876 = vcombine.high %v23, %v23
    %v878 = vunpack.c.l.s4 1966171168
    %v879 = vunpack.c.0.s8 %v878
    %v880 = vlaneseq
    %v881 = vshrl.u32 %v880, 7
    %v882 = vsub.s32 %v879, %v881
    %v883 = vrot.slane %v23, %v882
    %v885 = vunpack.c.l.s4 1966171168
    %v886 = vunpack.c.0.s8 %v885
    %v887 = vlaneseq
    %v888 = vshrl.u32 %v887, 7
    %v889 = vsub.s32 %v886, %v888
    %v890 = vrot.slane %v876, %v889
    %v891 = vcombine.high %v883, %v883
    %v892 = vcombine.high %v890, %v890
    %v894 = vunpack.c.l.s4 1966171168
    %v895 = vunpack.c.0.s8 %v894
    %v896 = vlaneseq
    %v897 = vshrl.u32 %v896, 7
    %v898 = vsub.s32 %v895, %v897
    %v899 = vrot.slane %v883, %v898
    %v901 = vunpack.c.l.s4 1966171168
    %v902 = vunpack.c.0.s8 %v901
    %v903 = vlaneseq
    %v904 = vshrl.u32 %v903, 7
    %v905 = vsub.s32 %v902, %v904
    %v906 = vrot.slane %v890, %v905
    %v908 = vunpack.c.l.s4 1966171168
    %v909 = vunpack.c.0.s8 %v908
    %v910 = vlaneseq
    %v911 = vshrl.u32 %v910, 7
    %v912 = vsub.s32 %v909, %v911
    %v913 = vrot.slane %v891, %v912
    %v915 = vunpack.c.l.s4 1966171168
    %v916 = vunpack.c.0.s8 %v915
    %v917 = vlaneseq
    %v918 = vshrl.u32 %v917, 7
    %v919 = vsub.s32 %v916, %v918
    %v920 = vrot.slane %v892, %v919
    %v921 = vcombine.high %v899, %v899
    %v922 = vcombine.high %v906, %v906
    %v923 = vcombine.high %v913, %v913
    %v924 = vcombine.high %v920, %v920
    %v925 = vcombine.high %v24, %v24
    %v927 = vunpack.c.l.s4 1966171168
    %v928 = vunpack.c.0.s8 %v927
    %v929 = vlaneseq
    %v930 = vshrl.u32 %v929, 7
    %v931 = vsub.s32 %v928, %v930
    %v932 = vrot.slane %v24, %v931
    %v934 = vunpack.c.l.s4 1966171168
    %v935 = vunpack.c.0.s8 %v934
    %v936 = vlaneseq
    %v937 = vshrl.u32 %v936, 7
    %v938 = vsub.s32 %v935, %v937
    %v939 = vrot.slane %v925, %v938
    %v940 = vcombine.high %v932, %v932
    %v941 = vcombine.high %v939, %v939
    %v943 = vunpack.c.l.s4 1966171168
    %v944 = vunpack.c.0.s8 %v943
    %v945 = vlaneseq
    %v946 = vshrl.u32 %v945, 7
    %v947 = vsub.s32 %v944, %v946
    %v948 = vrot.slane %v932, %v947
    %v950 = vunpack.c.l.s4 1966171168
    %v951 = vunpack.c.0.s8 %v950
    %v952 = vlaneseq
    %v953 = vshrl.u32 %v952, 7
    %v954 = vsub.s32 %v951, %v953
    %v955 = vrot.slane %v939, %v954
    %v957 = vunpack.c.l.s4 1966171168
    %v958 = vunpack.c.0.s8 %v957
    %v959 = vlaneseq
    %v960 = vshrl.u32 %v959, 7
    %v961 = vsub.s32 %v958, %v960
    %v962 = vrot.slane %v940, %v961
    %v964 = vunpack.c.l.s4 1966171168
    %v965 = vunpack.c.0.s8 %v964
    %v966 = vlaneseq
    %v967 = vshrl.u32 %v966, 7
    %v968 = vsub.s32 %v965, %v967
    %v969 = vrot.slane %v941, %v968
    %v970 = vcombine.high %v948, %v948
    %v971 = vcombine.high %v955, %v955
    %v972 = vcombine.high %v962, %v962
    %v973 = vcombine.high %v969, %v969
    %v974 = vcombine.high %v25, %v25
    %v976 = vunpack.c.l.s4 1966171168
    %v977 = vunpack.c.0.s8 %v976
    %v978 = vlaneseq
    %v979 = vshrl.u32 %v978, 7
    %v980 = vsub.s32 %v977, %v979
    %v981 = vrot.slane %v25, %v980
    %v983 = vunpack.c.l.s4 1966171168
    %v984 = vunpack.c.0.s8 %v983
    %v985 = vlaneseq
    %v986 = vshrl.u32 %v985, 7
    %v987 = vsub.s32 %v984, %v986
    %v988 = vrot.slane %v974, %v987
    %v989 = vcombine.high %v981, %v981
    %v990 = vcombine.high %v988, %v988
    %v992 = vunpack.c.l.s4 1966171168
    %v993 = vunpack.c.0.s8 %v992
    %v994 = vlaneseq
    %v995 = vshrl.u32 %v994, 7
    %v996 = vsub.s32 %v993, %v995
    %v997 = vrot.slane %v981, %v996
    %v999 = vunpack.c.l.s4 1966171168
    %v1000 = vunpack.c.0.s8 %v999
    %v1001 = vlaneseq
    %v1002 = vshrl.u32 %v1001, 7
    %v1003 = vsub.s32 %v1000, %v1002
    %v1004 = vrot.slane %v988, %v1003
    %v1006 = vunpack.c.l.s4 1966171168
    %v1007 = vunpack.c.0.s8 %v1006
    %v1008 = vlaneseq
    %v1009 = vshrl.u32 %v1008, 7
    %v1010 = vsub.s32 %v1007, %v1009
    %v1011 = vrot.slane %v989, %v1010
    %v1013 = vunpack.c.l.s4 1966171168
    %v1014 = vunpack.c.0.s8 %v1013
    %v1015 = vlaneseq
    %v1016 = vshrl.u32 %v1015, 7
    %v1017 = vsub.s32 %v1014, %v1016
    %v1018 = vrot.slane %v990, %v1017
    %v1019 = vcombine.high %v997, %v997
    %v1020 = vcombine.high %v1004, %v1004
    %v1021 = vcombine.high %v1011, %v1011
    %v1022 = vcombine.high %v1018, %v1018
    %v1023 = vcombine.high %v26, %v26
    %v1025 = vunpack.c.l.s4 1966171168
    %v1026 = vunpack.c.0.s8 %v1025
    %v1027 = vlaneseq
    %v1028 = vshrl.u32 %v1027, 7
    %v1029 = vsub.s32 %v1026, %v1028
    %v1030 = vrot.slane %v26, %v1029
    %v1032 = vunpack.c.l.s4 1966171168
    %v1033 = vunpack.c.0.s8 %v1032
    %v1034 = vlaneseq
    %v1035 = vshrl.u32 %v1034, 7
    %v1036 = vsub.s32 %v1033, %v1035
    %v1037 = vrot.slane %v1023, %v1036
    %v1038 = vcombine.high %v1030, %v1030
    %v1039 = vcombine.high %v1037, %v1037
    %v1041 = vunpack.c.l.s4 1966171168
    %v1042 = vunpack.c.0.s8 %v1041
    %v1043 = vlaneseq
    %v1044 = vshrl.u32 %v1043, 7
    %v1045 = vsub.s32 %v1042, %v1044
    %v1046 = vrot.slane %v1030, %v1045
    %v1048 = vunpack.c.l.s4 1966171168
    %v1049 = vunpack.c.0.s8 %v1048
    %v1050 = vlaneseq
    %v1051 = vshrl.u32 %v1050, 7
    %v1052 = vsub.s32 %v1049, %v1051
    %v1053 = vrot.slane %v1037, %v1052
    %v1055 = vunpack.c.l.s4 1966171168
    %v1056 = vunpack.c.0.s8 %v1055
    %v1057 = vlaneseq
    %v1058 = vshrl.u32 %v1057, 7
    %v1059 = vsub.s32 %v1056, %v1058
    %v1060 = vrot.slane %v1038, %v1059
    %v1062 = vunpack.c.l.s4 1966171168
    %v1063 = vunpack.c.0.s8 %v1062
    %v1064 = vlaneseq
    %v1065 = vshrl.u32 %v1064, 7
    %v1066 = vsub.s32 %v1063, %v1065
    %v1067 = vrot.slane %v1039, %v1066
    %v1068 = vcombine.high %v1046, %v1046
    %v1069 = vcombine.high %v1053, %v1053
    %v1070 = vcombine.high %v1060, %v1060
    %v1071 = vcombine.high %v1067, %v1067
    %v1072 = vcombine.high %v27, %v27
    %v1074 = vunpack.c.l.s4 1966171168
    %v1075 = vunpack.c.0.s8 %v1074
    %v1076 = vlaneseq
    %v1077 = vshrl.u32 %v1076, 7
    %v1078 = vsub.s32 %v1075, %v1077
    %v1079 = vrot.slane %v27, %v1078
    %v1081 = vunpack.c.l.s4 1966171168
    %v1082 = vunpack.c.0.s8 %v1081
    %v1083 = vlaneseq
    %v1084 = vshrl.u32 %v1083, 7
    %v1085 = vsub.s32 %v1082, %v1084
    %v1086 = vrot.slane %v1072, %v1085
    %v1087 = vcombine.high %v1079, %v1079
    %v1088 = vcombine.high %v1086, %v1086
    %v1090 = vunpack.c.l.s4 1966171168
    %v1091 = vunpack.c.0.s8 %v1090
    %v1092 = vlaneseq
    %v1093 = vshrl.u32 %v1092, 7
    %v1094 = vsub.s32 %v1091, %v1093
    %v1095 = vrot.slane %v1079, %v1094
    %v1097 = vunpack.c.l.s4 1966171168
    %v1098 = vunpack.c.0.s8 %v1097
    %v1099 = vlaneseq
    %v1100 = vshrl.u32 %v1099, 7
    %v1101 = vsub.s32 %v1098, %v1100
    %v1102 = vrot.slane %v1086, %v1101
    %v1104 = vunpack.c.l.s4 1966171168
    %v1105 = vunpack.c.0.s8 %v1104
    %v1106 = vlaneseq
    %v1107 = vshrl.u32 %v1106, 7
    %v1108 = vsub.s32 %v1105, %v1107
    %v1109 = vrot.slane %v1087, %v1108
    %v1111 = vunpack.c.l.s4 1966171168
    %v1112 = vunpack.c.0.s8 %v1111
    %v1113 = vlaneseq
    %v1114 = vshrl.u32 %v1113, 7
    %v1115 = vsub.s32 %v1112, %v1114
    %v1116 = vrot.slane %v1088, %v1115
    %v1117 = vcombine.high %v1095, %v1095
    %v1118 = vcombine.high %v1102, %v1102
    %v1119 = vcombine.high %v1109, %v1109
    %v1120 = vcombine.high %v1116, %v1116
    %v1122 = vunpack.c.l.s4 1966171168
    %v1123 = vunpack.c.0.s8 %v1122
    %v1124 = vlaneseq
    %v1125 = vshrl.u32 %v1124, 7
    %v1126 = vsub.s32 %v1123, %v1125
    %v1127 = vrot.slane %v28, %v1126
    %v1129 = vunpack.c.l.s4 1966171168
    %v1130 = vunpack.c.0.s8 %v1129
    %v1131 = vlaneseq
    %v1132 = vshrl.u32 %v1131, 7
    %v1133 = vsub.s32 %v1130, %v1132
    %v1134 = vrot.slane %v1127, %v1133
    %v1968 = vunpack.c.l.b16 %v29
    %v1969 = vunpack.c.l.b16 %v30
    %v1970 = vunpack.c.l.b16 %v31
    %v1971 = vunpack.c.l.b16 %v32
    %v1972 = vunpack.c.l.b16 %v33
    %v1973 = vunpack.c.l.b16 %v34
    %v1974 = vunpack.c.l.b16 %v35
    %v1975 = vunpack.c.l.b16 %v36
    %v1976 = vunpack.c.l.b16 %v37
    %v1977 = vunpack.c.l.b16 %v38
    %v1978 = vunpack.c.l.b16 %v39
    %v1979 = vunpack.c.l.b16 %v40
    %v1980 = vunpack.c.l.b16 %v41
    %v1981 = vunpack.c.l.b16 %v42
    %v1982 = vunpack.c.l.b16 %v43
    %v1983 = vunpack.c.l.b16 %v44
    %v1984 = vunpack.c.l.b16 %v45
    %v1985 = vunpack.c.l.b16 %v46
    %v1986 = vunpack.c.l.b16 %v47
    %v1987 = vunpack.c.l.b16 %v48
    %v1988 = vunpack.c.l.b16 %v49
    %v1989 = vunpack.c.l.b16 %v50
    %v1990 = vunpack.c.l.b16 %v51
    %v1991 = vunpack.c.l.b16 %v52
    %v1992 = vunpack.c.l.b16 %v53
    %v1993 = vunpack.c.l.b16 %v54
    %v1994 = vunpack.c.l.b16 %v55
    %v1995 = vunpack.c.l.b16 %v56
    %v1996 = vunpack.c.l.b16 %v57
    %v1997 = vunpack.c.l.b16 %v58
    %v1998 = vunpack.c.l.b16 %v59
    %v1999 = vunpack.c.l.b16 %v60
    %v2000 = vunpack.c.l.b16 %v61
    %v2001 = vunpack.c.l.b16 %v62
    %v2002 = vunpack.c.l.b16 %v63
    %v2003 = vunpack.c.l.b16 %v64
    %v2004 = vunpack.c.l.b16 %v65
    %v2005 = vunpack.c.l.b16 %v66
    %v2006 = vunpack.c.l.b16 %v67
    %v2007 = vunpack.c.l.b16 %v68
    %v2008 = vunpack.c.l.b16 %v69
    %v2009 = vunpack.c.l.b16 %v70
    %v2010 = vunpack.c.l.b16 %v71
    %v2011 = vunpack.c.l.b16 %v72
    %v2012 = vunpack.c.l.b16 %v73
    %v2013 = vunpack.c.l.b16 %v74
    %v2014 = vunpack.c.l.b16 %v75
    %v2015 = vunpack.c.l.b16 %v76
    %v2016 = vunpack.c.l.b16 %v77
    %v2017 = vunpack.c.l.b16 %v78
    %v2018 = vunpack.c.l.b16 %v79
    %v2019 = vunpack.c.l.b16 %v80
    %v2020 = vunpack.c.l.b16 %v81
    %v2021 = vunpack.c.l.b16 %v82
    %v2022 = vunpack.c.l.b16 %v83
    %v2023 = vunpack.c.l.b16 %v84
    %v2024 = vunpack.c.l.b16 %v85
    %v2025 = vunpack.c.l.b16 %v86
    %v2026 = vunpack.c.l.b16 %v87
    %v2027 = vunpack.c.l.b16 %v88
    %v2028 = vunpack.c.l.b16 %v89
    %v2029 = vunpack.c.l.b16 %v90
    %v2030 = vunpack.c.l.b16 %v91
    %v2031 = vunpack.c.l.b16 %v92
    %v2032 = vunpack.c.l.b16 %v93
    %v2033 = vunpack.c.l.b16 %v94
    %v2034 = vunpack.c.l.b16 %v95
    %v2035 = vunpack.c.l.b16 %v96
    %v2036 = vunpack.c.l.b16 %v97
    %v2037 = vunpack.c.l.b16 %v98
    %v2038 = vunpack.c.l.b16 %v99
    %v2039 = vunpack.c.l.b16 %v100
    %v2040 = vunpack.c.l.b16 %v101
    %v2041 = vunpack.c.l.b16 %v102
    %v2042 = vunpack.c.l.b16 %v103
    %v2043 = vunpack.c.l.b16 %v104
    %v2044 = vunpack.c.l.b16 %v105
    %v2045 = vunpack.c.l.b16 %v106
    %v2046 = vunpack.c.l.b16 %v107
    %v2047 = vunpack.c.l.b16 %v108
    %v2048 = vunpack.c.l.b16 %v109
    %v2049 = vunpack.c.l.b16 %v110
    %v2050 = vunpack.c.l.b16 %v111
    %v2051 = vunpack.c.l.b16 %v112
    %v2052 = vunpack.c.l.b16 %v113
    %v2053 = vunpack.c.l.b16 %v114
    %v2054 = vunpack.c.l.b16 %v115
    %v2055 = vunpack.c.l.b16 %v116
    %v2056 = vunpack.c.l.b16 %v117
    %v2057 = vunpack.c.l.b16 %v118
    %v2058 = vunpack.c.l.b16 %v119
    %v2059 = vunpack.c.l.b16 %v120
    %v2060 = vunpack.c.l.b16 %v121
    %v2061 = vunpack.c.l.b16 %v122
    %v2062 = vunpack.c.l.b16 %v123
    %v2063 = vunpack.c.l.b16 %v124
    %v2064 = vunpack.c.l.b16 %v125
    %v2065 = vunpack.c.l.b16 %v126
    %v2066 = vunpack.c.l.b16 %v127
    %v2067 = vunpack.c.l.b16 %v128
    %v2068 = vunpack.c.l.b16 %v129
    %v2069 = vunpack.c.l.b16 %v130
    %v2070 = vunpack.c.l.b16 %v131
    %v2071 = vunpack.c.l.b16 %v132
    %v2072 = vunpack.c.l.b16 %v133
    %v2073 = vunpack.c.l.b16 %v134
    %v2074 = vunpack.c.l.b16 %v135
    %v2075 = vunpack.c.l.b16 %v136
    %v2076 = vunpack.c.l.b16 %v137
    %v2077 = vunpack.c.l.b16 %v138
    %v2078 = vunpack.c.l.b16 %v139
    %v2079 = vunpack.c.l.b16 %v140
    %v2080 = vunpack.c.l.b16 %v141
    %v2081 = vunpack.c.l.b16 %v142
    %v2082 = vunpack.c.l.b16 %v143
    %v2083 = vunpack.c.l.b16 %v144
    %v2084 = vunpack.c.l.b16 %v145
    %v2085 = vunpack.c.l.b16 %v146
    %v2086 = vunpack.c.l.b16 %v147
    %v2087 = vunpack.c.l.b16 %v148
    %v2088 = vunpack.c.l.b16 %v149
    %v2089 = vunpack.c.l.b16 %v150
    %v2090 = vunpack.c.l.b16 %v151
    %v2091 = vunpack.c.l.b16 %v152
    %v2092 = vunpack.c.l.b16 %v153
    %v2093 = vunpack.c.l.b16 %v154
    %v2094 = vunpack.c.l.b16 %v155
    %v2095 = vunpack.c.l.b16 %v156
    %v2096 = vunpack.c.l.b16 %v157
    %v2097 = vunpack.c.l.b16 %v158
    %v2098 = vunpack.c.l.b16 %v159
    %v2099 = vunpack.c.l.b16 %v160
    %v2100 = vunpack.c.l.b16 %v161
    %v2101 = vunpack.c.l.b16 %v162
    %v2102 = vunpack.c.l.b16 %v163
    %v2103 = vunpack.c.l.b16 %v164
    %v2104 = vunpack.c.l.b16 %v165
    %v2105 = vunpack.c.l.b16 %v166
    %v2106 = vunpack.c.l.b16 %v167
    %v2107 = vunpack.c.l.b16 %v168
    %v2108 = vunpack.c.l.b16 %v169
    %v2109 = vunpack.c.l.b16 %v170
    %v2110 = vunpack.c.l.b16 %v171
    %v2111 = vunpack.c.l.b16 %v172
    %v2112 = vunpack.c.l.b16 %v173
    %v2113 = vunpack.c.l.b16 %v174
    %v2114 = vunpack.c.l.b16 %v175
    %v2115 = vunpack.c.l.b16 %v176
    %v2116 = vunpack.c.l.b16 %v177
    %v2117 = vunpack.c.l.b16 %v178
    %v2118 = vunpack.c.l.b16 %v179
    %v2119 = vunpack.c.l.b16 %v180
    %v2120 = vunpack.c.l.b16 %v181
    %v2121 = vunpack.c.l.b16 %v182
    %v2122 = vunpack.c.l.b16 %v183
    %v2123 = vunpack.c.l.b16 %v184
    %v2124 = vunpack.c.l.b16 %v185
    %v2125 = vunpack.c.l.b16 %v186
    %v2126 = vunpack.c.l.b16 %v187
    %v2127 = vunpack.c.l.b16 %v188
    %v2128 = vunpack.c.l.b16 %v189
    %v2129 = vunpack.c.l.b16 %v190
    %v2130 = vunpack.c.l.b16 %v191
    %v2131 = vunpack.c.l.b16 %v192
    %v2132 = vunpack.c.l.b16 %v193
    %v2133 = vunpack.c.l.b16 %v194
    %v2134 = vunpack.c.l.b16 %v195
    %v2135 = vunpack.c.l.b16 %v196
    %v2136 = vunpack.c.l.b16 %v197
    %v2137 = vunpack.c.l.b16 %v198
    %v2138 = vunpack.c.l.b16 %v199
    %v2139 = vunpack.c.l.b16 %v200
    %v2140 = vunpack.c.l.b16 %v201
    %v2141 = vunpack.c.l.b16 %v202
    %v2142 = vunpack.c.l.b16 %v203
    %v2143 = vunpack.c.l.b16 %v204
    %v2144 = vunpack.c.l.b16 %v205
    %v2145 = vunpack.c.l.b16 %v206
    %v2146 = vunpack.c.l.b16 %v207
    %v2147 = vunpack.c.l.b16 %v208
    %v2148 = vunpack.c.l.b16 %v209
    %v2149 = vunpack.c.l.b16 %v210
    %v2150 = vunpack.c.l.b16 %v211
    %v2151 = vunpack.c.l.b16 %v212
    %v2152 = vunpack.c.l.b16 %v213
    %v2153 = vunpack.c.l.b16 %v214
    %v2154 = vunpack.c.l.b16 %v215
    %v2155 = vunpack.c.l.b16 %v216
    %v2156 = vunpack.c.l.b16 %v217
    %v2157 = vunpack.c.l.b16 %v218
    %v2158 = vunpack.c.l.b16 %v219
    %v2159 = vunpack.c.l.b16 %v220
    %v2160 = vunpack.c.l.b16 %v221
    %v2161 = vunpack.c.l.b16 %v222
    %v2162 = vunpack.c.l.b16 %v223
    %v2163 = vunpack.c.l.b16 %v224
    %v2164 = vunpack.c.l.b16 %v225
    %v2165 = vunpack.c.l.b16 %v226
    %v2166 = vunpack.c.l.b16 %v227
    %v2167 = vunpack.c.l.b16 %v228
    %v2168 = vunpack.c.l.b16 %v229
    %v2169 = vunpack.c.l.b16 %v230
    %v2170 = vunpack.c.l.b16 %v231
    %v2171 = vunpack.c.l.b16 %v232
    %v2172 = vunpack.c.l.b16 %v233
    %v2173 = vunpack.c.l.b16 %v234
    %v2174 = vunpack.c.l.b16 %v235
    %v2175 = vunpack.c.l.b16 %v236
    %v2176 = vunpack.c.l.b16 %v237
    %v2177 = vunpack.c.l.b16 %v238
    %v2178 = vunpack.c.l.b16 %v239
    %v2179 = vunpack.c.l.b16 %v240
    %v2180 = vunpack.c.l.b16 %v241
    %v2181 = vunpack.c.l.b16 %v242
    %v2182 = vunpack.c.l.b16 %v243
    %v2183 = vunpack.c.l.b16 %v244
    %v2184 = vunpack.c.l.b16 %v245
    %v2185 = vunpack.c.l.b16 %v246
    %v2186 = vunpack.c.l.b16 %v247
    %v2187 = vunpack.c.l.b16 %v248
    %v2188 = vunpack.c.l.b16 %v249
    %v2189 = vunpack.c.l.b16 %v250
    %v2190 = vunpack.c.l.b16 %v251
    %v2191 = vunpack.c.l.b16 %v252
    %v2192 = vunpack.c.l.b16 %v253
    %v2193 = vunpack.c.l.b16 %v254
    %v2194 = vunpack.c.l.b16 %v255
    %v2195 = vunpack.c.l.b16 %v256
    %v2196 = vunpack.c.l.b16 %v257
    %v2197 = vunpack.c.l.b16 %v258
    %v2198 = vunpack.c.l.b16 %v259
    %v2199 = vunpack.c.l.b16 %v260
    %v2200 = vunpack.c.l.b16 %v261
    %v2201 = vunpack.c.l.b16 %v262
    %v2202 = vunpack.c.l.b16 %v263
    %v2203 = vunpack.c.l.b16 %v264
    %v2204 = vunpack.c.l.b16 %v265
    %v2205 = vunpack.c.l.b16 %v266
    %v2206 = vunpack.c.l.b16 %v267
    %v2207 = vunpack.c.l.b16 %v268
    %v2208 = vunpack.c.l.b16 %v269
    %v2209 = vunpack.c.l.b16 %v270
    %v2210 = vunpack.c.l.b16 %v271
    %v2211 = vunpack.c.l.b16 %v272
    %v2212 = vunpack.c.l.b16 %v273
    %v2213 = vunpack.c.l.b16 %v274
    %v2214 = vunpack.c.l.b16 %v275
    %v2215 = vunpack.c.l.b16 %v276
    %v2216 = vunpack.c.l.b16 %v277
    %v2217 = vunpack.c.l.b16 %v278
    %v2218 = vunpack.c.l.b16 %v279
    %v2219 = vunpack.c.l.b16 %v280
    %v2220 = vunpack.c.l.b16 %v281
    %v2221 = vunpack.c.l.b16 %v282
    %v2222 = vunpack.c.l.b16 %v283
    %v2223 = vunpack.c.l.b16 %v284
    %v2224 = vunpack.c.l.b16 %v285
    %v2225 = vunpack.c.l.b16 %v286
    %v2226 = vunpack.c.l.b16 %v287
    %v2227 = vunpack.c.l.b16 %v288
    %v2228 = vunpack.c.l.b16 %v289
    %v2229 = vunpack.c.l.b16 %v290
    %v2230 = vunpack.c.l.b16 %v291
    %v2231 = vunpack.c.l.b16 %v292
    %v2232 = vunpack.c.l.b16 %v293
    %v2233 = vunpack.c.l.b16 %v294
    %v2234 = vunpack.c.l.b16 %v295
    %v2235 = vunpack.c.l.b16 %v296
    %v2236 = vunpack.c.l.b16 %v297
    %v2237 = vunpack.c.l.b16 %v298
    %v2238 = vunpack.c.l.b16 %v299
    %v2239 = vunpack.c.l.b16 %v300
    %v2240 = vunpack.c.l.b16 %v301
    %v2241 = vunpack.c.l.b16 %v302
    %v2242 = vunpack.c.l.b16 %v303
    %v2243 = vunpack.c.l.b16 %v304
    %v2244 = vunpack.c.l.b16 %v305
    %v2245 = vunpack.c.l.b16 %v306
    %v2246 = vunpack.c.l.b16 %v307
    %v2247 = vunpack.c.l.b16 %v308
    %v2248 = vunpack.c.l.b16 %v309
    %v2249 = vunpack.c.l.b16 %v310
    %v2250 = vunpack.c.l.b16 %v311
    %v2251 = vunpack.c.l.b16 %v312
    %v2252 = vunpack.c.l.b16 %v313
    %v2253 = vunpack.c.l.b16 %v314
    %v2254 = vunpack.c.l.b16 %v315
    %v2255 = vunpack.c.l.b16 %v316
    %v2256 = vunpack.c.l.b16 %v317
    %v2257 = vunpack.c.l.b16 %v318
    %v2258 = vunpack.c.l.b16 %v319
    %v2259 = vunpack.c.l.b16 %v320
    %v2260 = vunpack.c.l.b16 %v321
    %v2261 = vunpack.c.l.b16 %v322
    %v2262 = vunpack.c.l.b16 %v323
    %v2263 = vunpack.c.l.b16 %v324
    %v2264 = vunpack.c.l.b16 %v325
    %v2265 = vunpack.c.l.b16 %v326
    %v2266 = vunpack.c.l.b16 %v327
    %v2267 = vunpack.c.l.b16 %v328
    %v2268 = vunpack.c.l.b16 %v329
    %v2269 = vunpack.c.l.b16 %v330
    %v2270 = vunpack.c.l.b16 %v331
    %v2271 = vunpack.c.l.b16 %v332
    %v2272 = vunpack.c.l.b16 %v333
    %v2273 = vunpack.c.l.b16 %v334
    %v2274 = vunpack.c.l.b16 %v335
    %v2275 = vunpack.c.l.b16 %v336
    %v2276 = vunpack.c.l.b16 %v337
    %v2277 = vunpack.c.l.b16 %v338
    %v2278 = vunpack.c.l.b16 %v339
    %v2279 = vunpack.c.l.b16 %v340
    %v2280 = vunpack.c.l.b16 %v341
    %v2281 = vunpack.c.l.b16 %v342
    %v2282 = vunpack.c.l.b16 %v343
    %v2283 = vunpack.c.l.b16 %v344
    %v2284 = vunpack.c.l.b16 %v345
    %v2285 = vunpack.c.l.b16 %v346
    %v2286 = vunpack.c.l.b16 %v347
    %v2287 = vunpack.c.l.b16 %v348
    %v2288 = vunpack.c.l.b16 %v349
    %v2289 = vunpack.c.l.b16 %v350
    %v2290 = vunpack.c.l.b16 %v351
    %v2291 = vunpack.c.l.b16 %v352
    %v2292 = vunpack.c.l.b16 %v353
    %v2293 = vunpack.c.l.b16 %v354
    %v2294 = vunpack.c.l.b16 %v355
    %v2295 = vunpack.c.l.b16 %v356
    %v2296 = vunpack.c.l.b16 %v357
    %v2297 = vunpack.c.l.b16 %v358
    %v2298 = vunpack.c.l.b16 %v359
    %v2299 = vunpack.c.l.b16 %v360
    %v2300 = vunpack.c.l.b16 %v361
    %v2301 = vunpack.c.l.b16 %v362
    %v2302 = vunpack.c.l.b16 %v363
    %v2303 = vunpack.c.l.b16 %v364
    %v2304 = vunpack.c.l.b16 %v365
    %v2305 = vunpack.c.l.b16 %v366
    %v2306 = vunpack.c.l.b16 %v367
    %v2307 = vunpack.c.l.b16 %v368
    %v2308 = vunpack.c.l.b16 %v369
    %v2309 = vunpack.c.l.b16 %v370
    %v2310 = vunpack.c.l.b16 %v371
    %v2311 = vunpack.c.l.b16 %v372
    %v2312 = vunpack.c.l.b16 %v373
    %v2313 = vunpack.c.l.b16 %v374
    %v2314 = vunpack.c.l.b16 %v375
    %v2315 = vunpack.c.l.b16 %v376
    %v2316 = vunpack.c.l.b16 %v377
    %v2317 = vunpack.c.l.b16 %v378
    %v2318 = vunpack.c.l.b16 %v379
    %v2319 = vunpack.c.l.b16 %v380
    %v2320 = vunpack.c.l.b16 %v381
    %v2321 = vunpack.c.l.b16 %v382
    %v2322 = vunpack.c.l.b16 %v383
    %v2323 = vunpack.c.l.b16 %v384
    %v2324 = vunpack.c.l.b16 %v385
    %v2325 = vunpack.c.l.b16 %v386
    %v2326 = vunpack.c.l.b16 %v387
    %v2327 = vunpack.c.l.b16 %v388
    %v2328 = vunpack.c.l.b16 %v389
    %v2329 = vunpack.c.l.b16 %v390
    %v2330 = vunpack.c.l.b16 %v391
    %v2331 = vunpack.c.l.b16 %v392
    %v2332 = vunpack.c.l.b16 %v393
    %v2333 = vunpack.c.l.b16 %v394
    %v2334 = vunpack.c.l.b16 %v395
    %v2335 = vunpack.c.l.b16 %v396
    %v2336 = vunpack.c.l.b16 %v397
    %v2337 = vunpack.c.l.b16 %v398
    %v2338 = vunpack.c.l.b16 %v399
    %v2339 = vunpack.c.l.b16 %v400
    %v2340 = vunpack.c.l.b16 %v401
    %v2341 = vunpack.c.l.b16 %v402
    %v2342 = vunpack.c.l.b16 %v403
    %v2343 = vunpack.c.l.b16 %v404
    %v2344 = vunpack.c.l.b16 %v405
    %v2345 = vunpack.c.l.b16 %v406
    %v2346 = vunpack.c.l.b16 %v407
    %v2347 = vunpack.c.l.b16 %v408
    %v2348 = vunpack.c.l.b16 %v409
    %v2349 = vunpack.c.l.b16 %v410
    %v2350 = vunpack.c.l.b16 %v411
    %v2351 = vunpack.c.l.b16 %v412
    %v2352 = vunpack.c.l.b16 %v413
    %v2353 = vunpack.c.l.b16 %v414
    %v2354 = vunpack.c.l.b16 %v415
    %v2355 = vunpack.c.l.b16 %v416
    %v2356 = vunpack.c.l.b16 %v417
    %v2357 = vunpack.c.l.b16 %v418
    %v2358 = vunpack.c.l.b16 %v419
    %v2359 = vunpack.c.l.b16 %v420
    %v2360 = vunpack.c.l.b16 %v421
    %v2361 = vunpack.c.l.b16 %v422
    %v2362 = vunpack.c.l.b16 %v423
    %v2363 = vunpack.c.l.b16 %v424
    %v2364 = vunpack.c.l.b16 %v425
    %v2365 = vunpack.c.l.b16 %v426
    %v2366 = vunpack.c.l.b16 %v427
    %v2367 = vunpack.c.l.b16 %v428
    %v2368 = vunpack.c.l.b16 %v429
    %v2369 = vunpack.c.l.b16 %v430
    %v2370 = vunpack.c.l.b16 %v431
    %v2371 = vunpack.c.l.b16 %v432
    %v2372 = vunpack.c.l.b16 %v433
    %v2373 = vunpack.c.l.b16 %v434
    %v2374 = vunpack.c.l.b16 %v435
    %v2375 = vunpack.c.l.b16 %v436
    %v2376 = vunpack.c.l.b16 %v437
    %v2377 = vunpack.c.l.b16 %v438
    %v2378 = vunpack.c.l.b16 %v439
    %v2379 = vunpack.c.l.b16 %v440
    %v2380 = vunpack.c.l.b16 %v441
    %v2381 = vunpack.c.l.b16 %v442
    %v2382 = vunpack.c.l.b16 %v443
    %v2383 = vunpack.c.l.b16 %v444
    %v2384 = vunpack.c.l.b16 %v445
    %v2385 = vunpack.c.l.b16 %v446
    %v2386 = vunpack.c.l.b16 %v447
    %v2387 = vunpack.c.l.b16 %v448
    %v2388 = vunpack.c.l.b16 %v449
    %v2389 = vunpack.c.l.b16 %v450
    %v2390 = vunpack.c.l.b16 %v451
    %v2391 = vunpack.c.l.b16 %v452
    %v2392 = vunpack.c.l.b16 %v453
    %v2393 = vunpack.c.l.b16 %v454
    %v2394 = vunpack.c.l.b16 %v455
    %v2395 = vunpack.c.l.b16 %v456
    %v2396 = vunpack.c.l.b16 %v457
    %v2397 = vunpack.c.l.b16 %v458
    %v2398 = vunpack.c.l.b16 %v459
    %v2399 = vunpack.c.l.b16 %v460
    %v2400 = vunpack.c.l.b16 %v461
    %v2401 = vunpack.c.l.b16 %v462
    %v2402 = vunpack.c.l.b16 %v463
    %v2403 = vunpack.c.l.b16 %v464
    %v2404 = vunpack.c.l.b16 %v465
    %v2405 = vunpack.c.l.b16 %v466
    %v2406 = vunpack.c.l.b16 %v467
    %v2407 = vunpack.c.l.b16 %v468
    %v2408 = vunpack.c.l.b16 %v469
    %v2409 = vunpack.c.l.b16 %v470
    %v2410 = vunpack.c.l.b16 %v471
    %v2411 = vunpack.c.l.b16 %v472
    %v2412 = vunpack.c.l.b16 %v473
    %v2413 = vunpack.c.l.b16 %v474
    %v2414 = vunpack.c.l.b16 %v475
    %v2415 = vunpack.c.l.b16 %v476
    %v2416 = vunpack.c.l.b16 %v477
    %v2417 = vunpack.c.l.b16 %v478
    %v2418 = vunpack.c.l.b16 %v479
    %v2419 = vunpack.c.l.b16 %v480
    %v2420 = vunpack.c.l.b16 %v481
    %v2421 = vunpack.c.l.b16 %v482
    %v2422 = vunpack.c.l.b16 %v483
    %v2423 = vunpack.c.l.b16 %v484
    %v2424 = vunpack.c.l.b16 %v485
    %v2425 = vunpack.c.l.b16 %v486
    %v2426 = vunpack.c.l.b16 %v487
    %v2427 = vunpack.c.l.b16 %v488
    %v2428 = vunpack.c.l.b16 %v489
    %v2429 = vunpack.c.l.b16 %v490
    %v2430 = vunpack.c.l.b16 %v491
    %v2431 = vunpack.c.l.b16 %v492
    %v2432 = vunpack.c.l.b16 %v493
    %v2433 = vunpack.c.l.b16 %v494
    %v2434 = vunpack.c.l.b16 %v495
    %v2435 = vunpack.c.l.b16 %v496
    %v2436 = vunpack.c.l.b16 %v497
    %v2437 = vunpack.c.l.b16 %v498
    %v2438 = vunpack.c.l.b16 %v499
    %v2439 = vunpack.c.l.b16 %v500
    %v2440 = vunpack.c.l.b16 %v501
    %v2441 = vunpack.c.l.b16 %v502
    %v2442 = vunpack.c.l.b16 %v503
    %v2443 = vunpack.c.l.b16 %v504
    %v2444 = vunpack.c.l.b16 %v505
    %v2445 = vunpack.c.l.b16 %v506
    %v2446 = vunpack.c.l.b16 %v507
    %v2447 = vunpack.c.l.b16 %v508
    %v2448 = vunpack.c.l.b16 %v509
    %v2449 = vunpack.c.l.b16 %v510
    %v2450 = vunpack.c.l.b16 %v511
    %v2451 = vunpack.c.l.b16 %v512
    %v2452 = vunpack.c.l.b16 %v513
    %v2453 = vunpack.c.l.b16 %v514
    %v2454 = vunpack.c.l.b16 %v515
    %v2455 = vunpack.c.l.b16 %v516
    %v2456 = vunpack.c.l.b16 %v517
    %v2457 = vunpack.c.l.b16 %v518
    %v2458 = vunpack.c.l.b16 %v519
    %v2459 = vunpack.c.l.b16 %v520
    %v2460 = vunpack.c.l.b16 %v521
    %v2461 = vunpack.c.l.b16 %v522
    %v2462 = vunpack.c.l.b16 %v523
    %v2463 = vunpack.c.l.b16 %v524
    %v2464 = vunpack.c.l.b16 %v525
    %v2465 = vunpack.c.l.b16 %v526
    %v2466 = vunpack.c.l.b16 %v527
    %v2467 = vunpack.c.l.b16 %v528
    %v2468 = vunpack.c.l.b16 %v529
    %v2469 = vunpack.c.l.b16 %v530
    %v2470 = vunpack.c.l.b16 %v531
    %v2471 = vunpack.c.l.b16 %v532
    %v2472 = vunpack.c.l.b16 %v533
    %v2473 = vunpack.c.l.b16 %v534
    %v2474 = vunpack.c.l.b16 %v535
    %v2475 = vunpack.c.l.b16 %v536
    %v2476 = vunpack.c.l.b16 %v537
    %v2477 = vunpack.c.l.b16 %v538
    %v2478 = vunpack.c.l.b16 %v539
    %v2479 = vunpack.c.l.b16 %v540
    %v2480 = vunpack.c.l.b16 %v541
    %v2481 = vunpack.c.l.b16 %v542
    %v2482 = vunpack.c.l.b16 %v543
    %v2483 = vunpack.c.l.b16 %v544
    %v2484 = vunpack.c.l.b16 %v545
    %v2485 = vunpack.c.l.b16 %v546
    %v2486 = vunpack.c.l.b16 %v547
    %v2487 = vunpack.c.l.b16 %v548
    %v2488 = vunpack.c.l.b16 %v549
    %v2489 = vunpack.c.l.b16 %v550
    %v2490 = vunpack.c.l.b16 %v551
    %v2491 = vunpack.c.l.b16 %v552
    %v2492 = vunpack.c.l.b16 %v553
    %v2493 = vunpack.c.l.b16 %v554
    %v2494 = vunpack.c.l.b16 %v555
    %v2495 = vunpack.c.l.b16 %v556
    %v2496 = vunpack.c.l.b16 %v557
    %v2497 = vunpack.c.l.b16 %v558
    %v2498 = vunpack.c.l.b16 %v559
    %v2499 = vunpack.c.l.b16 %v560
    %v2500 = vunpack.c.l.b16 %v561
    %v2501 = vunpack.c.l.b16 %v562
    %v2502 = vunpack.c.l.b16 %v563
    %v2503 = vunpack.c.l.b16 %v564
    %v2504 = vunpack.c.l.b16 %v565
    %v2505 = vunpack.c.l.b16 %v566
    %v2506 = vunpack.c.l.b16 %v567
    %v2507 = vunpack.c.l.b16 %v568
    %v2508 = vunpack.c.l.b16 %v569
    %v2509 = vunpack.c.l.b16 %v570
    %v2510 = vunpack.c.l.b16 %v571
    %v2511 = vunpack.c.l.b16 %v572
    %v2512 = vunpack.c.l.b16 %v573
    %v2513 = vunpack.c.l.b16 %v574
    %v2514 = vunpack.c.l.b16 %v575
    %v2515 = vunpack.c.l.b16 %v576
    %v2516 = vunpack.c.l.b16 %v577
    %v2517 = vunpack.c.l.b16 %v578
    %v2518 = vunpack.c.l.b16 %v579
    %v2519 = vunpack.c.l.b16 %v580
    %v2520 = vunpack.c.l.b16 %v581
    %v2521 = vunpack.c.l.b16 %v582
    %v2522 = vunpack.c.l.b16 %v583
    %v2523 = vunpack.c.l.b16 %v584
    %v2524 = vunpack.c.l.b16 %v585
    %v2525 = vunpack.c.l.b16 %v586
    %v2526 = vunpack.c.l.b16 %v587
    %v2527 = vunpack.c.l.b16 %v588
    %v2528 = vunpack.c.l.b16 %v589
    %v2529 = vunpack.c.l.b16 %v590
    %v2530 = vunpack.c.l.b16 %v591
    %v2531 = vunpack.c.l.b16 %v592
    %v2532 = vunpack.c.l.b16 %v593
    %v2533 = vunpack.c.l.b16 %v594
    %v2534 = vunpack.c.l.b16 %v595
    %v2535 = vunpack.c.l.b16 %v596
    %v2536 = vunpack.c.l.b16 %v597
    %v2537 = vunpack.c.l.b16 %v598
    %v2538 = vunpack.c.l.b16 %v599
    %v2539 = vunpack.c.l.b16 %v600
    %v2540 = vunpack.c.l.b16 %v601
    %v2541 = vunpack.c.l.b16 %v602
    %v2542 = vunpack.c.l.b16 %v603
    %v2543 = vunpack.c.l.b16 %v604
    %v2544 = vunpack.c.l.b16 %v605
    %v2545 = vunpack.c.l.b16 %v606
    %v2546 = vunpack.c.l.b16 %v607
    %v2547 = vunpack.c.l.b16 %v608
    %v2548 = vunpack.c.l.b16 %v609
    %v2549 = vunpack.c.l.b16 %v610
    %v2550 = vunpack.c.l.b16 %v611
    %v2551 = vunpack.c.l.b16 %v612
    %v2552 = vunpack.c.l.b16 %v613
    %v2553 = vunpack.c.l.b16 %v614
    %v2554 = vunpack.c.l.b16 %v615
    %v2555 = vunpack.c.l.b16 %v616
    %v2556 = vunpack.c.l.b16 %v617
    %v2557 = vunpack.c.l.b16 %v618
    %v2558 = vunpack.c.l.b16 %v619
    %v2559 = vunpack.c.l.b16 %v620
    %v2560 = vunpack.c.l.b16 %v621
    %v2561 = vunpack.c.l.b16 %v622
    %v2562 = vunpack.c.l.b16 %v623
    %v2563 = vunpack.c.l.b16 %v624
    %v2564 = vunpack.c.l.b16 %v625
    %v2565 = vunpack.c.l.b16 %v626
    %v2566 = vunpack.c.l.b16 %v627
    %v2567 = vunpack.c.l.b16 %v628
    %v2568 = vunpack.c.l.b16 %v629
    %v2569 = vunpack.c.l.b16 %v630
    %v2570 = vunpack.c.l.b16 %v631
    %v2571 = vunpack.c.l.b16 %v632
    %v2572 = vunpack.c.l.b16 %v633
    %v2573 = vunpack.c.l.b16 %v634
    %v2574 = vunpack.c.l.b16 %v635
    %v2575 = vunpack.c.l.b16 %v636
    %v2576 = vunpack.c.l.b16 %v637
    %v2577 = vunpack.c.l.b16 %v638
    %v2578 = vunpack.c.l.b16 %v639
    %v2579 = vunpack.c.l.b16 %v640
    %v2580 = vunpack.c.l.b16 %v641
    %v2581 = vunpack.c.l.b16 %v642
    %v2582 = vunpack.c.l.b16 %v643
    %v2583 = vunpack.c.l.b16 %v644
    %v2584 = vunpack.c.l.b16 %v645
    %v2585 = vunpack.c.l.b16 %v646
    %v2586 = vunpack.c.l.b16 %v647
    %v2587 = vunpack.c.l.b16 %v648
    %v2588 = vunpack.c.l.b16 %v649
    %v2589 = vunpack.c.l.b16 %v650
    %v2590 = vunpack.c.l.b16 %v651
    %v2591 = vunpack.c.l.b16 %v652
    %v2592 = vunpack.c.l.b16 %v653
    %v2593 = vunpack.c.l.b16 %v654
    %v2594 = vunpack.c.l.b16 %v655
    %v2595 = vunpack.c.l.b16 %v656
    %v2596 = vunpack.c.l.b16 %v657
    %v2597 = vunpack.c.l.b16 %v658
    %v2598 = vunpack.c.l.b16 %v659
    %v2599 = vunpack.c.l.b16 %v660
    %v2600 = vunpack.c.l.b16 %v661
    %v2601 = vunpack.c.l.b16 %v662
    %v2602 = vunpack.c.l.b16 %v663
    %v2603 = vunpack.c.l.b16 %v664
    %v2604 = vunpack.c.l.b16 %v665
    %v2605 = vunpack.c.l.b16 %v666
    %v2606 = vunpack.c.l.b16 %v667
    %v2607 = vunpack.c.l.b16 %v668
    %v2608 = vunpack.c.l.b16 %v669
    %v2609 = vunpack.c.l.b16 %v670
    %v2610 = vunpack.c.l.b16 %v671
    %v2611 = vunpack.c.l.b16 %v672
    %v2612 = vunpack.c.l.b16 %v673
    %v2613 = vunpack.c.l.b16 %v674
    %v2614 = vunpack.c.l.b16 %v675
    %v2615 = vunpack.c.l.b16 %v676
    %v2616 = vunpack.c.l.b16 %v677
    %v2617 = vunpack.c.l.b16 %v678
    %v2618 = vunpack.c.l.b16 %v679
    %v2619 = vunpack.c.l.b16 %v680
    %v2620 = vunpack.c.l.b16 %v681
    %v2621 = vunpack.c.l.b16 %v682
    %v2622 = vunpack.c.l.b16 %v683
    %v2623 = vunpack.c.l.b16 %v684
    %v2624 = vunpack.c.l.b16 %v685
    %v2625 = vunpack.c.l.b16 %v686
    %v2626 = vunpack.c.l.b16 %v687
    %v2627 = vunpack.c.l.b16 %v688
    %v2628 = vunpack.c.l.b16 %v689
    %v2629 = vunpack.c.l.b16 %v690
    %v2630 = vunpack.c.l.b16 %v691
    %v2631 = vunpack.c.l.b16 %v692
    %v2632 = vunpack.c.l.b16 %v693
    %v2633 = vunpack.c.l.b16 %v694
    %v2634 = vunpack.c.l.b16 %v695
    %v2635 = vunpack.c.l.b16 %v696
    %v2636 = vunpack.c.l.b16 %v697
    %v2637 = vunpack.c.l.b16 %v698
    %v2638 = vunpack.c.l.b16 %v699
    %v2639 = vunpack.c.l.b16 %v700
    %v2640 = vunpack.c.l.b16 %v701
    %v2641 = vunpack.c.l.b16 %v702
    %v2642 = vunpack.c.l.b16 %v703
    %v2643 = vunpack.c.l.b16 %v704
    %v2644 = vunpack.c.l.b16 %v705
    %v2645 = vunpack.c.l.b16 %v706
    %v2646 = vunpack.c.l.b16 %v707
    %v2647 = vunpack.c.l.b16 %v708
    %v2648 = vunpack.c.l.b16 %v709
    %v2649 = vunpack.c.l.b16 %v710
    %v2650 = vunpack.c.l.b16 %v711
    %v2651 = vunpack.c.l.b16 %v712
    %v2652 = vunpack.c.l.b16 %v713
    %v2653 = vunpack.c.l.b16 %v714
    %v2654 = vunpack.c.l.b16 %v715
    %v2655 = vunpack.c.l.b16 %v716
    %v2656 = vunpack.c.l.b16 %v717
    %v2657 = vunpack.c.l.b16 %v718
    %v2658 = vunpack.c.l.b16 %v719
    %v2659 = vunpack.c.l.b16 %v720
    %v2660 = vunpack.c.l.b16 %v721
    %v2661 = vunpack.c.l.b16 %v722
    %v2662 = vunpack.c.l.b16 %v723
    %v2663 = vunpack.c.l.b16 %v724
    %v2664 = vunpack.c.l.b16 %v725
    %v2665 = vunpack.c.l.b16 %v726
    %v2666 = vunpack.c.l.b16 %v727
    %v2667 = vunpack.c.l.b16 %v728
    %v2668 = vunpack.c.l.b16 %v729
    %v2669 = vunpack.c.l.b16 %v730
    %v2670 = vunpack.c.l.b16 %v731
    %v2671 = vunpack.c.l.b16 %v732
    %v2672 = vunpack.c.l.b16 %v733
    %v2673 = vunpack.c.l.b16 %v734
    %v2674 = vunpack.c.l.b16 %v735
    %v2675 = vunpack.c.l.b16 %v736
    %v2676 = vunpack.c.l.b16 %v737
    %v2677 = vunpack.c.l.b16 %v738
    %v2678 = vunpack.c.l.b16 %v739
    %v2679 = vunpack.c.l.b16 %v740
    %v2680 = vunpack.c.l.b16 %v741
    %v2681 = vunpack.c.l.b16 %v742
    %v2682 = vunpack.c.l.b16 %v743
    %v2683 = vunpack.c.l.b16 %v744
    %v2684 = vunpack.c.l.b16 %v745
    %v2685 = vunpack.c.l.b16 %v746
    %v2686 = vunpack.c.l.b16 %v747
    %v2687 = vunpack.c.l.b16 %v748
    %v2688 = vunpack.c.l.b16 %v749
    %v2689 = vunpack.c.l.b16 %v750
    %v2690 = vunpack.c.l.b16 %v751
    %v2691 = vunpack.c.l.b16 %v752
    %v2692 = vunpack.c.l.b16 %v753
    %v2693 = vunpack.c.l.b16 %v754
    %v2694 = vunpack.c.l.b16 %v755
    %v2695 = vunpack.c.l.b16 %v756
    %v2696 = vunpack.c.l.b16 %v757
    %v2697 = vunpack.c.l.b16 %v758
    %v2698 = vunpack.c.l.b16 %v759
    %v2699 = vunpack.c.l.b16 %v760
    %v2700 = vunpack.c.l.b16 %v761
    %v2701 = vunpack.c.l.b16 %v762
    %v2702 = vunpack.c.l.b16 %v763
    %v2703 = vunpack.c.l.b16 %v764
    %v2704 = vunpack.c.l.b16 %v765
    %v2705 = vunpack.c.l.b16 %v766
    %v2706 = vunpack.c.l.b16 %v767
    %v2707 = vunpack.c.l.b16 %v768
    %v2708 = vunpack.c.l.b16 %v769
    %v2709 = vunpack.c.l.b16 %v770
    %v2710 = vunpack.c.l.b16 %v771
    %v2711 = vunpack.c.l.b16 %v772
    %v2712 = vunpack.c.l.b16 %v773
    %v2713 = vunpack.c.l.b16 %v774
    %v2714 = vunpack.c.l.b16 %v775
    %v2715 = vunpack.c.l.b16 %v776
    %v2716 = vunpack.c.l.b16 %v777
    %v2717 = vunpack.c.l.b16 %v778
    %v2718 = vunpack.c.l.b16 %v779
    %v2719 = vunpack.c.l.b16 %v780
    %v2720 = vunpack.c.l.b16 %v781
    %v2721 = vunpack.c.l.b16 %v782
    %v2722 = vunpack.c.l.b16 %v783
    %v2723 = vunpack.c.l.b16 %v784
    %v2724 = vunpack.c.l.b16 %v785
    %v2725 = vunpack.c.l.b16 %v786
    %v2726 = vunpack.c.l.b16 %v787
    %v2727 = vunpack.c.l.b16 %v788
    %v2728 = vunpack.c.l.b16 %v789
    %v2729 = vunpack.c.l.b16 %v790
    %v2730 = vunpack.c.l.b16 %v791
    %v2731 = vunpack.c.l.b16 %v792
    %v2732 = vunpack.c.l.b16 %v793
    %v2733 = vunpack.c.l.b16 %v794
    %v2734 = vunpack.c.l.b16 %v795
    %v2735 = vunpack.c.l.b16 %v796
    %v2736 = vunpack.c.l.b16 %v797
    %v2737 = vunpack.c.l.b16 %v798
    %v2738 = vunpack.c.l.b16 %v799
    %v2739 = vunpack.c.l.b16 %v800
    %v2740 = vunpack.c.l.b16 %v801
    %v2741 = vunpack.c.l.b16 %v802
    %v2742 = vunpack.c.l.b16 %v803
    %v2743 = vunpack.c.l.b16 %v804
    %v2744 = vunpack.c.l.b16 %v805
    %v2745 = vunpack.c.l.b16 %v806
    %v2746 = vunpack.c.l.b16 %v807
    %v2747 = vunpack.c.l.b16 %v808
    %v2748 = vunpack.c.l.b16 %v809
    %v2749 = vunpack.c.l.b16 %v810
    %v2750 = vunpack.c.l.b16 %v811
    %v2751 = vunpack.c.l.b16 %v812
    %v2752 = vpack.c.b16 %v1969, %v1968
    %v2753 = vpack.c.b16 %v1971, %v1970
    %v2754 = vpack.c.b16 %v1973, %v1972
    %v2755 = vpack.c.b16 %v1975, %v1974
    %v2756 = vpack.c.b16 %v1977, %v1976
    %v2757 = vpack.c.b16 %v1979, %v1978
    %v2758 = vpack.c.b16 %v1981, %v1980
    %v2759 = vpack.c.b16 %v1983, %v1982
    %v2760 = vpack.c.b16 %v1985, %v1984
    %v2761 = vpack.c.b16 %v1987, %v1986
    %v2762 = vpack.c.b16 %v1989, %v1988
    %v2763 = vpack.c.b16 %v1991, %v1990
    %v2764 = vpack.c.b16 %v1993, %v1992
    %v2765 = vpack.c.b16 %v1995, %v1994
    %v2766 = vpack.c.b16 %v1997, %v1996
    %v2767 = vpack.c.b16 %v1999, %v1998
    %v2768 = vpack.c.b16 %v2001, %v2000
    %v2769 = vpack.c.b16 %v2003, %v2002
    %v2770 = vpack.c.b16 %v2005, %v2004
    %v2771 = vpack.c.b16 %v2007, %v2006
    %v2772 = vpack.c.b16 %v2009, %v2008
    %v2773 = vpack.c.b16 %v2011, %v2010
    %v2774 = vpack.c.b16 %v2013, %v2012
    %v2775 = vpack.c.b16 %v2015, %v2014
    %v2776 = vpack.c.b16 %v2017, %v2016
    %v2777 = vpack.c.b16 %v2019, %v2018
    %v2778 = vpack.c.b16 %v2021, %v2020
    %v2779 = vpack.c.b16 %v2023, %v2022
    %v2780 = vpack.c.b16 %v2025, %v2024
    %v2781 = vpack.c.b16 %v2027, %v2026
    %v2782 = vpack.c.b16 %v2029, %v2028
    %v2783 = vpack.c.b16 %v2031, %v2030
    %v2784 = vpack.c.b16 %v2033, %v2032
    %v2785 = vpack.c.b16 %v2035, %v2034
    %v2786 = vpack.c.b16 %v2037, %v2036
    %v2787 = vpack.c.b16 %v2039, %v2038
    %v2788 = vpack.c.b16 %v2041, %v2040
    %v2789 = vpack.c.b16 %v2043, %v2042
    %v2790 = vpack.c.b16 %v2045, %v2044
    %v2791 = vpack.c.b16 %v2047, %v2046
    %v2792 = vpack.c.b16 %v2049, %v2048
    %v2793 = vpack.c.b16 %v2051, %v2050
    %v2794 = vpack.c.b16 %v2053, %v2052
    %v2795 = vpack.c.b16 %v2055, %v2054
    %v2796 = vpack.c.b16 %v2057, %v2056
    %v2797 = vpack.c.b16 %v2059, %v2058
    %v2798 = vpack.c.b16 %v2061, %v2060
    %v2799 = vpack.c.b16 %v2063, %v2062
    %v2800 = vpack.c.b16 %v2065, %v2064
    %v2801 = vpack.c.b16 %v2067, %v2066
    %v2802 = vpack.c.b16 %v2069, %v2068
    %v2803 = vpack.c.b16 %v2071, %v2070
    %v2804 = vpack.c.b16 %v2073, %v2072
    %v2805 = vpack.c.b16 %v2075, %v2074
    %v2806 = vpack.c.b16 %v2077, %v2076
    %v2807 = vpack.c.b16 %v2079, %v2078
    %v2808 = vpack.c.b16 %v2081, %v2080
    %v2809 = vpack.c.b16 %v2083, %v2082
    %v2810 = vpack.c.b16 %v2085, %v2084
    %v2811 = vpack.c.b16 %v2087, %v2086
    %v2812 = vpack.c.b16 %v2089, %v2088
    %v2813 = vpack.c.b16 %v2091, %v2090
    %v2814 = vpack.c.b16 %v2093, %v2092
    %v2815 = vpack.c.b16 %v2095, %v2094
    %v2816 = vpack.c.b16 %v2097, %v2096
    %v2817 = vpack.c.b16 %v2099, %v2098
    %v2818 = vpack.c.b16 %v2101, %v2100
    %v2819 = vpack.c.b16 %v2103, %v2102
    %v2820 = vpack.c.b16 %v2105, %v2104
    %v2821 = vpack.c.b16 %v2107, %v2106
    %v2822 = vpack.c.b16 %v2109, %v2108
    %v2823 = vpack.c.b16 %v2111, %v2110
    %v2824 = vpack.c.b16 %v2113, %v2112
    %v2825 = vpack.c.b16 %v2115, %v2114
    %v2826 = vpack.c.b16 %v2117, %v2116
    %v2827 = vpack.c.b16 %v2119, %v2118
    %v2828 = vpack.c.b16 %v2121, %v2120
    %v2829 = vpack.c.b16 %v2123, %v2122
    %v2830 = vpack.c.b16 %v2125, %v2124
    %v2831 = vpack.c.b16 %v2127, %v2126
    %v2832 = vpack.c.b16 %v2129, %v2128
    %v2833 = vpack.c.b16 %v2131, %v2130
    %v2834 = vpack.c.b16 %v2133, %v2132
    %v2835 = vpack.c.b16 %v2135, %v2134
    %v2836 = vpack.c.b16 %v2137, %v2136
    %v2837 = vpack.c.b16 %v2139, %v2138
    %v2838 = vpack.c.b16 %v2141, %v2140
    %v2839 = vpack.c.b16 %v2143, %v2142
    %v2840 = vpack.c.b16 %v2145, %v2144
    %v2841 = vpack.c.b16 %v2147, %v2146
    %v2842 = vpack.c.b16 %v2149, %v2148
    %v2843 = vpack.c.b16 %v2151, %v2150
    %v2844 = vpack.c.b16 %v2153, %v2152
    %v2845 = vpack.c.b16 %v2155, %v2154
    %v2846 = vpack.c.b16 %v2157, %v2156
    %v2847 = vpack.c.b16 %v2159, %v2158
    %v2848 = vpack.c.b16 %v2161, %v2160
    %v2849 = vpack.c.b16 %v2163, %v2162
    %v2850 = vpack.c.b16 %v2165, %v2164
    %v2851 = vpack.c.b16 %v2167, %v2166
    %v2852 = vpack.c.b16 %v2169, %v2168
    %v2853 = vpack.c.b16 %v2171, %v2170
    %v2854 = vpack.c.b16 %v2173, %v2172
    %v2855 = vpack.c.b16 %v2175, %v2174
    %v2856 = vpack.c.b16 %v2177, %v2176
    %v2857 = vpack.c.b16 %v2179, %v2178
    %v2858 = vpack.c.b16 %v2181, %v2180
    %v2859 = vpack.c.b16 %v2183, %v2182
    %v2860 = vpack.c.b16 %v2185, %v2184
    %v2861 = vpack.c.b16 %v2187, %v2186
    %v2862 = vpack.c.b16 %v2189, %v2188
    %v2863 = vpack.c.b16 %v2191, %v2190
    %v2864 = vpack.c.b16 %v2193, %v2192
    %v2865 = vpack.c.b16 %v2195, %v2194
    %v2866 = vpack.c.b16 %v2197, %v2196
    %v2867 = vpack.c.b16 %v2199, %v2198
    %v2868 = vpack.c.b16 %v2201, %v2200
    %v2869 = vpack.c.b16 %v2203, %v2202
    %v2870 = vpack.c.b16 %v2205, %v2204
    %v2871 = vpack.c.b16 %v2207, %v2206
    %v2872 = vpack.c.b16 %v2209, %v2208
    %v2873 = vpack.c.b16 %v2211, %v2210
    %v2874 = vpack.c.b16 %v2213, %v2212
    %v2875 = vpack.c.b16 %v2215, %v2214
    %v2876 = vpack.c.b16 %v2217, %v2216
    %v2877 = vpack.c.b16 %v2219, %v2218
    %v2878 = vpack.c.b16 %v2221, %v2220
    %v2879 = vpack.c.b16 %v2223, %v2222
    %v2880 = vpack.c.b16 %v2225, %v2224
    %v2881 = vpack.c.b16 %v2227, %v2226
    %v2882 = vpack.c.b16 %v2229, %v2228
    %v2883 = vpack.c.b16 %v2231, %v2230
    %v2884 = vpack.c.b16 %v2233, %v2232
    %v2885 = vpack.c.b16 %v2235, %v2234
    %v2886 = vpack.c.b16 %v2237, %v2236
    %v2887 = vpack.c.b16 %v2239, %v2238
    %v2888 = vpack.c.b16 %v2241, %v2240
    %v2889 = vpack.c.b16 %v2243, %v2242
    %v2890 = vpack.c.b16 %v2245, %v2244
    %v2891 = vpack.c.b16 %v2247, %v2246
    %v2892 = vpack.c.b16 %v2249, %v2248
    %v2893 = vpack.c.b16 %v2251, %v2250
    %v2894 = vpack.c.b16 %v2253, %v2252
    %v2895 = vpack.c.b16 %v2255, %v2254
    %v2896 = vpack.c.b16 %v2257, %v2256
    %v2897 = vpack.c.b16 %v2259, %v2258
    %v2898 = vpack.c.b16 %v2261, %v2260
    %v2899 = vpack.c.b16 %v2263, %v2262
    %v2900 = vpack.c.b16 %v2265, %v2264
    %v2901 = vpack.c.b16 %v2267, %v2266
    %v2902 = vpack.c.b16 %v2269, %v2268
    %v2903 = vpack.c.b16 %v2271, %v2270
    %v2904 = vpack.c.b16 %v2273, %v2272
    %v2905 = vpack.c.b16 %v2275, %v2274
    %v2906 = vpack.c.b16 %v2277, %v2276
    %v2907 = vpack.c.b16 %v2279, %v2278
    %v2908 = vpack.c.b16 %v2281, %v2280
    %v2909 = vpack.c.b16 %v2283, %v2282
    %v2910 = vpack.c.b16 %v2285, %v2284
    %v2911 = vpack.c.b16 %v2287, %v2286
    %v2912 = vpack.c.b16 %v2289, %v2288
    %v2913 = vpack.c.b16 %v2291, %v2290
    %v2914 = vpack.c.b16 %v2293, %v2292
    %v2915 = vpack.c.b16 %v2295, %v2294
    %v2916 = vpack.c.b16 %v2297, %v2296
    %v2917 = vpack.c.b16 %v2299, %v2298
    %v2918 = vpack.c.b16 %v2301, %v2300
    %v2919 = vpack.c.b16 %v2303, %v2302
    %v2920 = vpack.c.b16 %v2305, %v2304
    %v2921 = vpack.c.b16 %v2307, %v2306
    %v2922 = vpack.c.b16 %v2309, %v2308
    %v2923 = vpack.c.b16 %v2311, %v2310
    %v2924 = vpack.c.b16 %v2313, %v2312
    %v2925 = vpack.c.b16 %v2315, %v2314
    %v2926 = vpack.c.b16 %v2317, %v2316
    %v2927 = vpack.c.b16 %v2319, %v2318
    %v2928 = vpack.c.b16 %v2321, %v2320
    %v2929 = vpack.c.b16 %v2323, %v2322
    %v2930 = vpack.c.b16 %v2325, %v2324
    %v2931 = vpack.c.b16 %v2327, %v2326
    %v2932 = vpack.c.b16 %v2329, %v2328
    %v2933 = vpack.c.b16 %v2331, %v2330
    %v2934 = vpack.c.b16 %v2333, %v2332
    %v2935 = vpack.c.b16 %v2335, %v2334
    %v2936 = vpack.c.b16 %v2337, %v2336
    %v2937 = vpack.c.b16 %v2339, %v2338
    %v2938 = vpack.c.b16 %v2341, %v2340
    %v2939 = vpack.c.b16 %v2343, %v2342
    %v2940 = vpack.c.b16 %v2345, %v2344
    %v2941 = vpack.c.b16 %v2347, %v2346
    %v2942 = vpack.c.b16 %v2349, %v2348
    %v2943 = vpack.c.b16 %v2351, %v2350
    %v2944 = vpack.c.b16 %v2353, %v2352
    %v2945 = vpack.c.b16 %v2355, %v2354
    %v2946 = vpack.c.b16 %v2357, %v2356
    %v2947 = vpack.c.b16 %v2359, %v2358
    %v2948 = vpack.c.b16 %v2361, %v2360
    %v2949 = vpack.c.b16 %v2363, %v2362
    %v2950 = vpack.c.b16 %v2365, %v2364
    %v2951 = vpack.c.b16 %v2367, %v2366
    %v2952 = vpack.c.b16 %v2369, %v2368
    %v2953 = vpack.c.b16 %v2371, %v2370
    %v2954 = vpack.c.b16 %v2373, %v2372
    %v2955 = vpack.c.b16 %v2375, %v2374
    %v2956 = vpack.c.b16 %v2377, %v2376
    %v2957 = vpack.c.b16 %v2379, %v2378
    %v2958 = vpack.c.b16 %v2381, %v2380
    %v2959 = vpack.c.b16 %v2383, %v2382
    %v2960 = vpack.c.b16 %v2385, %v2384
    %v2961 = vpack.c.b16 %v2387, %v2386
    %v2962 = vpack.c.b16 %v2389, %v2388
    %v2963 = vpack.c.b16 %v2391, %v2390
    %v2964 = vpack.c.b16 %v2393, %v2392
    %v2965 = vpack.c.b16 %v2395, %v2394
    %v2966 = vpack.c.b16 %v2397, %v2396
    %v2967 = vpack.c.b16 %v2399, %v2398
    %v2968 = vpack.c.b16 %v2401, %v2400
    %v2969 = vpack.c.b16 %v2403, %v2402
    %v2970 = vpack.c.b16 %v2405, %v2404
    %v2971 = vpack.c.b16 %v2407, %v2406
    %v2972 = vpack.c.b16 %v2409, %v2408
    %v2973 = vpack.c.b16 %v2411, %v2410
    %v2974 = vpack.c.b16 %v2413, %v2412
    %v2975 = vpack.c.b16 %v2415, %v2414
    %v2976 = vpack.c.b16 %v2417, %v2416
    %v2977 = vpack.c.b16 %v2419, %v2418
    %v2978 = vpack.c.b16 %v2421, %v2420
    %v2979 = vpack.c.b16 %v2423, %v2422
    %v2980 = vpack.c.b16 %v2425, %v2424
    %v2981 = vpack.c.b16 %v2427, %v2426
    %v2982 = vpack.c.b16 %v2429, %v2428
    %v2983 = vpack.c.b16 %v2431, %v2430
    %v2984 = vpack.c.b16 %v2433, %v2432
    %v2985 = vpack.c.b16 %v2435, %v2434
    %v2986 = vpack.c.b16 %v2437, %v2436
    %v2987 = vpack.c.b16 %v2439, %v2438
    %v2988 = vpack.c.b16 %v2441, %v2440
    %v2989 = vpack.c.b16 %v2443, %v2442
    %v2990 = vpack.c.b16 %v2445, %v2444
    %v2991 = vpack.c.b16 %v2447, %v2446
    %v2992 = vpack.c.b16 %v2449, %v2448
    %v2993 = vpack.c.b16 %v2451, %v2450
    %v2994 = vpack.c.b16 %v2453, %v2452
    %v2995 = vpack.c.b16 %v2455, %v2454
    %v2996 = vpack.c.b16 %v2457, %v2456
    %v2997 = vpack.c.b16 %v2459, %v2458
    %v2998 = vpack.c.b16 %v2461, %v2460
    %v2999 = vpack.c.b16 %v2463, %v2462
    %v3000 = vpack.c.b16 %v2465, %v2464
    %v3001 = vpack.c.b16 %v2467, %v2466
    %v3002 = vpack.c.b16 %v2469, %v2468
    %v3003 = vpack.c.b16 %v2471, %v2470
    %v3004 = vpack.c.b16 %v2473, %v2472
    %v3005 = vpack.c.b16 %v2475, %v2474
    %v3006 = vpack.c.b16 %v2477, %v2476
    %v3007 = vpack.c.b16 %v2479, %v2478
    %v3008 = vpack.c.b16 %v2481, %v2480
    %v3009 = vpack.c.b16 %v2483, %v2482
    %v3010 = vpack.c.b16 %v2485, %v2484
    %v3011 = vpack.c.b16 %v2487, %v2486
    %v3012 = vpack.c.b16 %v2489, %v2488
    %v3013 = vpack.c.b16 %v2491, %v2490
    %v3014 = vpack.c.b16 %v2493, %v2492
    %v3015 = vpack.c.b16 %v2495, %v2494
    %v3016 = vpack.c.b16 %v2497, %v2496
    %v3017 = vpack.c.b16 %v2499, %v2498
    %v3018 = vpack.c.b16 %v2501, %v2500
    %v3019 = vpack.c.b16 %v2503, %v2502
    %v3020 = vpack.c.b16 %v2505, %v2504
    %v3021 = vpack.c.b16 %v2507, %v2506
    %v3022 = vpack.c.b16 %v2509, %v2508
    %v3023 = vpack.c.b16 %v2511, %v2510
    %v3024 = vpack.c.b16 %v2513, %v2512
    %v3025 = vpack.c.b16 %v2515, %v2514
    %v3026 = vpack.c.b16 %v2517, %v2516
    %v3027 = vpack.c.b16 %v2519, %v2518
    %v3028 = vpack.c.b16 %v2521, %v2520
    %v3029 = vpack.c.b16 %v2523, %v2522
    %v3030 = vpack.c.b16 %v2525, %v2524
    %v3031 = vpack.c.b16 %v2527, %v2526
    %v3032 = vpack.c.b16 %v2529, %v2528
    %v3033 = vpack.c.b16 %v2531, %v2530
    %v3034 = vpack.c.b16 %v2533, %v2532
    %v3035 = vpack.c.b16 %v2535, %v2534
    %v3036 = vpack.c.b16 %v2537, %v2536
    %v3037 = vpack.c.b16 %v2539, %v2538
    %v3038 = vpack.c.b16 %v2541, %v2540
    %v3039 = vpack.c.b16 %v2543, %v2542
    %v3040 = vpack.c.b16 %v2545, %v2544
    %v3041 = vpack.c.b16 %v2547, %v2546
    %v3042 = vpack.c.b16 %v2549, %v2548
    %v3043 = vpack.c.b16 %v2551, %v2550
    %v3044 = vpack.c.b16 %v2553, %v2552
    %v3045 = vpack.c.b16 %v2555, %v2554
    %v3046 = vpack.c.b16 %v2557, %v2556
    %v3047 = vpack.c.b16 %v2559, %v2558
    %v3048 = vpack.c.b16 %v2561, %v2560
    %v3049 = vpack.c.b16 %v2563, %v2562
    %v3050 = vpack.c.b16 %v2565, %v2564
    %v3051 = vpack.c.b16 %v2567, %v2566
    %v3052 = vpack.c.b16 %v2569, %v2568
    %v3053 = vpack.c.b16 %v2571, %v2570
    %v3054 = vpack.c.b16 %v2573, %v2572
    %v3055 = vpack.c.b16 %v2575, %v2574
    %v3056 = vpack.c.b16 %v2577, %v2576
    %v3057 = vpack.c.b16 %v2579, %v2578
    %v3058 = vpack.c.b16 %v2581, %v2580
    %v3059 = vpack.c.b16 %v2583, %v2582
    %v3060 = vpack.c.b16 %v2585, %v2584
    %v3061 = vpack.c.b16 %v2587, %v2586
    %v3062 = vpack.c.b16 %v2589, %v2588
    %v3063 = vpack.c.b16 %v2591, %v2590
    %v3064 = vpack.c.b16 %v2593, %v2592
    %v3065 = vpack.c.b16 %v2595, %v2594
    %v3066 = vpack.c.b16 %v2597, %v2596
    %v3067 = vpack.c.b16 %v2599, %v2598
    %v3068 = vpack.c.b16 %v2601, %v2600
    %v3069 = vpack.c.b16 %v2603, %v2602
    %v3070 = vpack.c.b16 %v2605, %v2604
    %v3071 = vpack.c.b16 %v2607, %v2606
    %v3072 = vpack.c.b16 %v2609, %v2608
    %v3073 = vpack.c.b16 %v2611, %v2610
    %v3074 = vpack.c.b16 %v2613, %v2612
    %v3075 = vpack.c.b16 %v2615, %v2614
    %v3076 = vpack.c.b16 %v2617, %v2616
    %v3077 = vpack.c.b16 %v2619, %v2618
    %v3078 = vpack.c.b16 %v2621, %v2620
    %v3079 = vpack.c.b16 %v2623, %v2622
    %v3080 = vpack.c.b16 %v2625, %v2624
    %v3081 = vpack.c.b16 %v2627, %v2626
    %v3082 = vpack.c.b16 %v2629, %v2628
    %v3083 = vpack.c.b16 %v2631, %v2630
    %v3084 = vpack.c.b16 %v2633, %v2632
    %v3085 = vpack.c.b16 %v2635, %v2634
    %v3086 = vpack.c.b16 %v2637, %v2636
    %v3087 = vpack.c.b16 %v2639, %v2638
    %v3088 = vpack.c.b16 %v2641, %v2640
    %v3089 = vpack.c.b16 %v2643, %v2642
    %v3090 = vpack.c.b16 %v2645, %v2644
    %v3091 = vpack.c.b16 %v2647, %v2646
    %v3092 = vpack.c.b16 %v2649, %v2648
    %v3093 = vpack.c.b16 %v2651, %v2650
    %v3094 = vpack.c.b16 %v2653, %v2652
    %v3095 = vpack.c.b16 %v2655, %v2654
    %v3096 = vpack.c.b16 %v2657, %v2656
    %v3097 = vpack.c.b16 %v2659, %v2658
    %v3098 = vpack.c.b16 %v2661, %v2660
    %v3099 = vpack.c.b16 %v2663, %v2662
    %v3100 = vpack.c.b16 %v2665, %v2664
    %v3101 = vpack.c.b16 %v2667, %v2666
    %v3102 = vpack.c.b16 %v2669, %v2668
    %v3103 = vpack.c.b16 %v2671, %v2670
    %v3104 = vpack.c.b16 %v2673, %v2672
    %v3105 = vpack.c.b16 %v2675, %v2674
    %v3106 = vpack.c.b16 %v2677, %v2676
    %v3107 = vpack.c.b16 %v2679, %v2678
    %v3108 = vpack.c.b16 %v2681, %v2680
    %v3109 = vpack.c.b16 %v2683, %v2682
    %v3110 = vpack.c.b16 %v2685, %v2684
    %v3111 = vpack.c.b16 %v2687, %v2686
    %v3112 = vpack.c.b16 %v2689, %v2688
    %v3113 = vpack.c.b16 %v2691, %v2690
    %v3114 = vpack.c.b16 %v2693, %v2692
    %v3115 = vpack.c.b16 %v2695, %v2694
    %v3116 = vpack.c.b16 %v2697, %v2696
    %v3117 = vpack.c.b16 %v2699, %v2698
    %v3118 = vpack.c.b16 %v2701, %v2700
    %v3119 = vpack.c.b16 %v2703, %v2702
    %v3120 = vpack.c.b16 %v2705, %v2704
    %v3121 = vpack.c.b16 %v2707, %v2706
    %v3122 = vpack.c.b16 %v2709, %v2708
    %v3123 = vpack.c.b16 %v2711, %v2710
    %v3124 = vpack.c.b16 %v2713, %v2712
    %v3125 = vpack.c.b16 %v2715, %v2714
    %v3126 = vpack.c.b16 %v2717, %v2716
    %v3127 = vpack.c.b16 %v2719, %v2718
    %v3128 = vpack.c.b16 %v2721, %v2720
    %v3129 = vpack.c.b16 %v2723, %v2722
    %v3130 = vpack.c.b16 %v2725, %v2724
    %v3131 = vpack.c.b16 %v2727, %v2726
    %v3132 = vpack.c.b16 %v2729, %v2728
    %v3133 = vpack.c.b16 %v2731, %v2730
    %v3134 = vpack.c.b16 %v2733, %v2732
    %v3135 = vpack.c.b16 %v2735, %v2734
    %v3136 = vpack.c.b16 %v2737, %v2736
    %v3137 = vpack.c.b16 %v2739, %v2738
    %v3138 = vpack.c.b16 %v2741, %v2740
    %v3139 = vpack.c.b16 %v2743, %v2742
    %v3140 = vpack.c.b16 %v2745, %v2744
    %v3141 = vpack.c.b16 %v2747, %v2746
    %v3142 = vpack.c.b16 %v2749, %v2748
    %v3143 = vpack.c.b16 %v2751, %v2750
    %3536 = vmatprep.subr.bf16.mxu0 0
    %3537 = vmatpush1.bf16.msra.mxu0 %v2759
    %3538 = vmatprep.subr.bf16.mxu0 0
    %3539 = vmatpush1.bf16.msra.mxu0 %v2758
    %3540 = vmatprep.subr.bf16.mxu0 0
    %3541 = vmatpush1.bf16.msra.mxu0 %v2757
    %3542 = vmatprep.subr.bf16.mxu0 0
    %3543 = vmatpush1.bf16.msra.mxu0 %v2756
    %3544 = vmatprep.subr.bf16.mxu0 0
    %3545 = vmatpush1.bf16.msra.mxu0 %v2755
    %3546 = vmatprep.subr.bf16.mxu0 0
    %3547 = vmatpush1.bf16.msra.mxu0 %v2754
    %3548 = vmatprep.subr.bf16.mxu0 0
    %3549 = vmatpush1.bf16.msra.mxu0 %v2753
    %3550 = vmatprep.subr.bf16.mxu0 0
    %3551 = vmatpush1.bf16.msra.mxu0 %v2752
    %3552 = vmatprep.subr.bf16.mxu0 0
    %3553 = vmatpush2.bf16.msra.mxu0 %v2767
    %3554 = vmatprep.subr.bf16.mxu0 0
    %3555 = vmatpush2.bf16.msra.mxu0 %v2766
    %3556 = vmatprep.subr.bf16.mxu0 0
    %3557 = vmatpush2.bf16.msra.mxu0 %v2765
    %3558 = vmatprep.subr.bf16.mxu0 0
    %3559 = vmatpush2.bf16.msra.mxu0 %v2764
    %3560 = vmatprep.subr.bf16.mxu0 0
    %3561 = vmatpush2.bf16.msra.mxu0 %v2763
    %3562 = vmatprep.subr.bf16.mxu0 0
    %3563 = vmatpush2.bf16.msra.mxu0 %v2762
    %3564 = vmatprep.subr.bf16.mxu0 0
    %3565 = vmatpush2.bf16.msra.mxu0 %v2761
    %3566 = vmatprep.subr.bf16.mxu0 0
    %3567 = vmatpush2.bf16.msra.mxu0 %v2760
    %3568 = vmatprep.mubr.bf16.mxu0 %v864
    %3569 = vmatmul.mubr.bf16.gmra.mxu0 %v850
    %v3570 = vpop.f32.mrf.mxu0
    %v3571 = vadd.f32 %v818, %v3570
    %v3572 = vpop.f32.mrf.mxu0
    %v3573 = vpop.f32.mrf.mxu0
    %v3574 = vpop.f32.mrf.mxu0
    %3575 = vdwg.mxu0
    %3576 = vmatprep.subr.bf16.mxu0 0
    %3577 = vmatpush1.bf16.msra.mxu0 %v2775
    %3578 = vmatprep.subr.bf16.mxu0 0
    %3579 = vmatpush1.bf16.msra.mxu0 %v2774
    %3580 = vmatprep.subr.bf16.mxu0 0
    %3581 = vmatpush1.bf16.msra.mxu0 %v2773
    %3582 = vmatprep.subr.bf16.mxu0 0
    %3583 = vmatpush1.bf16.msra.mxu0 %v2772
    %3584 = vmatprep.subr.bf16.mxu0 0
    %3585 = vmatpush1.bf16.msra.mxu0 %v2771
    %3586 = vmatprep.subr.bf16.mxu0 0
    %3587 = vmatpush1.bf16.msra.mxu0 %v2770
    %3588 = vmatprep.subr.bf16.mxu0 0
    %3589 = vmatpush1.bf16.msra.mxu0 %v2769
    %3590 = vmatprep.subr.bf16.mxu0 0
    %3591 = vmatpush1.bf16.msra.mxu0 %v2768
    %3592 = vmatprep.subr.bf16.mxu0 0
    %3593 = vmatpush2.bf16.msra.mxu0 %v2783
    %3594 = vmatprep.subr.bf16.mxu0 0
    %3595 = vmatpush2.bf16.msra.mxu0 %v2782
    %3596 = vmatprep.subr.bf16.mxu0 0
    %3597 = vmatpush2.bf16.msra.mxu0 %v2781
    %3598 = vmatprep.subr.bf16.mxu0 0
    %3599 = vmatpush2.bf16.msra.mxu0 %v2780
    %3600 = vmatprep.subr.bf16.mxu0 0
    %3601 = vmatpush2.bf16.msra.mxu0 %v2779
    %3602 = vmatprep.subr.bf16.mxu0 0
    %3603 = vmatpush2.bf16.msra.mxu0 %v2778
    %3604 = vmatprep.subr.bf16.mxu0 0
    %3605 = vmatpush2.bf16.msra.mxu0 %v2777
    %3606 = vmatprep.subr.bf16.mxu0 0
    %3607 = vmatpush2.bf16.msra.mxu0 %v2776
    %3608 = vmatprep.mubr.bf16.mxu0 %v874
    %3609 = vmatmul.mubr.bf16.gmra.mxu0 %v872
    %v3610 = vpop.f32.mrf.mxu0
    %v3611 = vadd.f32 %v3571, %v3610
    %v3612 = vpop.f32.mrf.mxu0
    %v3613 = vpop.f32.mrf.mxu0
    %v3614 = vpop.f32.mrf.mxu0
    %3615 = vdwg.mxu0
    %3616 = vmatprep.subr.bf16.mxu0 0
    %3617 = vmatpush1.bf16.msra.mxu0 %v2791
    %3618 = vmatprep.subr.bf16.mxu0 0
    %3619 = vmatpush1.bf16.msra.mxu0 %v2790
    %3620 = vmatprep.subr.bf16.mxu0 0
    %3621 = vmatpush1.bf16.msra.mxu0 %v2789
    %3622 = vmatprep.subr.bf16.mxu0 0
    %3623 = vmatpush1.bf16.msra.mxu0 %v2788
    %3624 = vmatprep.subr.bf16.mxu0 0
    %3625 = vmatpush1.bf16.msra.mxu0 %v2787
    %3626 = vmatprep.subr.bf16.mxu0 0
    %3627 = vmatpush1.bf16.msra.mxu0 %v2786
    %3628 = vmatprep.subr.bf16.mxu0 0
    %3629 = vmatpush1.bf16.msra.mxu0 %v2785
    %3630 = vmatprep.subr.bf16.mxu0 0
    %3631 = vmatpush1.bf16.msra.mxu0 %v2784
    %3632 = vmatprep.subr.bf16.mxu0 0
    %3633 = vmatpush2.bf16.msra.mxu0 %v2799
    %3634 = vmatprep.subr.bf16.mxu0 0
    %3635 = vmatpush2.bf16.msra.mxu0 %v2798
    %3636 = vmatprep.subr.bf16.mxu0 0
    %3637 = vmatpush2.bf16.msra.mxu0 %v2797
    %3638 = vmatprep.subr.bf16.mxu0 0
    %3639 = vmatpush2.bf16.msra.mxu0 %v2796
    %3640 = vmatprep.subr.bf16.mxu0 0
    %3641 = vmatpush2.bf16.msra.mxu0 %v2795
    %3642 = vmatprep.subr.bf16.mxu0 0
    %3643 = vmatpush2.bf16.msra.mxu0 %v2794
    %3644 = vmatprep.subr.bf16.mxu0 0
    %3645 = vmatpush2.bf16.msra.mxu0 %v2793
    %3646 = vmatprep.subr.bf16.mxu0 0
    %3647 = vmatpush2.bf16.msra.mxu0 %v2792
    %3648 = vmatprep.mubr.bf16.mxu0 %v871
    %3649 = vmatmul.mubr.bf16.gmra.mxu0 %v857
    %v3650 = vpop.f32.mrf.mxu0
    %v3651 = vadd.f32 %v3611, %v3650
    %v3652 = vpop.f32.mrf.mxu0
    %v3653 = vpop.f32.mrf.mxu0
    %v3654 = vpop.f32.mrf.mxu0
    %3655 = vdwg.mxu0
    %3656 = vmatprep.subr.bf16.mxu0 0
    %3657 = vmatpush1.bf16.msra.mxu0 %v2807
    %3658 = vmatprep.subr.bf16.mxu0 0
    %3659 = vmatpush1.bf16.msra.mxu0 %v2806
    %3660 = vmatprep.subr.bf16.mxu0 0
    %3661 = vmatpush1.bf16.msra.mxu0 %v2805
    %3662 = vmatprep.subr.bf16.mxu0 0
    %3663 = vmatpush1.bf16.msra.mxu0 %v2804
    %3664 = vmatprep.subr.bf16.mxu0 0
    %3665 = vmatpush1.bf16.msra.mxu0 %v2803
    %3666 = vmatprep.subr.bf16.mxu0 0
    %3667 = vmatpush1.bf16.msra.mxu0 %v2802
    %3668 = vmatprep.subr.bf16.mxu0 0
    %3669 = vmatpush1.bf16.msra.mxu0 %v2801
    %3670 = vmatprep.subr.bf16.mxu0 0
    %3671 = vmatpush1.bf16.msra.mxu0 %v2800
    %3672 = vmatprep.subr.bf16.mxu0 0
    %3673 = vmatpush2.bf16.msra.mxu0 %v2815
    %3674 = vmatprep.subr.bf16.mxu0 0
    %3675 = vmatpush2.bf16.msra.mxu0 %v2814
    %3676 = vmatprep.subr.bf16.mxu0 0
    %3677 = vmatpush2.bf16.msra.mxu0 %v2813
    %3678 = vmatprep.subr.bf16.mxu0 0
    %3679 = vmatpush2.bf16.msra.mxu0 %v2812
    %3680 = vmatprep.subr.bf16.mxu0 0
    %3681 = vmatpush2.bf16.msra.mxu0 %v2811
    %3682 = vmatprep.subr.bf16.mxu0 0
    %3683 = vmatpush2.bf16.msra.mxu0 %v2810
    %3684 = vmatprep.subr.bf16.mxu0 0
    %3685 = vmatpush2.bf16.msra.mxu0 %v2809
    %3686 = vmatprep.subr.bf16.mxu0 0
    %3687 = vmatpush2.bf16.msra.mxu0 %v2808
    %3688 = vmatprep.mubr.bf16.mxu0 %v875
    %3689 = vmatmul.mubr.bf16.gmra.mxu0 %v873
    %v3690 = vpop.f32.mrf.mxu0
    %v3691 = vadd.f32 %v3651, %v3690
    %v3692 = vpop.f32.mrf.mxu0
    %v3693 = vpop.f32.mrf.mxu0
    %v3694 = vpop.f32.mrf.mxu0
    %3695 = vdwg.mxu0
    %3696 = vmatprep.subr.bf16.mxu0 0
    %3697 = vmatpush1.bf16.msra.mxu0 %v2823
    %3698 = vmatprep.subr.bf16.mxu0 0
    %3699 = vmatpush1.bf16.msra.mxu0 %v2822
    %3700 = vmatprep.subr.bf16.mxu0 0
    %3701 = vmatpush1.bf16.msra.mxu0 %v2821
    %3702 = vmatprep.subr.bf16.mxu0 0
    %3703 = vmatpush1.bf16.msra.mxu0 %v2820
    %3704 = vmatprep.subr.bf16.mxu0 0
    %3705 = vmatpush1.bf16.msra.mxu0 %v2819
    %3706 = vmatprep.subr.bf16.mxu0 0
    %3707 = vmatpush1.bf16.msra.mxu0 %v2818
    %3708 = vmatprep.subr.bf16.mxu0 0
    %3709 = vmatpush1.bf16.msra.mxu0 %v2817
    %3710 = vmatprep.subr.bf16.mxu0 0
    %3711 = vmatpush1.bf16.msra.mxu0 %v2816
    %3712 = vmatprep.subr.bf16.mxu0 0
    %3713 = vmatpush2.bf16.msra.mxu0 %v2831
    %3714 = vmatprep.subr.bf16.mxu0 0
    %3715 = vmatpush2.bf16.msra.mxu0 %v2830
    %3716 = vmatprep.subr.bf16.mxu0 0
    %3717 = vmatpush2.bf16.msra.mxu0 %v2829
    %3718 = vmatprep.subr.bf16.mxu0 0
    %3719 = vmatpush2.bf16.msra.mxu0 %v2828
    %3720 = vmatprep.subr.bf16.mxu0 0
    %3721 = vmatpush2.bf16.msra.mxu0 %v2827
    %3722 = vmatprep.subr.bf16.mxu0 0
    %3723 = vmatpush2.bf16.msra.mxu0 %v2826
    %3724 = vmatprep.subr.bf16.mxu0 0
    %3725 = vmatpush2.bf16.msra.mxu0 %v2825
    %3726 = vmatprep.subr.bf16.mxu0 0
    %3727 = vmatpush2.bf16.msra.mxu0 %v2824
    %3728 = vmatprep.mubr.bf16.mxu0 %v913
    %3729 = vmatmul.mubr.bf16.gmra.mxu0 %v899
    %v3730 = vpop.f32.mrf.mxu0
    %v3731 = vadd.f32 %v3691, %v3730
    %v3732 = vpop.f32.mrf.mxu0
    %v3733 = vpop.f32.mrf.mxu0
    %v3734 = vpop.f32.mrf.mxu0
    %3735 = vdwg.mxu0
    %3736 = vmatprep.subr.bf16.mxu0 0
    %3737 = vmatpush1.bf16.msra.mxu0 %v2839
    %3738 = vmatprep.subr.bf16.mxu0 0
    %3739 = vmatpush1.bf16.msra.mxu0 %v2838
    %3740 = vmatprep.subr.bf16.mxu0 0
    %3741 = vmatpush1.bf16.msra.mxu0 %v2837
    %3742 = vmatprep.subr.bf16.mxu0 0
    %3743 = vmatpush1.bf16.msra.mxu0 %v2836
    %3744 = vmatprep.subr.bf16.mxu0 0
    %3745 = vmatpush1.bf16.msra.mxu0 %v2835
    %3746 = vmatprep.subr.bf16.mxu0 0
    %3747 = vmatpush1.bf16.msra.mxu0 %v2834
    %3748 = vmatprep.subr.bf16.mxu0 0
    %3749 = vmatpush1.bf16.msra.mxu0 %v2833
    %3750 = vmatprep.subr.bf16.mxu0 0
    %3751 = vmatpush1.bf16.msra.mxu0 %v2832
    %3752 = vmatprep.subr.bf16.mxu0 0
    %3753 = vmatpush2.bf16.msra.mxu0 %v2847
    %3754 = vmatprep.subr.bf16.mxu0 0
    %3755 = vmatpush2.bf16.msra.mxu0 %v2846
    %3756 = vmatprep.subr.bf16.mxu0 0
    %3757 = vmatpush2.bf16.msra.mxu0 %v2845
    %3758 = vmatprep.subr.bf16.mxu0 0
    %3759 = vmatpush2.bf16.msra.mxu0 %v2844
    %3760 = vmatprep.subr.bf16.mxu0 0
    %3761 = vmatpush2.bf16.msra.mxu0 %v2843
    %3762 = vmatprep.subr.bf16.mxu0 0
    %3763 = vmatpush2.bf16.msra.mxu0 %v2842
    %3764 = vmatprep.subr.bf16.mxu0 0
    %3765 = vmatpush2.bf16.msra.mxu0 %v2841
    %3766 = vmatprep.subr.bf16.mxu0 0
    %3767 = vmatpush2.bf16.msra.mxu0 %v2840
    %3768 = vmatprep.mubr.bf16.mxu0 %v923
    %3769 = vmatmul.mubr.bf16.gmra.mxu0 %v921
    %v3770 = vpop.f32.mrf.mxu0
    %v3771 = vadd.f32 %v3731, %v3770
    %v3772 = vpop.f32.mrf.mxu0
    %v3773 = vpop.f32.mrf.mxu0
    %v3774 = vpop.f32.mrf.mxu0
    %3775 = vdwg.mxu0
    %3776 = vmatprep.subr.bf16.mxu0 0
    %3777 = vmatpush1.bf16.msra.mxu0 %v2855
    %3778 = vmatprep.subr.bf16.mxu0 0
    %3779 = vmatpush1.bf16.msra.mxu0 %v2854
    %3780 = vmatprep.subr.bf16.mxu0 0
    %3781 = vmatpush1.bf16.msra.mxu0 %v2853
    %3782 = vmatprep.subr.bf16.mxu0 0
    %3783 = vmatpush1.bf16.msra.mxu0 %v2852
    %3784 = vmatprep.subr.bf16.mxu0 0
    %3785 = vmatpush1.bf16.msra.mxu0 %v2851
    %3786 = vmatprep.subr.bf16.mxu0 0
    %3787 = vmatpush1.bf16.msra.mxu0 %v2850
    %3788 = vmatprep.subr.bf16.mxu0 0
    %3789 = vmatpush1.bf16.msra.mxu0 %v2849
    %3790 = vmatprep.subr.bf16.mxu0 0
    %3791 = vmatpush1.bf16.msra.mxu0 %v2848
    %3792 = vmatprep.subr.bf16.mxu0 0
    %3793 = vmatpush2.bf16.msra.mxu0 %v2863
    %3794 = vmatprep.subr.bf16.mxu0 0
    %3795 = vmatpush2.bf16.msra.mxu0 %v2862
    %3796 = vmatprep.subr.bf16.mxu0 0
    %3797 = vmatpush2.bf16.msra.mxu0 %v2861
    %3798 = vmatprep.subr.bf16.mxu0 0
    %3799 = vmatpush2.bf16.msra.mxu0 %v2860
    %3800 = vmatprep.subr.bf16.mxu0 0
    %3801 = vmatpush2.bf16.msra.mxu0 %v2859
    %3802 = vmatprep.subr.bf16.mxu0 0
    %3803 = vmatpush2.bf16.msra.mxu0 %v2858
    %3804 = vmatprep.subr.bf16.mxu0 0
    %3805 = vmatpush2.bf16.msra.mxu0 %v2857
    %3806 = vmatprep.subr.bf16.mxu0 0
    %3807 = vmatpush2.bf16.msra.mxu0 %v2856
    %3808 = vmatprep.mubr.bf16.mxu0 %v920
    %3809 = vmatmul.mubr.bf16.gmra.mxu0 %v906
    %v3810 = vpop.f32.mrf.mxu0
    %v3811 = vadd.f32 %v3771, %v3810
    %v3812 = vpop.f32.mrf.mxu0
    %v3813 = vpop.f32.mrf.mxu0
    %v3814 = vpop.f32.mrf.mxu0
    %3815 = vdwg.mxu0
    %3816 = vmatprep.subr.bf16.mxu0 0
    %3817 = vmatpush1.bf16.msra.mxu0 %v2871
    %3818 = vmatprep.subr.bf16.mxu0 0
    %3819 = vmatpush1.bf16.msra.mxu0 %v2870
    %3820 = vmatprep.subr.bf16.mxu0 0
    %3821 = vmatpush1.bf16.msra.mxu0 %v2869
    %3822 = vmatprep.subr.bf16.mxu0 0
    %3823 = vmatpush1.bf16.msra.mxu0 %v2868
    %3824 = vmatprep.subr.bf16.mxu0 0
    %3825 = vmatpush1.bf16.msra.mxu0 %v2867
    %3826 = vmatprep.subr.bf16.mxu0 0
    %3827 = vmatpush1.bf16.msra.mxu0 %v2866
    %3828 = vmatprep.subr.bf16.mxu0 0
    %3829 = vmatpush1.bf16.msra.mxu0 %v2865
    %3830 = vmatprep.subr.bf16.mxu0 0
    %3831 = vmatpush1.bf16.msra.mxu0 %v2864
    %3832 = vmatprep.subr.bf16.mxu0 0
    %3833 = vmatpush2.bf16.msra.mxu0 %v2879
    %3834 = vmatprep.subr.bf16.mxu0 0
    %3835 = vmatpush2.bf16.msra.mxu0 %v2878
    %3836 = vmatprep.subr.bf16.mxu0 0
    %3837 = vmatpush2.bf16.msra.mxu0 %v2877
    %3838 = vmatprep.subr.bf16.mxu0 0
    %3839 = vmatpush2.bf16.msra.mxu0 %v2876
    %3840 = vmatprep.subr.bf16.mxu0 0
    %3841 = vmatpush2.bf16.msra.mxu0 %v2875
    %3842 = vmatprep.subr.bf16.mxu0 0
    %3843 = vmatpush2.bf16.msra.mxu0 %v2874
    %3844 = vmatprep.subr.bf16.mxu0 0
    %3845 = vmatpush2.bf16.msra.mxu0 %v2873
    %3846 = vmatprep.subr.bf16.mxu0 0
    %3847 = vmatpush2.bf16.msra.mxu0 %v2872
    %3848 = vmatprep.mubr.bf16.mxu0 %v924
    %3849 = vmatmul.mubr.bf16.gmra.mxu0 %v922
    %v3850 = vpop.f32.mrf.mxu0
    %v3851 = vadd.f32 %v3811, %v3850
    %v3852 = vpop.f32.mrf.mxu0
    %v3853 = vpop.f32.mrf.mxu0
    %v3854 = vpop.f32.mrf.mxu0
    %3855 = vdwg.mxu0
    %3856 = vmatprep.subr.bf16.mxu0 0
    %3857 = vmatpush1.bf16.msra.mxu0 %v2887
    %3858 = vmatprep.subr.bf16.mxu0 0
    %3859 = vmatpush1.bf16.msra.mxu0 %v2886
    %3860 = vmatprep.subr.bf16.mxu0 0
    %3861 = vmatpush1.bf16.msra.mxu0 %v2885
    %3862 = vmatprep.subr.bf16.mxu0 0
    %3863 = vmatpush1.bf16.msra.mxu0 %v2884
    %3864 = vmatprep.subr.bf16.mxu0 0
    %3865 = vmatpush1.bf16.msra.mxu0 %v2883
    %3866 = vmatprep.subr.bf16.mxu0 0
    %3867 = vmatpush1.bf16.msra.mxu0 %v2882
    %3868 = vmatprep.subr.bf16.mxu0 0
    %3869 = vmatpush1.bf16.msra.mxu0 %v2881
    %3870 = vmatprep.subr.bf16.mxu0 0
    %3871 = vmatpush1.bf16.msra.mxu0 %v2880
    %3872 = vmatprep.subr.bf16.mxu0 0
    %3873 = vmatpush2.bf16.msra.mxu0 %v2895
    %3874 = vmatprep.subr.bf16.mxu0 0
    %3875 = vmatpush2.bf16.msra.mxu0 %v2894
    %3876 = vmatprep.subr.bf16.mxu0 0
    %3877 = vmatpush2.bf16.msra.mxu0 %v2893
    %3878 = vmatprep.subr.bf16.mxu0 0
    %3879 = vmatpush2.bf16.msra.mxu0 %v2892
    %3880 = vmatprep.subr.bf16.mxu0 0
    %3881 = vmatpush2.bf16.msra.mxu0 %v2891
    %3882 = vmatprep.subr.bf16.mxu0 0
    %3883 = vmatpush2.bf16.msra.mxu0 %v2890
    %3884 = vmatprep.subr.bf16.mxu0 0
    %3885 = vmatpush2.bf16.msra.mxu0 %v2889
    %3886 = vmatprep.subr.bf16.mxu0 0
    %3887 = vmatpush2.bf16.msra.mxu0 %v2888
    %3888 = vmatprep.mubr.bf16.mxu0 %v962
    %3889 = vmatmul.mubr.bf16.gmra.mxu0 %v948
    %v3890 = vpop.f32.mrf.mxu0
    %v3891 = vadd.f32 %v3851, %v3890
    %v3892 = vpop.f32.mrf.mxu0
    %v3893 = vpop.f32.mrf.mxu0
    %v3894 = vpop.f32.mrf.mxu0
    %3895 = vdwg.mxu0
    %3896 = vmatprep.subr.bf16.mxu0 0
    %3897 = vmatpush1.bf16.msra.mxu0 %v2903
    %3898 = vmatprep.subr.bf16.mxu0 0
    %3899 = vmatpush1.bf16.msra.mxu0 %v2902
    %3900 = vmatprep.subr.bf16.mxu0 0
    %3901 = vmatpush1.bf16.msra.mxu0 %v2901
    %3902 = vmatprep.subr.bf16.mxu0 0
    %3903 = vmatpush1.bf16.msra.mxu0 %v2900
    %3904 = vmatprep.subr.bf16.mxu0 0
    %3905 = vmatpush1.bf16.msra.mxu0 %v2899
    %3906 = vmatprep.subr.bf16.mxu0 0
    %3907 = vmatpush1.bf16.msra.mxu0 %v2898
    %3908 = vmatprep.subr.bf16.mxu0 0
    %3909 = vmatpush1.bf16.msra.mxu0 %v2897
    %3910 = vmatprep.subr.bf16.mxu0 0
    %3911 = vmatpush1.bf16.msra.mxu0 %v2896
    %3912 = vmatprep.subr.bf16.mxu0 0
    %3913 = vmatpush2.bf16.msra.mxu0 %v2911
    %3914 = vmatprep.subr.bf16.mxu0 0
    %3915 = vmatpush2.bf16.msra.mxu0 %v2910
    %3916 = vmatprep.subr.bf16.mxu0 0
    %3917 = vmatpush2.bf16.msra.mxu0 %v2909
    %3918 = vmatprep.subr.bf16.mxu0 0
    %3919 = vmatpush2.bf16.msra.mxu0 %v2908
    %3920 = vmatprep.subr.bf16.mxu0 0
    %3921 = vmatpush2.bf16.msra.mxu0 %v2907
    %3922 = vmatprep.subr.bf16.mxu0 0
    %3923 = vmatpush2.bf16.msra.mxu0 %v2906
    %3924 = vmatprep.subr.bf16.mxu0 0
    %3925 = vmatpush2.bf16.msra.mxu0 %v2905
    %3926 = vmatprep.subr.bf16.mxu0 0
    %3927 = vmatpush2.bf16.msra.mxu0 %v2904
    %3928 = vmatprep.mubr.bf16.mxu0 %v972
    %3929 = vmatmul.mubr.bf16.gmra.mxu0 %v970
    %v3930 = vpop.f32.mrf.mxu0
    %v3931 = vadd.f32 %v3891, %v3930
    %v3932 = vpop.f32.mrf.mxu0
    %v3933 = vpop.f32.mrf.mxu0
    %v3934 = vpop.f32.mrf.mxu0
    %3935 = vdwg.mxu0
    %3936 = vmatprep.subr.bf16.mxu0 0
    %3937 = vmatpush1.bf16.msra.mxu0 %v2919
    %3938 = vmatprep.subr.bf16.mxu0 0
    %3939 = vmatpush1.bf16.msra.mxu0 %v2918
    %3940 = vmatprep.subr.bf16.mxu0 0
    %3941 = vmatpush1.bf16.msra.mxu0 %v2917
    %3942 = vmatprep.subr.bf16.mxu0 0
    %3943 = vmatpush1.bf16.msra.mxu0 %v2916
    %3944 = vmatprep.subr.bf16.mxu0 0
    %3945 = vmatpush1.bf16.msra.mxu0 %v2915
    %3946 = vmatprep.subr.bf16.mxu0 0
    %3947 = vmatpush1.bf16.msra.mxu0 %v2914
    %3948 = vmatprep.subr.bf16.mxu0 0
    %3949 = vmatpush1.bf16.msra.mxu0 %v2913
    %3950 = vmatprep.subr.bf16.mxu0 0
    %3951 = vmatpush1.bf16.msra.mxu0 %v2912
    %3952 = vmatprep.subr.bf16.mxu0 0
    %3953 = vmatpush2.bf16.msra.mxu0 %v2927
    %3954 = vmatprep.subr.bf16.mxu0 0
    %3955 = vmatpush2.bf16.msra.mxu0 %v2926
    %3956 = vmatprep.subr.bf16.mxu0 0
    %3957 = vmatpush2.bf16.msra.mxu0 %v2925
    %3958 = vmatprep.subr.bf16.mxu0 0
    %3959 = vmatpush2.bf16.msra.mxu0 %v2924
    %3960 = vmatprep.subr.bf16.mxu0 0
    %3961 = vmatpush2.bf16.msra.mxu0 %v2923
    %3962 = vmatprep.subr.bf16.mxu0 0
    %3963 = vmatpush2.bf16.msra.mxu0 %v2922
    %3964 = vmatprep.subr.bf16.mxu0 0
    %3965 = vmatpush2.bf16.msra.mxu0 %v2921
    %3966 = vmatprep.subr.bf16.mxu0 0
    %3967 = vmatpush2.bf16.msra.mxu0 %v2920
    %3968 = vmatprep.mubr.bf16.mxu0 %v969
    %3969 = vmatmul.mubr.bf16.gmra.mxu0 %v955
    %v3970 = vpop.f32.mrf.mxu0
    %v3971 = vadd.f32 %v3931, %v3970
    %v3972 = vpop.f32.mrf.mxu0
    %v3973 = vpop.f32.mrf.mxu0
    %v3974 = vpop.f32.mrf.mxu0
    %3975 = vdwg.mxu0
    %3976 = vmatprep.subr.bf16.mxu0 0
    %3977 = vmatpush1.bf16.msra.mxu0 %v2935
    %3978 = vmatprep.subr.bf16.mxu0 0
    %3979 = vmatpush1.bf16.msra.mxu0 %v2934
    %3980 = vmatprep.subr.bf16.mxu0 0
    %3981 = vmatpush1.bf16.msra.mxu0 %v2933
    %3982 = vmatprep.subr.bf16.mxu0 0
    %3983 = vmatpush1.bf16.msra.mxu0 %v2932
    %3984 = vmatprep.subr.bf16.mxu0 0
    %3985 = vmatpush1.bf16.msra.mxu0 %v2931
    %3986 = vmatprep.subr.bf16.mxu0 0
    %3987 = vmatpush1.bf16.msra.mxu0 %v2930
    %3988 = vmatprep.subr.bf16.mxu0 0
    %3989 = vmatpush1.bf16.msra.mxu0 %v2929
    %3990 = vmatprep.subr.bf16.mxu0 0
    %3991 = vmatpush1.bf16.msra.mxu0 %v2928
    %3992 = vmatprep.subr.bf16.mxu0 0
    %3993 = vmatpush2.bf16.msra.mxu0 %v2943
    %3994 = vmatprep.subr.bf16.mxu0 0
    %3995 = vmatpush2.bf16.msra.mxu0 %v2942
    %3996 = vmatprep.subr.bf16.mxu0 0
    %3997 = vmatpush2.bf16.msra.mxu0 %v2941
    %3998 = vmatprep.subr.bf16.mxu0 0
    %3999 = vmatpush2.bf16.msra.mxu0 %v2940
    %4000 = vmatprep.subr.bf16.mxu0 0
    %4001 = vmatpush2.bf16.msra.mxu0 %v2939
    %4002 = vmatprep.subr.bf16.mxu0 0
    %4003 = vmatpush2.bf16.msra.mxu0 %v2938
    %4004 = vmatprep.subr.bf16.mxu0 0
    %4005 = vmatpush2.bf16.msra.mxu0 %v2937
    %4006 = vmatprep.subr.bf16.mxu0 0
    %4007 = vmatpush2.bf16.msra.mxu0 %v2936
    %4008 = vmatprep.mubr.bf16.mxu0 %v973
    %4009 = vmatmul.mubr.bf16.gmra.mxu0 %v971
    %v4010 = vpop.f32.mrf.mxu0
    %v4011 = vadd.f32 %v3971, %v4010
    %v4012 = vpop.f32.mrf.mxu0
    %v4013 = vpop.f32.mrf.mxu0
    %v4014 = vpop.f32.mrf.mxu0
    %4015 = vdwg.mxu0
    %4016 = vmatprep.subr.bf16.mxu0 0
    %4017 = vmatpush1.bf16.msra.mxu0 %v2951
    %4018 = vmatprep.subr.bf16.mxu0 0
    %4019 = vmatpush1.bf16.msra.mxu0 %v2950
    %4020 = vmatprep.subr.bf16.mxu0 0
    %4021 = vmatpush1.bf16.msra.mxu0 %v2949
    %4022 = vmatprep.subr.bf16.mxu0 0
    %4023 = vmatpush1.bf16.msra.mxu0 %v2948
    %4024 = vmatprep.subr.bf16.mxu0 0
    %4025 = vmatpush1.bf16.msra.mxu0 %v2947
    %4026 = vmatprep.subr.bf16.mxu0 0
    %4027 = vmatpush1.bf16.msra.mxu0 %v2946
    %4028 = vmatprep.subr.bf16.mxu0 0
    %4029 = vmatpush1.bf16.msra.mxu0 %v2945
    %4030 = vmatprep.subr.bf16.mxu0 0
    %4031 = vmatpush1.bf16.msra.mxu0 %v2944
    %4032 = vmatprep.subr.bf16.mxu0 0
    %4033 = vmatpush2.bf16.msra.mxu0 %v2959
    %4034 = vmatprep.subr.bf16.mxu0 0
    %4035 = vmatpush2.bf16.msra.mxu0 %v2958
    %4036 = vmatprep.subr.bf16.mxu0 0
    %4037 = vmatpush2.bf16.msra.mxu0 %v2957
    %4038 = vmatprep.subr.bf16.mxu0 0
    %4039 = vmatpush2.bf16.msra.mxu0 %v2956
    %4040 = vmatprep.subr.bf16.mxu0 0
    %4041 = vmatpush2.bf16.msra.mxu0 %v2955
    %4042 = vmatprep.subr.bf16.mxu0 0
    %4043 = vmatpush2.bf16.msra.mxu0 %v2954
    %4044 = vmatprep.subr.bf16.mxu0 0
    %4045 = vmatpush2.bf16.msra.mxu0 %v2953
    %4046 = vmatprep.subr.bf16.mxu0 0
    %4047 = vmatpush2.bf16.msra.mxu0 %v2952
    %4048 = vmatprep.mubr.bf16.mxu0 %v1011
    %4049 = vmatmul.mubr.bf16.gmra.mxu0 %v997
    %v4050 = vpop.f32.mrf.mxu0
    %v4051 = vadd.f32 %v4011, %v4050
    %v4052 = vpop.f32.mrf.mxu0
    %v4053 = vpop.f32.mrf.mxu0
    %v4054 = vpop.f32.mrf.mxu0
    %4055 = vdwg.mxu0
    %4056 = vmatprep.subr.bf16.mxu0 0
    %4057 = vmatpush1.bf16.msra.mxu0 %v2967
    %4058 = vmatprep.subr.bf16.mxu0 0
    %4059 = vmatpush1.bf16.msra.mxu0 %v2966
    %4060 = vmatprep.subr.bf16.mxu0 0
    %4061 = vmatpush1.bf16.msra.mxu0 %v2965
    %4062 = vmatprep.subr.bf16.mxu0 0
    %4063 = vmatpush1.bf16.msra.mxu0 %v2964
    %4064 = vmatprep.subr.bf16.mxu0 0
    %4065 = vmatpush1.bf16.msra.mxu0 %v2963
    %4066 = vmatprep.subr.bf16.mxu0 0
    %4067 = vmatpush1.bf16.msra.mxu0 %v2962
    %4068 = vmatprep.subr.bf16.mxu0 0
    %4069 = vmatpush1.bf16.msra.mxu0 %v2961
    %4070 = vmatprep.subr.bf16.mxu0 0
    %4071 = vmatpush1.bf16.msra.mxu0 %v2960
    %4072 = vmatprep.subr.bf16.mxu0 0
    %4073 = vmatpush2.bf16.msra.mxu0 %v2975
    %4074 = vmatprep.subr.bf16.mxu0 0
    %4075 = vmatpush2.bf16.msra.mxu0 %v2974
    %4076 = vmatprep.subr.bf16.mxu0 0
    %4077 = vmatpush2.bf16.msra.mxu0 %v2973
    %4078 = vmatprep.subr.bf16.mxu0 0
    %4079 = vmatpush2.bf16.msra.mxu0 %v2972
    %4080 = vmatprep.subr.bf16.mxu0 0
    %4081 = vmatpush2.bf16.msra.mxu0 %v2971
    %4082 = vmatprep.subr.bf16.mxu0 0
    %4083 = vmatpush2.bf16.msra.mxu0 %v2970
    %4084 = vmatprep.subr.bf16.mxu0 0
    %4085 = vmatpush2.bf16.msra.mxu0 %v2969
    %4086 = vmatprep.subr.bf16.mxu0 0
    %4087 = vmatpush2.bf16.msra.mxu0 %v2968
    %4088 = vmatprep.mubr.bf16.mxu0 %v1021
    %4089 = vmatmul.mubr.bf16.gmra.mxu0 %v1019
    %v4090 = vpop.f32.mrf.mxu0
    %v4091 = vadd.f32 %v4051, %v4090
    %v4092 = vpop.f32.mrf.mxu0
    %v4093 = vpop.f32.mrf.mxu0
    %v4094 = vpop.f32.mrf.mxu0
    %4095 = vdwg.mxu0
    %4096 = vmatprep.subr.bf16.mxu0 0
    %4097 = vmatpush1.bf16.msra.mxu0 %v2983
    %4098 = vmatprep.subr.bf16.mxu0 0
    %4099 = vmatpush1.bf16.msra.mxu0 %v2982
    %4100 = vmatprep.subr.bf16.mxu0 0
    %4101 = vmatpush1.bf16.msra.mxu0 %v2981
    %4102 = vmatprep.subr.bf16.mxu0 0
    %4103 = vmatpush1.bf16.msra.mxu0 %v2980
    %4104 = vmatprep.subr.bf16.mxu0 0
    %4105 = vmatpush1.bf16.msra.mxu0 %v2979
    %4106 = vmatprep.subr.bf16.mxu0 0
    %4107 = vmatpush1.bf16.msra.mxu0 %v2978
    %4108 = vmatprep.subr.bf16.mxu0 0
    %4109 = vmatpush1.bf16.msra.mxu0 %v2977
    %4110 = vmatprep.subr.bf16.mxu0 0
    %4111 = vmatpush1.bf16.msra.mxu0 %v2976
    %4112 = vmatprep.subr.bf16.mxu0 0
    %4113 = vmatpush2.bf16.msra.mxu0 %v2991
    %4114 = vmatprep.subr.bf16.mxu0 0
    %4115 = vmatpush2.bf16.msra.mxu0 %v2990
    %4116 = vmatprep.subr.bf16.mxu0 0
    %4117 = vmatpush2.bf16.msra.mxu0 %v2989
    %4118 = vmatprep.subr.bf16.mxu0 0
    %4119 = vmatpush2.bf16.msra.mxu0 %v2988
    %4120 = vmatprep.subr.bf16.mxu0 0
    %4121 = vmatpush2.bf16.msra.mxu0 %v2987
    %4122 = vmatprep.subr.bf16.mxu0 0
    %4123 = vmatpush2.bf16.msra.mxu0 %v2986
    %4124 = vmatprep.subr.bf16.mxu0 0
    %4125 = vmatpush2.bf16.msra.mxu0 %v2985
    %4126 = vmatprep.subr.bf16.mxu0 0
    %4127 = vmatpush2.bf16.msra.mxu0 %v2984
    %4128 = vmatprep.mubr.bf16.mxu0 %v1018
    %4129 = vmatmul.mubr.bf16.gmra.mxu0 %v1004
    %v4130 = vpop.f32.mrf.mxu0
    %v4131 = vadd.f32 %v4091, %v4130
    %v4132 = vpop.f32.mrf.mxu0
    %v4133 = vpop.f32.mrf.mxu0
    %v4134 = vpop.f32.mrf.mxu0
    %4135 = vdwg.mxu0
    %4136 = vmatprep.subr.bf16.mxu0 0
    %4137 = vmatpush1.bf16.msra.mxu0 %v2999
    %4138 = vmatprep.subr.bf16.mxu0 0
    %4139 = vmatpush1.bf16.msra.mxu0 %v2998
    %4140 = vmatprep.subr.bf16.mxu0 0
    %4141 = vmatpush1.bf16.msra.mxu0 %v2997
    %4142 = vmatprep.subr.bf16.mxu0 0
    %4143 = vmatpush1.bf16.msra.mxu0 %v2996
    %4144 = vmatprep.subr.bf16.mxu0 0
    %4145 = vmatpush1.bf16.msra.mxu0 %v2995
    %4146 = vmatprep.subr.bf16.mxu0 0
    %4147 = vmatpush1.bf16.msra.mxu0 %v2994
    %4148 = vmatprep.subr.bf16.mxu0 0
    %4149 = vmatpush1.bf16.msra.mxu0 %v2993
    %4150 = vmatprep.subr.bf16.mxu0 0
    %4151 = vmatpush1.bf16.msra.mxu0 %v2992
    %4152 = vmatprep.subr.bf16.mxu0 0
    %4153 = vmatpush2.bf16.msra.mxu0 %v3007
    %4154 = vmatprep.subr.bf16.mxu0 0
    %4155 = vmatpush2.bf16.msra.mxu0 %v3006
    %4156 = vmatprep.subr.bf16.mxu0 0
    %4157 = vmatpush2.bf16.msra.mxu0 %v3005
    %4158 = vmatprep.subr.bf16.mxu0 0
    %4159 = vmatpush2.bf16.msra.mxu0 %v3004
    %4160 = vmatprep.subr.bf16.mxu0 0
    %4161 = vmatpush2.bf16.msra.mxu0 %v3003
    %4162 = vmatprep.subr.bf16.mxu0 0
    %4163 = vmatpush2.bf16.msra.mxu0 %v3002
    %4164 = vmatprep.subr.bf16.mxu0 0
    %4165 = vmatpush2.bf16.msra.mxu0 %v3001
    %4166 = vmatprep.subr.bf16.mxu0 0
    %4167 = vmatpush2.bf16.msra.mxu0 %v3000
    %4168 = vmatprep.mubr.bf16.mxu0 %v1022
    %4169 = vmatmul.mubr.bf16.gmra.mxu0 %v1020
    %v4170 = vpop.f32.mrf.mxu0
    %v4171 = vadd.f32 %v4131, %v4170
    %v4172 = vpop.f32.mrf.mxu0
    %v4173 = vpop.f32.mrf.mxu0
    %v4174 = vpop.f32.mrf.mxu0
    %4175 = vdwg.mxu0
    %4176 = vmatprep.subr.bf16.mxu0 0
    %4177 = vmatpush1.bf16.msra.mxu0 %v3015
    %4178 = vmatprep.subr.bf16.mxu0 0
    %4179 = vmatpush1.bf16.msra.mxu0 %v3014
    %4180 = vmatprep.subr.bf16.mxu0 0
    %4181 = vmatpush1.bf16.msra.mxu0 %v3013
    %4182 = vmatprep.subr.bf16.mxu0 0
    %4183 = vmatpush1.bf16.msra.mxu0 %v3012
    %4184 = vmatprep.subr.bf16.mxu0 0
    %4185 = vmatpush1.bf16.msra.mxu0 %v3011
    %4186 = vmatprep.subr.bf16.mxu0 0
    %4187 = vmatpush1.bf16.msra.mxu0 %v3010
    %4188 = vmatprep.subr.bf16.mxu0 0
    %4189 = vmatpush1.bf16.msra.mxu0 %v3009
    %4190 = vmatprep.subr.bf16.mxu0 0
    %4191 = vmatpush1.bf16.msra.mxu0 %v3008
    %4192 = vmatprep.subr.bf16.mxu0 0
    %4193 = vmatpush2.bf16.msra.mxu0 %v3023
    %4194 = vmatprep.subr.bf16.mxu0 0
    %4195 = vmatpush2.bf16.msra.mxu0 %v3022
    %4196 = vmatprep.subr.bf16.mxu0 0
    %4197 = vmatpush2.bf16.msra.mxu0 %v3021
    %4198 = vmatprep.subr.bf16.mxu0 0
    %4199 = vmatpush2.bf16.msra.mxu0 %v3020
    %4200 = vmatprep.subr.bf16.mxu0 0
    %4201 = vmatpush2.bf16.msra.mxu0 %v3019
    %4202 = vmatprep.subr.bf16.mxu0 0
    %4203 = vmatpush2.bf16.msra.mxu0 %v3018
    %4204 = vmatprep.subr.bf16.mxu0 0
    %4205 = vmatpush2.bf16.msra.mxu0 %v3017
    %4206 = vmatprep.subr.bf16.mxu0 0
    %4207 = vmatpush2.bf16.msra.mxu0 %v3016
    %4208 = vmatprep.mubr.bf16.mxu0 %v1060
    %4209 = vmatmul.mubr.bf16.gmra.mxu0 %v1046
    %v4210 = vpop.f32.mrf.mxu0
    %v4211 = vadd.f32 %v4171, %v4210
    %v4212 = vpop.f32.mrf.mxu0
    %v4213 = vpop.f32.mrf.mxu0
    %v4214 = vpop.f32.mrf.mxu0
    %4215 = vdwg.mxu0
    %4216 = vmatprep.subr.bf16.mxu0 0
    %4217 = vmatpush1.bf16.msra.mxu0 %v3031
    %4218 = vmatprep.subr.bf16.mxu0 0
    %4219 = vmatpush1.bf16.msra.mxu0 %v3030
    %4220 = vmatprep.subr.bf16.mxu0 0
    %4221 = vmatpush1.bf16.msra.mxu0 %v3029
    %4222 = vmatprep.subr.bf16.mxu0 0
    %4223 = vmatpush1.bf16.msra.mxu0 %v3028
    %4224 = vmatprep.subr.bf16.mxu0 0
    %4225 = vmatpush1.bf16.msra.mxu0 %v3027
    %4226 = vmatprep.subr.bf16.mxu0 0
    %4227 = vmatpush1.bf16.msra.mxu0 %v3026
    %4228 = vmatprep.subr.bf16.mxu0 0
    %4229 = vmatpush1.bf16.msra.mxu0 %v3025
    %4230 = vmatprep.subr.bf16.mxu0 0
    %4231 = vmatpush1.bf16.msra.mxu0 %v3024
    %4232 = vmatprep.subr.bf16.mxu0 0
    %4233 = vmatpush2.bf16.msra.mxu0 %v3039
    %4234 = vmatprep.subr.bf16.mxu0 0
    %4235 = vmatpush2.bf16.msra.mxu0 %v3038
    %4236 = vmatprep.subr.bf16.mxu0 0
    %4237 = vmatpush2.bf16.msra.mxu0 %v3037
    %4238 = vmatprep.subr.bf16.mxu0 0
    %4239 = vmatpush2.bf16.msra.mxu0 %v3036
    %4240 = vmatprep.subr.bf16.mxu0 0
    %4241 = vmatpush2.bf16.msra.mxu0 %v3035
    %4242 = vmatprep.subr.bf16.mxu0 0
    %4243 = vmatpush2.bf16.msra.mxu0 %v3034
    %4244 = vmatprep.subr.bf16.mxu0 0
    %4245 = vmatpush2.bf16.msra.mxu0 %v3033
    %4246 = vmatprep.subr.bf16.mxu0 0
    %4247 = vmatpush2.bf16.msra.mxu0 %v3032
    %4248 = vmatprep.mubr.bf16.mxu0 %v1070
    %4249 = vmatmul.mubr.bf16.gmra.mxu0 %v1068
    %v4250 = vpop.f32.mrf.mxu0
    %v4251 = vadd.f32 %v4211, %v4250
    %v4252 = vpop.f32.mrf.mxu0
    %v4253 = vpop.f32.mrf.mxu0
    %v4254 = vpop.f32.mrf.mxu0
    %4255 = vdwg.mxu0
    %4256 = vmatprep.subr.bf16.mxu0 0
    %4257 = vmatpush1.bf16.msra.mxu0 %v3047
    %4258 = vmatprep.subr.bf16.mxu0 0
    %4259 = vmatpush1.bf16.msra.mxu0 %v3046
    %4260 = vmatprep.subr.bf16.mxu0 0
    %4261 = vmatpush1.bf16.msra.mxu0 %v3045
    %4262 = vmatprep.subr.bf16.mxu0 0
    %4263 = vmatpush1.bf16.msra.mxu0 %v3044
    %4264 = vmatprep.subr.bf16.mxu0 0
    %4265 = vmatpush1.bf16.msra.mxu0 %v3043
    %4266 = vmatprep.subr.bf16.mxu0 0
    %4267 = vmatpush1.bf16.msra.mxu0 %v3042
    %4268 = vmatprep.subr.bf16.mxu0 0
    %4269 = vmatpush1.bf16.msra.mxu0 %v3041
    %4270 = vmatprep.subr.bf16.mxu0 0
    %4271 = vmatpush1.bf16.msra.mxu0 %v3040
    %4272 = vmatprep.subr.bf16.mxu0 0
    %4273 = vmatpush2.bf16.msra.mxu0 %v3055
    %4274 = vmatprep.subr.bf16.mxu0 0
    %4275 = vmatpush2.bf16.msra.mxu0 %v3054
    %4276 = vmatprep.subr.bf16.mxu0 0
    %4277 = vmatpush2.bf16.msra.mxu0 %v3053
    %4278 = vmatprep.subr.bf16.mxu0 0
    %4279 = vmatpush2.bf16.msra.mxu0 %v3052
    %4280 = vmatprep.subr.bf16.mxu0 0
    %4281 = vmatpush2.bf16.msra.mxu0 %v3051
    %4282 = vmatprep.subr.bf16.mxu0 0
    %4283 = vmatpush2.bf16.msra.mxu0 %v3050
    %4284 = vmatprep.subr.bf16.mxu0 0
    %4285 = vmatpush2.bf16.msra.mxu0 %v3049
    %4286 = vmatprep.subr.bf16.mxu0 0
    %4287 = vmatpush2.bf16.msra.mxu0 %v3048
    %4288 = vmatprep.mubr.bf16.mxu0 %v1067
    %4289 = vmatmul.mubr.bf16.gmra.mxu0 %v1053
    %v4290 = vpop.f32.mrf.mxu0
    %v4291 = vadd.f32 %v4251, %v4290
    %v4292 = vpop.f32.mrf.mxu0
    %v4293 = vpop.f32.mrf.mxu0
    %v4294 = vpop.f32.mrf.mxu0
    %4295 = vdwg.mxu0
    %4296 = vmatprep.subr.bf16.mxu0 0
    %4297 = vmatpush1.bf16.msra.mxu0 %v3063
    %4298 = vmatprep.subr.bf16.mxu0 0
    %4299 = vmatpush1.bf16.msra.mxu0 %v3062
    %4300 = vmatprep.subr.bf16.mxu0 0
    %4301 = vmatpush1.bf16.msra.mxu0 %v3061
    %4302 = vmatprep.subr.bf16.mxu0 0
    %4303 = vmatpush1.bf16.msra.mxu0 %v3060
    %4304 = vmatprep.subr.bf16.mxu0 0
    %4305 = vmatpush1.bf16.msra.mxu0 %v3059
    %4306 = vmatprep.subr.bf16.mxu0 0
    %4307 = vmatpush1.bf16.msra.mxu0 %v3058
    %4308 = vmatprep.subr.bf16.mxu0 0
    %4309 = vmatpush1.bf16.msra.mxu0 %v3057
    %4310 = vmatprep.subr.bf16.mxu0 0
    %4311 = vmatpush1.bf16.msra.mxu0 %v3056
    %4312 = vmatprep.subr.bf16.mxu0 0
    %4313 = vmatpush2.bf16.msra.mxu0 %v3071
    %4314 = vmatprep.subr.bf16.mxu0 0
    %4315 = vmatpush2.bf16.msra.mxu0 %v3070
    %4316 = vmatprep.subr.bf16.mxu0 0
    %4317 = vmatpush2.bf16.msra.mxu0 %v3069
    %4318 = vmatprep.subr.bf16.mxu0 0
    %4319 = vmatpush2.bf16.msra.mxu0 %v3068
    %4320 = vmatprep.subr.bf16.mxu0 0
    %4321 = vmatpush2.bf16.msra.mxu0 %v3067
    %4322 = vmatprep.subr.bf16.mxu0 0
    %4323 = vmatpush2.bf16.msra.mxu0 %v3066
    %4324 = vmatprep.subr.bf16.mxu0 0
    %4325 = vmatpush2.bf16.msra.mxu0 %v3065
    %4326 = vmatprep.subr.bf16.mxu0 0
    %4327 = vmatpush2.bf16.msra.mxu0 %v3064
    %4328 = vmatprep.mubr.bf16.mxu0 %v1071
    %4329 = vmatmul.mubr.bf16.gmra.mxu0 %v1069
    %v4330 = vpop.f32.mrf.mxu0
    %v4331 = vadd.f32 %v4291, %v4330
    %v4332 = vpop.f32.mrf.mxu0
    %v4333 = vpop.f32.mrf.mxu0
    %v4334 = vpop.f32.mrf.mxu0
    %4335 = vdwg.mxu0
    %4336 = vmatprep.subr.bf16.mxu0 0
    %4337 = vmatpush1.bf16.msra.mxu0 %v3079
    %4338 = vmatprep.subr.bf16.mxu0 0
    %4339 = vmatpush1.bf16.msra.mxu0 %v3078
    %4340 = vmatprep.subr.bf16.mxu0 0
    %4341 = vmatpush1.bf16.msra.mxu0 %v3077
    %4342 = vmatprep.subr.bf16.mxu0 0
    %4343 = vmatpush1.bf16.msra.mxu0 %v3076
    %4344 = vmatprep.subr.bf16.mxu0 0
    %4345 = vmatpush1.bf16.msra.mxu0 %v3075
    %4346 = vmatprep.subr.bf16.mxu0 0
    %4347 = vmatpush1.bf16.msra.mxu0 %v3074
    %4348 = vmatprep.subr.bf16.mxu0 0
    %4349 = vmatpush1.bf16.msra.mxu0 %v3073
    %4350 = vmatprep.subr.bf16.mxu0 0
    %4351 = vmatpush1.bf16.msra.mxu0 %v3072
    %4352 = vmatprep.subr.bf16.mxu0 0
    %4353 = vmatpush2.bf16.msra.mxu0 %v3087
    %4354 = vmatprep.subr.bf16.mxu0 0
    %4355 = vmatpush2.bf16.msra.mxu0 %v3086
    %4356 = vmatprep.subr.bf16.mxu0 0
    %4357 = vmatpush2.bf16.msra.mxu0 %v3085
    %4358 = vmatprep.subr.bf16.mxu0 0
    %4359 = vmatpush2.bf16.msra.mxu0 %v3084
    %4360 = vmatprep.subr.bf16.mxu0 0
    %4361 = vmatpush2.bf16.msra.mxu0 %v3083
    %4362 = vmatprep.subr.bf16.mxu0 0
    %4363 = vmatpush2.bf16.msra.mxu0 %v3082
    %4364 = vmatprep.subr.bf16.mxu0 0
    %4365 = vmatpush2.bf16.msra.mxu0 %v3081
    %4366 = vmatprep.subr.bf16.mxu0 0
    %4367 = vmatpush2.bf16.msra.mxu0 %v3080
    %4368 = vmatprep.mubr.bf16.mxu0 %v1109
    %4369 = vmatmul.mubr.bf16.gmra.mxu0 %v1095
    %v4370 = vpop.f32.mrf.mxu0
    %v4371 = vadd.f32 %v4331, %v4370
    %v4372 = vpop.f32.mrf.mxu0
    %v4373 = vpop.f32.mrf.mxu0
    %v4374 = vpop.f32.mrf.mxu0
    %4375 = vdwg.mxu0
    %4376 = vmatprep.subr.bf16.mxu0 0
    %4377 = vmatpush1.bf16.msra.mxu0 %v3095
    %4378 = vmatprep.subr.bf16.mxu0 0
    %4379 = vmatpush1.bf16.msra.mxu0 %v3094
    %4380 = vmatprep.subr.bf16.mxu0 0
    %4381 = vmatpush1.bf16.msra.mxu0 %v3093
    %4382 = vmatprep.subr.bf16.mxu0 0
    %4383 = vmatpush1.bf16.msra.mxu0 %v3092
    %4384 = vmatprep.subr.bf16.mxu0 0
    %4385 = vmatpush1.bf16.msra.mxu0 %v3091
    %4386 = vmatprep.subr.bf16.mxu0 0
    %4387 = vmatpush1.bf16.msra.mxu0 %v3090
    %4388 = vmatprep.subr.bf16.mxu0 0
    %4389 = vmatpush1.bf16.msra.mxu0 %v3089
    %4390 = vmatprep.subr.bf16.mxu0 0
    %4391 = vmatpush1.bf16.msra.mxu0 %v3088
    %4392 = vmatprep.subr.bf16.mxu0 0
    %4393 = vmatpush2.bf16.msra.mxu0 %v3103
    %4394 = vmatprep.subr.bf16.mxu0 0
    %4395 = vmatpush2.bf16.msra.mxu0 %v3102
    %4396 = vmatprep.subr.bf16.mxu0 0
    %4397 = vmatpush2.bf16.msra.mxu0 %v3101
    %4398 = vmatprep.subr.bf16.mxu0 0
    %4399 = vmatpush2.bf16.msra.mxu0 %v3100
    %4400 = vmatprep.subr.bf16.mxu0 0
    %4401 = vmatpush2.bf16.msra.mxu0 %v3099
    %4402 = vmatprep.subr.bf16.mxu0 0
    %4403 = vmatpush2.bf16.msra.mxu0 %v3098
    %4404 = vmatprep.subr.bf16.mxu0 0
    %4405 = vmatpush2.bf16.msra.mxu0 %v3097
    %4406 = vmatprep.subr.bf16.mxu0 0
    %4407 = vmatpush2.bf16.msra.mxu0 %v3096
    %4408 = vmatprep.mubr.bf16.mxu0 %v1119
    %4409 = vmatmul.mubr.bf16.gmra.mxu0 %v1117
    %v4410 = vpop.f32.mrf.mxu0
    %v4411 = vadd.f32 %v4371, %v4410
    %v4412 = vpop.f32.mrf.mxu0
    %v4413 = vpop.f32.mrf.mxu0
    %v4414 = vpop.f32.mrf.mxu0
    %4415 = vdwg.mxu0
    %4416 = vmatprep.subr.bf16.mxu0 0
    %4417 = vmatpush1.bf16.msra.mxu0 %v3111
    %4418 = vmatprep.subr.bf16.mxu0 0
    %4419 = vmatpush1.bf16.msra.mxu0 %v3110
    %4420 = vmatprep.subr.bf16.mxu0 0
    %4421 = vmatpush1.bf16.msra.mxu0 %v3109
    %4422 = vmatprep.subr.bf16.mxu0 0
    %4423 = vmatpush1.bf16.msra.mxu0 %v3108
    %4424 = vmatprep.subr.bf16.mxu0 0
    %4425 = vmatpush1.bf16.msra.mxu0 %v3107
    %4426 = vmatprep.subr.bf16.mxu0 0
    %4427 = vmatpush1.bf16.msra.mxu0 %v3106
    %4428 = vmatprep.subr.bf16.mxu0 0
    %4429 = vmatpush1.bf16.msra.mxu0 %v3105
    %4430 = vmatprep.subr.bf16.mxu0 0
    %4431 = vmatpush1.bf16.msra.mxu0 %v3104
    %4432 = vmatprep.subr.bf16.mxu0 0
    %4433 = vmatpush2.bf16.msra.mxu0 %v3119
    %4434 = vmatprep.subr.bf16.mxu0 0
    %4435 = vmatpush2.bf16.msra.mxu0 %v3118
    %4436 = vmatprep.subr.bf16.mxu0 0
    %4437 = vmatpush2.bf16.msra.mxu0 %v3117
    %4438 = vmatprep.subr.bf16.mxu0 0
    %4439 = vmatpush2.bf16.msra.mxu0 %v3116
    %4440 = vmatprep.subr.bf16.mxu0 0
    %4441 = vmatpush2.bf16.msra.mxu0 %v3115
    %4442 = vmatprep.subr.bf16.mxu0 0
    %4443 = vmatpush2.bf16.msra.mxu0 %v3114
    %4444 = vmatprep.subr.bf16.mxu0 0
    %4445 = vmatpush2.bf16.msra.mxu0 %v3113
    %4446 = vmatprep.subr.bf16.mxu0 0
    %4447 = vmatpush2.bf16.msra.mxu0 %v3112
    %4448 = vmatprep.mubr.bf16.mxu0 %v1116
    %4449 = vmatmul.mubr.bf16.gmra.mxu0 %v1102
    %v4450 = vpop.f32.mrf.mxu0
    %v4451 = vadd.f32 %v4411, %v4450
    %v4452 = vpop.f32.mrf.mxu0
    %v4453 = vpop.f32.mrf.mxu0
    %v4454 = vpop.f32.mrf.mxu0
    %4455 = vdwg.mxu0
    %4456 = vmatprep.subr.bf16.mxu0 0
    %4457 = vmatpush1.bf16.msra.mxu0 %v3127
    %4458 = vmatprep.subr.bf16.mxu0 0
    %4459 = vmatpush1.bf16.msra.mxu0 %v3126
    %4460 = vmatprep.subr.bf16.mxu0 0
    %4461 = vmatpush1.bf16.msra.mxu0 %v3125
    %4462 = vmatprep.subr.bf16.mxu0 0
    %4463 = vmatpush1.bf16.msra.mxu0 %v3124
    %4464 = vmatprep.subr.bf16.mxu0 0
    %4465 = vmatpush1.bf16.msra.mxu0 %v3123
    %4466 = vmatprep.subr.bf16.mxu0 0
    %4467 = vmatpush1.bf16.msra.mxu0 %v3122
    %4468 = vmatprep.subr.bf16.mxu0 0
    %4469 = vmatpush1.bf16.msra.mxu0 %v3121
    %4470 = vmatprep.subr.bf16.mxu0 0
    %4471 = vmatpush1.bf16.msra.mxu0 %v3120
    %4472 = vmatprep.subr.bf16.mxu0 0
    %4473 = vmatpush2.bf16.msra.mxu0 %v3135
    %4474 = vmatprep.subr.bf16.mxu0 0
    %4475 = vmatpush2.bf16.msra.mxu0 %v3134
    %4476 = vmatprep.subr.bf16.mxu0 0
    %4477 = vmatpush2.bf16.msra.mxu0 %v3133
    %4478 = vmatprep.subr.bf16.mxu0 0
    %4479 = vmatpush2.bf16.msra.mxu0 %v3132
    %4480 = vmatprep.subr.bf16.mxu0 0
    %4481 = vmatpush2.bf16.msra.mxu0 %v3131
    %4482 = vmatprep.subr.bf16.mxu0 0
    %4483 = vmatpush2.bf16.msra.mxu0 %v3130
    %4484 = vmatprep.subr.bf16.mxu0 0
    %4485 = vmatpush2.bf16.msra.mxu0 %v3129
    %4486 = vmatprep.subr.bf16.mxu0 0
    %4487 = vmatpush2.bf16.msra.mxu0 %v3128
    %4488 = vmatprep.mubr.bf16.mxu0 %v1120
    %4489 = vmatmul.mubr.bf16.gmra.mxu0 %v1118
    %v4490 = vpop.f32.mrf.mxu0
    %v4491 = vadd.f32 %v4451, %v4490
    %v4492 = vpop.f32.mrf.mxu0
    %v4493 = vpop.f32.mrf.mxu0
    %v4494 = vpop.f32.mrf.mxu0
    %4495 = vdwg.mxu0
    %4496 = vmatprep.subr.bf16.mxu0 0
    %4497 = vmatpush1.bf16.msra.mxu0 %v3143
    %4498 = vmatprep.subr.bf16.mxu0 0
    %4499 = vmatpush1.bf16.msra.mxu0 %v3142
    %4500 = vmatprep.subr.bf16.mxu0 0
    %4501 = vmatpush1.bf16.msra.mxu0 %v3141
    %4502 = vmatprep.subr.bf16.mxu0 0
    %4503 = vmatpush1.bf16.msra.mxu0 %v3140
    %4504 = vmatprep.subr.bf16.mxu0 0
    %4505 = vmatpush1.bf16.msra.mxu0 %v3139
    %4506 = vmatprep.subr.bf16.mxu0 0
    %4507 = vmatpush1.bf16.msra.mxu0 %v3138
    %4508 = vmatprep.subr.bf16.mxu0 0
    %4509 = vmatpush1.bf16.msra.mxu0 %v3137
    %4510 = vmatprep.subr.bf16.mxu0 0
    %4511 = vmatpush1.bf16.msra.mxu0 %v3136
    %4512 = vmatprep.subr.bf16.mxu0 0
    %4513 = vmatpush2.bf16.msra.mxu0 0
    %4514 = vmatprep.subr.bf16.mxu0 0
    %4515 = vmatpush2.bf16.msra.mxu0 0
    %4516 = vmatprep.subr.bf16.mxu0 0
    %4517 = vmatpush2.bf16.msra.mxu0 0
    %4518 = vmatprep.subr.bf16.mxu0 0
    %4519 = vmatpush2.bf16.msra.mxu0 0
    %4520 = vmatprep.subr.bf16.mxu0 0
    %4521 = vmatpush2.bf16.msra.mxu0 0
    %4522 = vmatprep.subr.bf16.mxu0 0
    %4523 = vmatpush2.bf16.msra.mxu0 0
    %4524 = vmatprep.subr.bf16.mxu0 0
    %4525 = vmatpush2.bf16.msra.mxu0 0
    %4526 = vmatprep.subr.bf16.mxu0 0
    %4527 = vmatpush2.bf16.msra.mxu0 0
    %4528 = vmatprep.mubr.bf16.mxu0 0
    %4529 = vmatmul.mubr.bf16.gmra.mxu0 %v1134
    %v4530 = vpop.f32.mrf.mxu0
    %v4531 = vadd.f32 %v4491, %v4530
    %v4532 = vpop.f32.mrf.mxu0
    %v4533 = vpop.f32.mrf.mxu0
    %v4534 = vpop.f32.mrf.mxu0
    %4535 = vdwg.mxu0
    %v4536 = vmax.f32 %v4531, 0.0
    %v4537 = vpack.c.bf16 %v4536, %v4536
    %v4538 = vld [vmem:[%s3] sm:$0xf]
    %v4539 = vld [vmem:[%s3 + $0x4] sm:$0xf]
    %v4540 = vld [vmem:[%s3 + $0x8] sm:$0xf]
    %v4541 = vld [vmem:[%s3 + $0xc] sm:$0xf]
    %v4542 = vld [vmem:[%s3 + $0x10] sm:$0xf]
    %v4543 = vld [vmem:[%s3 + $0x14] sm:$0xf]
    %v4544 = vld [vmem:[%s3 + $0x18] sm:$0xf]
    %v4545 = vld [vmem:[%s3 + $0x1c] sm:$0xf]
    %v4546 = vld [vmem:[%s3 + $0x20] sm:$0xf]
    %v4547 = vld [vmem:[%s3 + $0x24] sm:$0xf]
    %v4548 = vld [vmem:[%s3 + $0x28] sm:$0xf]
    %v4549 = vld [vmem:[%s3 + $0x2c] sm:$0xf]
    %v4550 = vld [vmem:[%s3 + $0x30] sm:$0xf]
    %v4551 = vld [vmem:[%s3 + $0x34] sm:$0xf]
    %v4552 = vld [vmem:[%s3 + $0x38] sm:$0xf]
    %v4553 = vld [vmem:[%s3 + $0x3c] sm:$0xf]
    %v4554 = vld [vmem:[%s4] sm:$0x1]
    %v4556 = vlaneseq
    %v4557 = vshrl.u32 %v4556, 7
    %v4558 = vsub.s32 0, %v4557
    %v4559 = vrot.slane %v4554, %v4558
    %v4577 = vunpack.c.l.b16 %v4538
    %v4578 = vunpack.c.l.b16 %v4539
    %v4579 = vunpack.c.l.b16 %v4540
    %v4580 = vunpack.c.l.b16 %v4541
    %v4581 = vunpack.c.l.b16 %v4542
    %v4582 = vunpack.c.l.b16 %v4543
    %v4583 = vunpack.c.l.b16 %v4544
    %v4584 = vunpack.c.l.b16 %v4545
    %v4585 = vunpack.c.l.b16 %v4546
    %v4586 = vunpack.c.l.b16 %v4547
    %v4587 = vunpack.c.l.b16 %v4548
    %v4588 = vunpack.c.l.b16 %v4549
    %v4589 = vunpack.c.l.b16 %v4550
    %v4590 = vunpack.c.l.b16 %v4551
    %v4591 = vunpack.c.l.b16 %v4552
    %v4592 = vunpack.c.l.b16 %v4553
    %v4593 = vpack.c.b16 %v4578, %v4577
    %v4594 = vpack.c.b16 %v4580, %v4579
    %v4595 = vpack.c.b16 %v4582, %v4581
    %v4596 = vpack.c.b16 %v4584, %v4583
    %v4597 = vpack.c.b16 %v4586, %v4585
    %v4598 = vpack.c.b16 %v4588, %v4587
    %v4599 = vpack.c.b16 %v4590, %v4589
    %v4600 = vpack.c.b16 %v4592, %v4591
    %4609 = vmatprep.subr.bf16.mxu0 0
    %4610 = vmatpush1.bf16.msra.mxu0 %v4600
    %4611 = vmatprep.subr.bf16.mxu0 0
    %4612 = vmatpush1.bf16.msra.mxu0 %v4599
    %4613 = vmatprep.subr.bf16.mxu0 0
    %4614 = vmatpush1.bf16.msra.mxu0 %v4598
    %4615 = vmatprep.subr.bf16.mxu0 0
    %4616 = vmatpush1.bf16.msra.mxu0 %v4597
    %4617 = vmatprep.subr.bf16.mxu0 0
    %4618 = vmatpush1.bf16.msra.mxu0 %v4596
    %4619 = vmatprep.subr.bf16.mxu0 0
    %4620 = vmatpush1.bf16.msra.mxu0 %v4595
    %4621 = vmatprep.subr.bf16.mxu0 0
    %4622 = vmatpush1.bf16.msra.mxu0 %v4594
    %4623 = vmatprep.subr.bf16.mxu0 0
    %4624 = vmatpush1.bf16.msra.mxu0 %v4593
    %4625 = vmatprep.subr.bf16.mxu0 0
    %4626 = vmatpush2.bf16.msra.mxu0 0
    %4627 = vmatprep.subr.bf16.mxu0 0
    %4628 = vmatpush2.bf16.msra.mxu0 0
    %4629 = vmatprep.subr.bf16.mxu0 0
    %4630 = vmatpush2.bf16.msra.mxu0 0
    %4631 = vmatprep.subr.bf16.mxu0 0
    %4632 = vmatpush2.bf16.msra.mxu0 0
    %4633 = vmatprep.subr.bf16.mxu0 0
    %4634 = vmatpush2.bf16.msra.mxu0 0
    %4635 = vmatprep.subr.bf16.mxu0 0
    %4636 = vmatpush2.bf16.msra.mxu0 0
    %4637 = vmatprep.subr.bf16.mxu0 0
    %4638 = vmatpush2.bf16.msra.mxu0 0
    %4639 = vmatprep.subr.bf16.mxu0 0
    %4640 = vmatpush2.bf16.msra.mxu0 0
    %4641 = vmatprep.mubr.bf16.mxu0 0
    %4642 = vmatmul.mubr.bf16.gmra.mxu0 %v4537
    %v4643 = vpop.f32.mrf.mxu0
    %v4644 = vadd.f32 %v4559, %v4643
    %v4645 = vpop.f32.mrf.mxu0
    %v4646 = vpop.f32.mrf.mxu0
    %v4647 = vpop.f32.mrf.mxu0
    %4648 = vdwg.mxu0
    %4649 = vst [vmem:[#allocation2] sm:$0x3] %v4644
    // Predicated region
    $region22: #{simple_cnn_pallas.3} parent=1 // pred_check
      _
    $region23: #{simple_cnn_pallas.3} parent=1 // pred_check_branch
      %4651 = sbr.rel (0) target = $region25
    $region24: #{simple_cnn_pallas.3} parent=1 // pred_region
      %s4653 = ssub.s32 32, 32
      %4654 = vsyncadd [#allocation3], %s4653
      %s4656 = sshll.u32 [#allocation2], 4
      %s4657 = int_to_ptr.vmem [resolvable:$true] %s4656
      %4659 = dma.vmem_to_hbm [thread:$0]  %s4657, 32, %s5, [#allocation3]
    $region25: #{simple_cnn_pallas.3} parent=1 // pred_fallthru
      _
    // Predicated region
    $region26: #{simple_cnn_pallas.3} parent=1 // pred_check
      _
    $region27: #{simple_cnn_pallas.3} parent=1 // pred_check_branch
      %4661 = sbr.rel (0) target = $region29
    $region28: #{simple_cnn_pallas.3} parent=1 // pred_region
      %4662 = dma.done [#allocation3], 32
    $region29: #{simple_cnn_pallas.3} parent=1 // pred_fallthru
      _
    %4663 = vsyncpa [#allocation3], 1

</llo_original>
